<compile_context>
chip_gen: v7x
topology: tpu7x:2x2x1
jax: 0.10.0
libtpu: 0.0.40
codegen_flags: <defaults>
</compile_context>

<pallas_src>
import jax
import jax.numpy as jnp
from jax import lax
from jax.experimental import pallas as pl
from jax.experimental.pallas import tpu as pltpu


# ----------------------------------------------------------------------------
# Fused forward kernel factory (static T, B, H, n_layers).
# ----------------------------------------------------------------------------
def _make_fused_kernel(T, B, H, n_layers):
    G = 4 * H

    def kernel(*refs):
        seq_ref = refs[0]                                  # (T*B, n_nodes)
        layer_refs = refs[1:1 + 3 * n_layers]
        (fc1w_ref, fc1b_ref, fc2w_ref, fc2b_ref,
         o_ref, xproj_sc) = refs[1 + 3 * n_layers:]

        wih_refs = [layer_refs[3 * l + 0] for l in range(n_layers)]  # (In_l, 4H)
        whh_refs = [layer_refs[3 * l + 1] for l in range(n_layers)]  # (H, 4H)
        b_refs = [layer_refs[3 * l + 2] for l in range(n_layers)]    # (1, 4H)

        # ------------------------------------------------------------------
        # g-gate column scale (x2) so a single full-width sigmoid serves all
        # four gates; tanh(g) == 2*sigmoid(2g) - 1.
        # ------------------------------------------------------------------
        col = lax.broadcasted_iota(jnp.int32, (1, G), 1)
        gscale = jnp.where((col >= 2 * H) & (col < 3 * H),
                           jnp.float32(2.0), jnp.float32(1.0))

        # Pre-scaled weights/biases, computed once (off the recurrence path).
        whh_s = [whh_refs[l][...] * gscale for l in range(n_layers)]
        wih_s = [None] + [wih_refs[l][...] * gscale
                          for l in range(1, n_layers)]
        b_s = [None] + [b_refs[l][...] * gscale for l in range(1, n_layers)]

        # Layer-0 input projection for ALL time steps in one MXU call
        # (bias + g-scale folded in), off the recurrence critical path.
        xproj_sc[...] = (
            jnp.dot(seq_ref[...], wih_refs[0][...],
                    preferred_element_type=jnp.float32)
            + b_refs[0][...]) * gscale

        zeros = jnp.zeros((B, H), jnp.float32)
        h = [zeros] * n_layers
        c = [zeros] * n_layers

        def wave(h, c, w, active):
            """One wavefront step: layer l advances to time step t = w - l."""
            new_h = list(h)
            new_c = list(c)
            for l in range(n_layers):
                if not active[l]:
                    continue
                if l == 0:
                    off = w * B
                    if not isinstance(off, int):
                        off = pl.multiple_of(off, B)
                    pre = xproj_sc[pl.ds(off, B), :]
                else:
                    pre = (jnp.dot(h[l - 1], wih_s[l],
                                   preferred_element_type=jnp.float32)
                           + b_s[l])
                gates = pre + jnp.dot(h[l], whh_s[l],
                                      preferred_element_type=jnp.float32)
                sig = jax.nn.sigmoid(gates)              # one full-width EUP pass
                i_g = sig[:, 0 * H:1 * H]
                f_g = sig[:, 1 * H:2 * H]
                g_g = 2.0 * sig[:, 2 * H:3 * H] - 1.0    # == tanh(g preact)
                o_g = sig[:, 3 * H:4 * H]
                c_new = f_g * c[l] + i_g * g_g
                h_new = o_g * jnp.tanh(c_new)
                new_h[l] = h_new
                new_c[l] = c_new
            return new_h, new_c

        # Prologue waves (pipeline fill): only lower layers active.
        for w in range(n_layers - 1):
            active = tuple(0 <= w - l < T for l in range(n_layers))
            h, c = wave(h, c, w, active)

        # Steady-state waves: every layer active.
        def body(w, carry):
            hh, cc = carry
            hh, cc = wave(hh, cc, w, (True,) * n_layers)
            return (tuple(hh), tuple(cc))

        n_steady = T - (n_layers - 1)
        unroll = True if n_steady <= 16 else 8
        h, c = lax.fori_loop(n_layers - 1, T, body,
                             (tuple(h), tuple(c)), unroll=unroll)
        h = list(h)
        c = list(c)

        # Epilogue waves (pipeline drain): only upper layers active.
        for w in range(T, T + n_layers - 1):
            active = tuple(0 <= w - l < T for l in range(n_layers))
            h, c = wave(h, c, w, active)

        h_last = h[n_layers - 1]                         # top layer, last step

        # FC head: Linear -> ReLU -> Linear on the last hidden state only.
        h1 = jnp.dot(h_last, fc1w_ref[...],
                     preferred_element_type=jnp.float32) + fc1b_ref[...]
        h1 = jnp.maximum(h1, 0.0)
        o_ref[...] = (jnp.dot(h1, fc2w_ref[...],
                              preferred_element_type=jnp.float32)
                      + fc2b_ref[...])

    return kernel


# ----------------------------------------------------------------------------
# Full forward (matches EpilepsyLSTM.forward).
# ----------------------------------------------------------------------------
@jax.jit
def epilepsy_lstm_forward(x, params):
    """x: (B, n_nodes, T) float32  ->  logits (B, n_classes) float32."""
    B, n_nodes, T = x.shape
    lstm = params["lstm"]
    n_layers = len(lstm)
    H = lstm[0]["whh_t"].shape[0]
    hd = params["fc1_wt"].shape[1]
    C = params["fc2_wt"].shape[1]
    assert T >= n_layers, "wavefront schedule assumes T >= num LSTM layers"

    # (B, n_nodes, T) -> time-major flattened (T*B, n_nodes); with
    # allow_input_fusion XLA may fuse this permute into the kernel's input
    # DMA instead of launching a separate transpose kernel.
    seq_flat = jnp.transpose(x, (2, 0, 1)).reshape(T * B, n_nodes)

    inputs = [seq_flat]
    in_specs = [pl.BlockSpec((T * B, n_nodes), lambda i: (0, 0))]
    for layer in lstm:
        for name in ("wih_t", "whh_t", "b"):
            arr = layer[name]
            inputs.append(arr)
            in_specs.append(
                pl.BlockSpec(arr.shape, lambda i, nd=arr.ndim: (0,) * nd))
    for name in ("fc1_wt", "fc1_b", "fc2_wt", "fc2_b"):
        arr = params[name]
        inputs.append(arr)
        in_specs.append(
            pl.BlockSpec(arr.shape, lambda i, nd=arr.ndim: (0,) * nd))

    # Advisory cost estimate for XLA scheduling around this latency-bound call.
    flops = (2 * T * B * n_nodes * 4 * H
             + 2 * T * B * H * 4 * H * (2 * n_layers - 1)
             + 2 * B * (H * hd + hd * C))
    transcendentals = T * B * n_layers * 5 * H
    bytes_accessed = 4 * (int(seq_flat.size)
                          + sum(int(a.size) for a in inputs[1:])
                          + B * C)

    return pl.pallas_call(
        _make_fused_kernel(T, B, H, n_layers),
        out_shape=jax.ShapeDtypeStruct((B, C), jnp.float32),
        grid_spec=pltpu.PrefetchScalarGridSpec(
            num_scalar_prefetch=0,
            grid=(1,),
            in_specs=in_specs,
            out_specs=pl.BlockSpec((B, C), lambda i: (0, 0)),
            scratch_shapes=[
                # Layer-0 x-projection for all T steps (bias + g-scale folded).
                # TODO(synk): for long EEG sequences, chunk this over T-blocks
                # (and/or store in bf16) to fit v7x's 64 MiB VMEM.
                pltpu.VMEM((T * B, 4 * H), jnp.float32),
            ],
        ),
        compiler_params=pltpu.CompilerParams(
            dimension_semantics=("arbitrary",),
            allow_input_fusion=[True] + [False] * (len(inputs) - 1),
        ),
        cost_estimate=pl.CostEstimate(
            flops=flops,
            transcendentals=transcendentals,
            bytes_accessed=bytes_accessed),
    )(*inputs)


# ----------------------------------------------------------------------------
# Pure-JAX reference (for correctness check).
# ----------------------------------------------------------------------------
def reference_forward(x, params):
    x = jnp.transpose(x, (0, 2, 1))        # (B, T, In)
    B = x.shape[0]
    seq = x
    for layer in params["lstm"]:
        H = layer["whh_t"].shape[0]
        h0 = jnp.zeros((B, H), jnp.float32)
        c0 = jnp.zeros((B, H), jnp.float32)

        def step(carry, x_t, layer=layer, H=H):
            h, c = carry
            g = x_t @ layer["wih_t"] + h @ layer["whh_t"] + layer["b"][0]
            i = jax.nn.sigmoid(g[:, 0 * H:1 * H])
            f = jax.nn.sigmoid(g[:, 1 * H:2 * H])
            gg = jnp.tanh(g[:, 2 * H:3 * H])
            o = jax.nn.sigmoid(g[:, 3 * H:4 * H])
            c = f * c + i * gg
            h = o * jnp.tanh(c)
            return (h, c), h

        (_, _), hs = jax.lax.scan(step, (h0, c0),
                                  jnp.transpose(seq, (1, 0, 2)))
        seq = jnp.transpose(hs, (1, 0, 2))
    last = seq[:, -1, :]
    h1 = jnp.maximum(last @ params["fc1_wt"] + params["fc1_b"][0], 0.0)
    return h1 @ params["fc2_wt"] + params["fc2_b"][0]


# ----------------------------------------------------------------------------
# Deterministic parameter construction (shapes from EpilepsyLSTM.__init__).
# ----------------------------------------------------------------------------
def make_params(key, n_nodes, hidden_size, Lstacks, hd, n_classes):
    params = {"lstm": []}
    scale = 0.1
    for layer in range(Lstacks):
        in_size = n_nodes if layer == 0 else hidden_size
        key, k1, k2, k3, k4 = jax.random.split(key, 5)
        w_ih = scale * jax.random.normal(k1, (4 * hidden_size, in_size), jnp.float32)
        w_hh = scale * jax.random.normal(k2, (4 * hidden_size, hidden_size), jnp.float32)
        b_ih = scale * jax.random.normal(k3, (4 * hidden_size,), jnp.float32)
        b_hh = scale * jax.random.normal(k4, (4 * hidden_size,), jnp.float32)
        params["lstm"].append({
            "wih_t": jnp.transpose(w_ih),                     # (In, 4H)
            "whh_t": jnp.transpose(w_hh),                     # (H, 4H)
            "b": (b_ih + b_hh).reshape(1, 4 * hidden_size),   # (1, 4H)
        })
    key, k1, k2, k3, k4 = jax.random.split(key, 5)
    fc1_w = scale * jax.random.normal(k1, (hd, hidden_size), jnp.float32)
    fc1_b = scale * jax.random.normal(k2, (hd,), jnp.float32)
    fc2_w = scale * jax.random.normal(k3, (n_classes, hd), jnp.float32)
    fc2_b = scale * jax.random.normal(k4, (n_classes,), jnp.float32)
    params["fc1_wt"] = jnp.transpose(fc1_w)          # (H, hd)
    params["fc1_b"] = fc1_b.reshape(1, hd)
    params["fc2_wt"] = jnp.transpose(fc2_w)          # (hd, C)
    params["fc2_b"] = fc2_b.reshape(1, n_classes)
    return params


if __name__ == "__main__":
    # Small, module-consistent shapes.
    B, n_nodes, T = 8, 16, 8          # x: (batch, n_nodes, seq_len)
    hidden_size, Lstacks = 32, 2
    hd, n_classes = 16, 2

    key = jax.random.PRNGKey(0)
    key, kx, kp = jax.random.split(key, 3)
    x = jax.random.normal(kx, (B, n_nodes, T), jnp.float32)
    params = make_params(kp, n_nodes, hidden_size, Lstacks, hd, n_classes)

    logits = epilepsy_lstm_forward(x, params)
    logits = jax.block_until_ready(logits)

    ref = jax.block_until_ready(reference_forward(x, params))
    assert logits.shape == (B, n_classes)
    assert jnp.allclose(logits, ref, atol=1e-3, rtol=1e-3), (logits, ref)

    print("KERNEL_OK")
</pallas_src>

<mosaic_0001>
module attributes {stable_mosaic.version = 11 : i64} {
  func.func @kernel(%arg0: i32, %arg1: memref<64x16xf32, #tpu.memory_space<vmem>>, %arg2: memref<16x128xf32, #tpu.memory_space<vmem>>, %arg3: memref<32x128xf32, #tpu.memory_space<vmem>>, %arg4: memref<1x128xf32, #tpu.memory_space<vmem>>, %arg5: memref<32x128xf32, #tpu.memory_space<vmem>>, %arg6: memref<32x128xf32, #tpu.memory_space<vmem>>, %arg7: memref<1x128xf32, #tpu.memory_space<vmem>>, %arg8: memref<32x16xf32, #tpu.memory_space<vmem>>, %arg9: memref<1x16xf32, #tpu.memory_space<vmem>>, %arg10: memref<16x2xf32, #tpu.memory_space<vmem>>, %arg11: memref<1x2xf32, #tpu.memory_space<vmem>>, %arg12: memref<8x2xf32, #tpu.memory_space<vmem>>, %arg13: memref<64x128xf32, #tpu.memory_space<vmem>>) attributes {dimension_semantics = [#tpu.dimension_semantics<arbitrary>], iteration_bounds = array<i64: 1>, scalar_prefetch = 0 : i64, scratch_operands = 1 : i64, tpu.core_type = #tpu.core_type<tc>, window_params = [{pipeline_mode = #tpu.pipeline_mode<synchronous>, transform_indices = @transform_0, window_bounds = array<i64: 64, 16>}, {pipeline_mode = #tpu.pipeline_mode<synchronous>, transform_indices = @transform_1, window_bounds = array<i64: 16, 128>}, {pipeline_mode = #tpu.pipeline_mode<synchronous>, transform_indices = @transform_2, window_bounds = array<i64: 32, 128>}, {pipeline_mode = #tpu.pipeline_mode<synchronous>, transform_indices = @transform_3, window_bounds = array<i64: 1, 128>}, {pipeline_mode = #tpu.pipeline_mode<synchronous>, transform_indices = @transform_4, window_bounds = array<i64: 32, 128>}, {pipeline_mode = #tpu.pipeline_mode<synchronous>, transform_indices = @transform_5, window_bounds = array<i64: 32, 128>}, {pipeline_mode = #tpu.pipeline_mode<synchronous>, transform_indices = @transform_6, window_bounds = array<i64: 1, 128>}, {pipeline_mode = #tpu.pipeline_mode<synchronous>, transform_indices = @transform_7, window_bounds = array<i64: 32, 16>}, {pipeline_mode = #tpu.pipeline_mode<synchronous>, transform_indices = @transform_8, window_bounds = array<i64: 1, 16>}, {pipeline_mode = #tpu.pipeline_mode<synchronous>, transform_indices = @transform_9, window_bounds = array<i64: 16, 2>}, {pipeline_mode = #tpu.pipeline_mode<synchronous>, transform_indices = @transform_10, window_bounds = array<i64: 1, 2>}, {pipeline_mode = #tpu.pipeline_mode<synchronous>, transform_indices = @transform_11, window_bounds = array<i64: 8, 2>}]} {
    %0 = tpu.iota {dimensions = array<i32: 1>} : vector<1x128xi32>
    %c64_i32 = arith.constant 64 : i32
    %1 = vector.broadcast %c64_i32 : i32 to vector<1x128xi32>
    %2 = arith.cmpi sge, %0, %1 : vector<1x128xi32>
    %c96_i32 = arith.constant 96 : i32
    %3 = vector.broadcast %c96_i32 : i32 to vector<1x128xi32>
    %4 = arith.cmpi slt, %0, %3 : vector<1x128xi32>
    %5 = arith.andi %2, %4 : vector<1x128xi1>
    %cst = arith.constant 2.000000e+00 : f32
    %cst_0 = arith.constant 1.000000e+00 : f32
    %6 = vector.broadcast %cst : f32 to vector<1x128xf32>
    %7 = vector.broadcast %cst_0 : f32 to vector<1x128xf32>
    %8 = arith.select %5, %6, %7 : vector<1x128xi1>, vector<1x128xf32>
    %c0 = arith.constant 0 : index
    %c0_1 = arith.constant 0 : index
    %9 = vector.load %arg3[%c0, %c0_1] : memref<32x128xf32, #tpu.memory_space<vmem>>, vector<32x128xf32>
    %10 = vector.broadcast %8 : vector<1x128xf32> to vector<32x128xf32>
    %11 = arith.mulf %9, %10 : vector<32x128xf32>
    %c0_2 = arith.constant 0 : index
    %c0_3 = arith.constant 0 : index
    %12 = vector.load %arg6[%c0_2, %c0_3] : memref<32x128xf32, #tpu.memory_space<vmem>>, vector<32x128xf32>
    %13 = vector.broadcast %8 : vector<1x128xf32> to vector<32x128xf32>
    %14 = arith.mulf %12, %13 : vector<32x128xf32>
    %c0_4 = arith.constant 0 : index
    %c0_5 = arith.constant 0 : index
    %15 = vector.load %arg5[%c0_4, %c0_5] : memref<32x128xf32, #tpu.memory_space<vmem>>, vector<32x128xf32>
    %16 = vector.broadcast %8 : vector<1x128xf32> to vector<32x128xf32>
    %17 = arith.mulf %15, %16 : vector<32x128xf32>
    %c0_6 = arith.constant 0 : index
    %c0_7 = arith.constant 0 : index
    %18 = vector.load %arg7[%c0_6, %c0_7] : memref<1x128xf32, #tpu.memory_space<vmem>>, vector<1x128xf32>
    %19 = arith.mulf %18, %8 : vector<1x128xf32>
    %c0_8 = arith.constant 0 : index
    %c0_9 = arith.constant 0 : index
    %20 = vector.load %arg1[%c0_8, %c0_9] : memref<64x16xf32, #tpu.memory_space<vmem>>, vector<64x16xf32>
    %c0_10 = arith.constant 0 : index
    %c0_11 = arith.constant 0 : index
    %21 = vector.load %arg2[%c0_10, %c0_11] : memref<16x128xf32, #tpu.memory_space<vmem>>, vector<16x128xf32>
    %cst_12 = arith.constant dense<0.000000e+00> : vector<64x128xf32>
    %22 = tpu.matmul %20, %21, %cst_12 {dimension_numbers = #tpu.dot_dimension_numbers<[1], [0], [0], [1], [0, 0, 1, 1], [], []>} : vector<64x16xf32>, vector<16x128xf32>, vector<64x128xf32> -> vector<64x128xf32>
    %c0_13 = arith.constant 0 : index
    %c0_14 = arith.constant 0 : index
    %23 = vector.load %arg4[%c0_13, %c0_14] : memref<1x128xf32, #tpu.memory_space<vmem>>, vector<1x128xf32>
    %24 = vector.broadcast %23 : vector<1x128xf32> to vector<64x128xf32>
    %25 = arith.addf %22, %24 : vector<64x128xf32>
    %26 = vector.broadcast %8 : vector<1x128xf32> to vector<64x128xf32>
    %27 = arith.mulf %25, %26 : vector<64x128xf32>
    %c0_15 = arith.constant 0 : index
    %c0_16 = arith.constant 0 : index
    %28 = vector.load %arg13[%c0_15, %c0_16] : memref<64x128xf32, #tpu.memory_space<vmem>>, vector<64x128xf32>
    tpu.vector_store %arg13[%c0_15, %c0_16], %27 {strides = array<i32>} : memref<64x128xf32, #tpu.memory_space<vmem>>, vector<64x128xf32>,
    %cst_17 = arith.constant 0.000000e+00 : f32
    %29 = vector.broadcast %cst_17 : f32 to vector<8x32xf32>
    %c0_18 = arith.constant 0 : index
    %c0_19 = arith.constant 0 : index
    %30 = vector.load %arg13[%c0_18, %c0_19] : memref<64x128xf32, #tpu.memory_space<vmem>>, vector<8x128xf32>
    %cst_20 = arith.constant dense<0.000000e+00> : vector<8x128xf32>
    %31 = tpu.matmul %29, %11, %cst_20 {dimension_numbers = #tpu.dot_dimension_numbers<[1], [0], [0], [1], [0, 0, 1, 1], [], []>} : vector<8x32xf32>, vector<32x128xf32>, vector<8x128xf32> -> vector<8x128xf32>
    %32 = arith.addf %30, %31 : vector<8x128xf32>
    %33 = arith.negf %32 : vector<8x128xf32>
    %34 = math.exp %33 : vector<8x128xf32>
    %cst_21 = arith.constant 1.000000e+00 : f32
    %35 = vector.broadcast %cst_21 : f32 to vector<8x128xf32>
    %36 = arith.addf %35, %34 : vector<8x128xf32>
    %37 = arith.divf %35, %36 : vector<8x128xf32>
    %38 = vector.extract_strided_slice %37 {offsets = [0, 0], sizes = [8, 32], strides = [1, 1]} : vector<8x128xf32> to vector<8x32xf32>
    %39 = vector.extract_strided_slice %37 {offsets = [0, 32], sizes = [8, 32], strides = [1, 1]} : vector<8x128xf32> to vector<8x32xf32>
    %40 = vector.extract_strided_slice %37 {offsets = [0, 64], sizes = [8, 32], strides = [1, 1]} : vector<8x128xf32> to vector<8x32xf32>
    %cst_22 = arith.constant 2.000000e+00 : f32
    %41 = vector.broadcast %cst_22 : f32 to vector<8x32xf32>
    %42 = arith.mulf %41, %40 : vector<8x32xf32>
    %cst_23 = arith.constant 1.000000e+00 : f32
    %43 = vector.broadcast %cst_23 : f32 to vector<8x32xf32>
    %44 = arith.subf %42, %43 : vector<8x32xf32>
    %45 = vector.extract_strided_slice %37 {offsets = [0, 96], sizes = [8, 32], strides = [1, 1]} : vector<8x128xf32> to vector<8x32xf32>
    %46 = arith.mulf %39, %29 : vector<8x32xf32>
    %47 = arith.mulf %38, %44 : vector<8x32xf32>
    %48 = arith.addf %46, %47 : vector<8x32xf32>
    %49 = math.tanh %48 : vector<8x32xf32>
    %50 = arith.mulf %45, %49 : vector<8x32xf32>
    %c1_i32 = arith.constant 1 : i32
    %c8_i32 = arith.constant 8 : i32
    %51 = arith.muli %c1_i32, %c8_i32 : i32
    %52 = tpu.assume_multiple %51, 8 : i32
    %53 = arith.index_cast %52 : i32 to index
    %c0_24 = arith.constant 0 : index
    %54 = vector.load %arg13[%53, %c0_24] : memref<64x128xf32, #tpu.memory_space<vmem>>, vector<8x128xf32>
    %cst_25 = arith.constant dense<0.000000e+00> : vector<8x128xf32>
    %55 = tpu.matmul %50, %11, %cst_25 {dimension_numbers = #tpu.dot_dimension_numbers<[1], [0], [0], [1], [0, 0, 1, 1], [], []>} : vector<8x32xf32>, vector<32x128xf32>, vector<8x128xf32> -> vector<8x128xf32>
    %56 = arith.addf %54, %55 : vector<8x128xf32>
    %57 = arith.negf %56 : vector<8x128xf32>
    %58 = math.exp %57 : vector<8x128xf32>
    %cst_26 = arith.constant 1.000000e+00 : f32
    %59 = vector.broadcast %cst_26 : f32 to vector<8x128xf32>
    %60 = arith.addf %59, %58 : vector<8x128xf32>
    %61 = arith.divf %59, %60 : vector<8x128xf32>
    %62 = vector.extract_strided_slice %61 {offsets = [0, 0], sizes = [8, 32], strides = [1, 1]} : vector<8x128xf32> to vector<8x32xf32>
    %63 = vector.extract_strided_slice %61 {offsets = [0, 32], sizes = [8, 32], strides = [1, 1]} : vector<8x128xf32> to vector<8x32xf32>
    %64 = vector.extract_strided_slice %61 {offsets = [0, 64], sizes = [8, 32], strides = [1, 1]} : vector<8x128xf32> to vector<8x32xf32>
    %cst_27 = arith.constant 2.000000e+00 : f32
    %65 = vector.broadcast %cst_27 : f32 to vector<8x32xf32>
    %66 = arith.mulf %65, %64 : vector<8x32xf32>
    %cst_28 = arith.constant 1.000000e+00 : f32
    %67 = vector.broadcast %cst_28 : f32 to vector<8x32xf32>
    %68 = arith.subf %66, %67 : vector<8x32xf32>
    %69 = vector.extract_strided_slice %61 {offsets = [0, 96], sizes = [8, 32], strides = [1, 1]} : vector<8x128xf32> to vector<8x32xf32>
    %70 = arith.mulf %63, %48 : vector<8x32xf32>
    %71 = arith.mulf %62, %68 : vector<8x32xf32>
    %72 = arith.addf %70, %71 : vector<8x32xf32>
    %73 = math.tanh %72 : vector<8x32xf32>
    %74 = arith.mulf %69, %73 : vector<8x32xf32>
    %cst_29 = arith.constant dense<0.000000e+00> : vector<8x128xf32>
    %75 = tpu.matmul %50, %17, %cst_29 {dimension_numbers = #tpu.dot_dimension_numbers<[1], [0], [0], [1], [0, 0, 1, 1], [], []>} : vector<8x32xf32>, vector<32x128xf32>, vector<8x128xf32> -> vector<8x128xf32>
    %76 = vector.broadcast %19 : vector<1x128xf32> to vector<8x128xf32>
    %77 = arith.addf %75, %76 : vector<8x128xf32>
    %cst_30 = arith.constant dense<0.000000e+00> : vector<8x128xf32>
    %78 = tpu.matmul %29, %14, %cst_30 {dimension_numbers = #tpu.dot_dimension_numbers<[1], [0], [0], [1], [0, 0, 1, 1], [], []>} : vector<8x32xf32>, vector<32x128xf32>, vector<8x128xf32> -> vector<8x128xf32>
    %79 = arith.addf %77, %78 : vector<8x128xf32>
    %80 = arith.negf %79 : vector<8x128xf32>
    %81 = math.exp %80 : vector<8x128xf32>
    %cst_31 = arith.constant 1.000000e+00 : f32
    %82 = vector.broadcast %cst_31 : f32 to vector<8x128xf32>
    %83 = arith.addf %82, %81 : vector<8x128xf32>
    %84 = arith.divf %82, %83 : vector<8x128xf32>
    %85 = vector.extract_strided_slice %84 {offsets = [0, 0], sizes = [8, 32], strides = [1, 1]} : vector<8x128xf32> to vector<8x32xf32>
    %86 = vector.extract_strided_slice %84 {offsets = [0, 32], sizes = [8, 32], strides = [1, 1]} : vector<8x128xf32> to vector<8x32xf32>
    %87 = vector.extract_strided_slice %84 {offsets = [0, 64], sizes = [8, 32], strides = [1, 1]} : vector<8x128xf32> to vector<8x32xf32>
    %cst_32 = arith.constant 2.000000e+00 : f32
    %88 = vector.broadcast %cst_32 : f32 to vector<8x32xf32>
    %89 = arith.mulf %88, %87 : vector<8x32xf32>
    %cst_33 = arith.constant 1.000000e+00 : f32
    %90 = vector.broadcast %cst_33 : f32 to vector<8x32xf32>
    %91 = arith.subf %89, %90 : vector<8x32xf32>
    %92 = vector.extract_strided_slice %84 {offsets = [0, 96], sizes = [8, 32], strides = [1, 1]} : vector<8x128xf32> to vector<8x32xf32>
    %93 = arith.mulf %86, %29 : vector<8x32xf32>
    %94 = arith.mulf %85, %91 : vector<8x32xf32>
    %95 = arith.addf %93, %94 : vector<8x32xf32>
    %96 = math.tanh %95 : vector<8x32xf32>
    %97 = arith.mulf %92, %96 : vector<8x32xf32>
    %c2_i32 = arith.constant 2 : i32
    %c8_i32_34 = arith.constant 8 : i32
    %98 = arith.muli %c2_i32, %c8_i32_34 : i32
    %99 = tpu.assume_multiple %98, 8 : i32
    %100 = arith.index_cast %99 : i32 to index
    %c0_35 = arith.constant 0 : index
    %101 = vector.load %arg13[%100, %c0_35] : memref<64x128xf32, #tpu.memory_space<vmem>>, vector<8x128xf32>
    %cst_36 = arith.constant dense<0.000000e+00> : vector<8x128xf32>
    %102 = tpu.matmul %74, %11, %cst_36 {dimension_numbers = #tpu.dot_dimension_numbers<[1], [0], [0], [1], [0, 0, 1, 1], [], []>} : vector<8x32xf32>, vector<32x128xf32>, vector<8x128xf32> -> vector<8x128xf32>
    %103 = arith.addf %101, %102 : vector<8x128xf32>
    %104 = arith.negf %103 : vector<8x128xf32>
    %105 = math.exp %104 : vector<8x128xf32>
    %cst_37 = arith.constant 1.000000e+00 : f32
    %106 = vector.broadcast %cst_37 : f32 to vector<8x128xf32>
    %107 = arith.addf %106, %105 : vector<8x128xf32>
    %108 = arith.divf %106, %107 : vector<8x128xf32>
    %109 = vector.extract_strided_slice %108 {offsets = [0, 0], sizes = [8, 32], strides = [1, 1]} : vector<8x128xf32> to vector<8x32xf32>
    %110 = vector.extract_strided_slice %108 {offsets = [0, 32], sizes = [8, 32], strides = [1, 1]} : vector<8x128xf32> to vector<8x32xf32>
    %111 = vector.extract_strided_slice %108 {offsets = [0, 64], sizes = [8, 32], strides = [1, 1]} : vector<8x128xf32> to vector<8x32xf32>
    %cst_38 = arith.constant 2.000000e+00 : f32
    %112 = vector.broadcast %cst_38 : f32 to vector<8x32xf32>
    %113 = arith.mulf %112, %111 : vector<8x32xf32>
    %cst_39 = arith.constant 1.000000e+00 : f32
    %114 = vector.broadcast %cst_39 : f32 to vector<8x32xf32>
    %115 = arith.subf %113, %114 : vector<8x32xf32>
    %116 = vector.extract_strided_slice %108 {offsets = [0, 96], sizes = [8, 32], strides = [1, 1]} : vector<8x128xf32> to vector<8x32xf32>
    %117 = arith.mulf %110, %72 : vector<8x32xf32>
    %118 = arith.mulf %109, %115 : vector<8x32xf32>
    %119 = arith.addf %117, %118 : vector<8x32xf32>
    %120 = math.tanh %119 : vector<8x32xf32>
    %121 = arith.mulf %116, %120 : vector<8x32xf32>
    %cst_40 = arith.constant dense<0.000000e+00> : vector<8x128xf32>
    %122 = tpu.matmul %74, %17, %cst_40 {dimension_numbers = #tpu.dot_dimension_numbers<[1], [0], [0], [1], [0, 0, 1, 1], [], []>} : vector<8x32xf32>, vector<32x128xf32>, vector<8x128xf32> -> vector<8x128xf32>
    %123 = vector.broadcast %19 : vector<1x128xf32> to vector<8x128xf32>
    %124 = arith.addf %122, %123 : vector<8x128xf32>
    %cst_41 = arith.constant dense<0.000000e+00> : vector<8x128xf32>
    %125 = tpu.matmul %97, %14, %cst_41 {dimension_numbers = #tpu.dot_dimension_numbers<[1], [0], [0], [1], [0, 0, 1, 1], [], []>} : vector<8x32xf32>, vector<32x128xf32>, vector<8x128xf32> -> vector<8x128xf32>
    %126 = arith.addf %124, %125 : vector<8x128xf32>
    %127 = arith.negf %126 : vector<8x128xf32>
    %128 = math.exp %127 : vector<8x128xf32>
    %cst_42 = arith.constant 1.000000e+00 : f32
    %129 = vector.broadcast %cst_42 : f32 to vector<8x128xf32>
    %130 = arith.addf %129, %128 : vector<8x128xf32>
    %131 = arith.divf %129, %130 : vector<8x128xf32>
    %132 = vector.extract_strided_slice %131 {offsets = [0, 0], sizes = [8, 32], strides = [1, 1]} : vector<8x128xf32> to vector<8x32xf32>
    %133 = vector.extract_strided_slice %131 {offsets = [0, 32], sizes = [8, 32], strides = [1, 1]} : vector<8x128xf32> to vector<8x32xf32>
    %134 = vector.extract_strided_slice %131 {offsets = [0, 64], sizes = [8, 32], strides = [1, 1]} : vector<8x128xf32> to vector<8x32xf32>
    %cst_43 = arith.constant 2.000000e+00 : f32
    %135 = vector.broadcast %cst_43 : f32 to vector<8x32xf32>
    %136 = arith.mulf %135, %134 : vector<8x32xf32>
    %cst_44 = arith.constant 1.000000e+00 : f32
    %137 = vector.broadcast %cst_44 : f32 to vector<8x32xf32>
    %138 = arith.subf %136, %137 : vector<8x32xf32>
    %139 = vector.extract_strided_slice %131 {offsets = [0, 96], sizes = [8, 32], strides = [1, 1]} : vector<8x128xf32> to vector<8x32xf32>
    %140 = arith.mulf %133, %95 : vector<8x32xf32>
    %141 = arith.mulf %132, %138 : vector<8x32xf32>
    %142 = arith.addf %140, %141 : vector<8x32xf32>
    %143 = math.tanh %142 : vector<8x32xf32>
    %144 = arith.mulf %139, %143 : vector<8x32xf32>
    %c3_i32 = arith.constant 3 : i32
    %c8_i32_45 = arith.constant 8 : i32
    %145 = arith.muli %c3_i32, %c8_i32_45 : i32
    %146 = tpu.assume_multiple %145, 8 : i32
    %147 = arith.index_cast %146 : i32 to index
    %c0_46 = arith.constant 0 : index
    %148 = vector.load %arg13[%147, %c0_46] : memref<64x128xf32, #tpu.memory_space<vmem>>, vector<8x128xf32>
    %cst_47 = arith.constant dense<0.000000e+00> : vector<8x128xf32>
    %149 = tpu.matmul %121, %11, %cst_47 {dimension_numbers = #tpu.dot_dimension_numbers<[1], [0], [0], [1], [0, 0, 1, 1], [], []>} : vector<8x32xf32>, vector<32x128xf32>, vector<8x128xf32> -> vector<8x128xf32>
    %150 = arith.addf %148, %149 : vector<8x128xf32>
    %151 = arith.negf %150 : vector<8x128xf32>
    %152 = math.exp %151 : vector<8x128xf32>
    %cst_48 = arith.constant 1.000000e+00 : f32
    %153 = vector.broadcast %cst_48 : f32 to vector<8x128xf32>
    %154 = arith.addf %153, %152 : vector<8x128xf32>
    %155 = arith.divf %153, %154 : vector<8x128xf32>
    %156 = vector.extract_strided_slice %155 {offsets = [0, 0], sizes = [8, 32], strides = [1, 1]} : vector<8x128xf32> to vector<8x32xf32>
    %157 = vector.extract_strided_slice %155 {offsets = [0, 32], sizes = [8, 32], strides = [1, 1]} : vector<8x128xf32> to vector<8x32xf32>
    %158 = vector.extract_strided_slice %155 {offsets = [0, 64], sizes = [8, 32], strides = [1, 1]} : vector<8x128xf32> to vector<8x32xf32>
    %cst_49 = arith.constant 2.000000e+00 : f32
    %159 = vector.broadcast %cst_49 : f32 to vector<8x32xf32>
    %160 = arith.mulf %159, %158 : vector<8x32xf32>
    %cst_50 = arith.constant 1.000000e+00 : f32
    %161 = vector.broadcast %cst_50 : f32 to vector<8x32xf32>
    %162 = arith.subf %160, %161 : vector<8x32xf32>
    %163 = vector.extract_strided_slice %155 {offsets = [0, 96], sizes = [8, 32], strides = [1, 1]} : vector<8x128xf32> to vector<8x32xf32>
    %164 = arith.mulf %157, %119 : vector<8x32xf32>
    %165 = arith.mulf %156, %162 : vector<8x32xf32>
    %166 = arith.addf %164, %165 : vector<8x32xf32>
    %167 = math.tanh %166 : vector<8x32xf32>
    %168 = arith.mulf %163, %167 : vector<8x32xf32>
    %cst_51 = arith.constant dense<0.000000e+00> : vector<8x128xf32>
    %169 = tpu.matmul %121, %17, %cst_51 {dimension_numbers = #tpu.dot_dimension_numbers<[1], [0], [0], [1], [0, 0, 1, 1], [], []>} : vector<8x32xf32>, vector<32x128xf32>, vector<8x128xf32> -> vector<8x128xf32>
    %170 = vector.broadcast %19 : vector<1x128xf32> to vector<8x128xf32>
    %171 = arith.addf %169, %170 : vector<8x128xf32>
    %cst_52 = arith.constant dense<0.000000e+00> : vector<8x128xf32>
    %172 = tpu.matmul %144, %14, %cst_52 {dimension_numbers = #tpu.dot_dimension_numbers<[1], [0], [0], [1], [0, 0, 1, 1], [], []>} : vector<8x32xf32>, vector<32x128xf32>, vector<8x128xf32> -> vector<8x128xf32>
    %173 = arith.addf %171, %172 : vector<8x128xf32>
    %174 = arith.negf %173 : vector<8x128xf32>
    %175 = math.exp %174 : vector<8x128xf32>
    %cst_53 = arith.constant 1.000000e+00 : f32
    %176 = vector.broadcast %cst_53 : f32 to vector<8x128xf32>
    %177 = arith.addf %176, %175 : vector<8x128xf32>
    %178 = arith.divf %176, %177 : vector<8x128xf32>
    %179 = vector.extract_strided_slice %178 {offsets = [0, 0], sizes = [8, 32], strides = [1, 1]} : vector<8x128xf32> to vector<8x32xf32>
    %180 = vector.extract_strided_slice %178 {offsets = [0, 32], sizes = [8, 32], strides = [1, 1]} : vector<8x128xf32> to vector<8x32xf32>
    %181 = vector.extract_strided_slice %178 {offsets = [0, 64], sizes = [8, 32], strides = [1, 1]} : vector<8x128xf32> to vector<8x32xf32>
    %cst_54 = arith.constant 2.000000e+00 : f32
    %182 = vector.broadcast %cst_54 : f32 to vector<8x32xf32>
    %183 = arith.mulf %182, %181 : vector<8x32xf32>
    %cst_55 = arith.constant 1.000000e+00 : f32
    %184 = vector.broadcast %cst_55 : f32 to vector<8x32xf32>
    %185 = arith.subf %183, %184 : vector<8x32xf32>
    %186 = vector.extract_strided_slice %178 {offsets = [0, 96], sizes = [8, 32], strides = [1, 1]} : vector<8x128xf32> to vector<8x32xf32>
    %187 = arith.mulf %180, %142 : vector<8x32xf32>
    %188 = arith.mulf %179, %185 : vector<8x32xf32>
    %189 = arith.addf %187, %188 : vector<8x32xf32>
    %190 = math.tanh %189 : vector<8x32xf32>
    %191 = arith.mulf %186, %190 : vector<8x32xf32>
    %c4_i32 = arith.constant 4 : i32
    %c8_i32_56 = arith.constant 8 : i32
    %192 = arith.muli %c4_i32, %c8_i32_56 : i32
    %193 = tpu.assume_multiple %192, 8 : i32
    %194 = arith.index_cast %193 : i32 to index
    %c0_57 = arith.constant 0 : index
    %195 = vector.load %arg13[%194, %c0_57] : memref<64x128xf32, #tpu.memory_space<vmem>>, vector<8x128xf32>
    %cst_58 = arith.constant dense<0.000000e+00> : vector<8x128xf32>
    %196 = tpu.matmul %168, %11, %cst_58 {dimension_numbers = #tpu.dot_dimension_numbers<[1], [0], [0], [1], [0, 0, 1, 1], [], []>} : vector<8x32xf32>, vector<32x128xf32>, vector<8x128xf32> -> vector<8x128xf32>
    %197 = arith.addf %195, %196 : vector<8x128xf32>
    %198 = arith.negf %197 : vector<8x128xf32>
    %199 = math.exp %198 : vector<8x128xf32>
    %cst_59 = arith.constant 1.000000e+00 : f32
    %200 = vector.broadcast %cst_59 : f32 to vector<8x128xf32>
    %201 = arith.addf %200, %199 : vector<8x128xf32>
    %202 = arith.divf %200, %201 : vector<8x128xf32>
    %203 = vector.extract_strided_slice %202 {offsets = [0, 0], sizes = [8, 32], strides = [1, 1]} : vector<8x128xf32> to vector<8x32xf32>
    %204 = vector.extract_strided_slice %202 {offsets = [0, 32], sizes = [8, 32], strides = [1, 1]} : vector<8x128xf32> to vector<8x32xf32>
    %205 = vector.extract_strided_slice %202 {offsets = [0, 64], sizes = [8, 32], strides = [1, 1]} : vector<8x128xf32> to vector<8x32xf32>
    %cst_60 = arith.constant 2.000000e+00 : f32
    %206 = vector.broadcast %cst_60 : f32 to vector<8x32xf32>
    %207 = arith.mulf %206, %205 : vector<8x32xf32>
    %cst_61 = arith.constant 1.000000e+00 : f32
    %208 = vector.broadcast %cst_61 : f32 to vector<8x32xf32>
    %209 = arith.subf %207, %208 : vector<8x32xf32>
    %210 = vector.extract_strided_slice %202 {offsets = [0, 96], sizes = [8, 32], strides = [1, 1]} : vector<8x128xf32> to vector<8x32xf32>
    %211 = arith.mulf %204, %166 : vector<8x32xf32>
    %212 = arith.mulf %203, %209 : vector<8x32xf32>
    %213 = arith.addf %211, %212 : vector<8x32xf32>
    %214 = math.tanh %213 : vector<8x32xf32>
    %215 = arith.mulf %210, %214 : vector<8x32xf32>
    %cst_62 = arith.constant dense<0.000000e+00> : vector<8x128xf32>
    %216 = tpu.matmul %168, %17, %cst_62 {dimension_numbers = #tpu.dot_dimension_numbers<[1], [0], [0], [1], [0, 0, 1, 1], [], []>} : vector<8x32xf32>, vector<32x128xf32>, vector<8x128xf32> -> vector<8x128xf32>
    %217 = vector.broadcast %19 : vector<1x128xf32> to vector<8x128xf32>
    %218 = arith.addf %216, %217 : vector<8x128xf32>
    %cst_63 = arith.constant dense<0.000000e+00> : vector<8x128xf32>
    %219 = tpu.matmul %191, %14, %cst_63 {dimension_numbers = #tpu.dot_dimension_numbers<[1], [0], [0], [1], [0, 0, 1, 1], [], []>} : vector<8x32xf32>, vector<32x128xf32>, vector<8x128xf32> -> vector<8x128xf32>
    %220 = arith.addf %218, %219 : vector<8x128xf32>
    %221 = arith.negf %220 : vector<8x128xf32>
    %222 = math.exp %221 : vector<8x128xf32>
    %cst_64 = arith.constant 1.000000e+00 : f32
    %223 = vector.broadcast %cst_64 : f32 to vector<8x128xf32>
    %224 = arith.addf %223, %222 : vector<8x128xf32>
    %225 = arith.divf %223, %224 : vector<8x128xf32>
    %226 = vector.extract_strided_slice %225 {offsets = [0, 0], sizes = [8, 32], strides = [1, 1]} : vector<8x128xf32> to vector<8x32xf32>
    %227 = vector.extract_strided_slice %225 {offsets = [0, 32], sizes = [8, 32], strides = [1, 1]} : vector<8x128xf32> to vector<8x32xf32>
    %228 = vector.extract_strided_slice %225 {offsets = [0, 64], sizes = [8, 32], strides = [1, 1]} : vector<8x128xf32> to vector<8x32xf32>
    %cst_65 = arith.constant 2.000000e+00 : f32
    %229 = vector.broadcast %cst_65 : f32 to vector<8x32xf32>
    %230 = arith.mulf %229, %228 : vector<8x32xf32>
    %cst_66 = arith.constant 1.000000e+00 : f32
    %231 = vector.broadcast %cst_66 : f32 to vector<8x32xf32>
    %232 = arith.subf %230, %231 : vector<8x32xf32>
    %233 = vector.extract_strided_slice %225 {offsets = [0, 96], sizes = [8, 32], strides = [1, 1]} : vector<8x128xf32> to vector<8x32xf32>
    %234 = arith.mulf %227, %189 : vector<8x32xf32>
    %235 = arith.mulf %226, %232 : vector<8x32xf32>
    %236 = arith.addf %234, %235 : vector<8x32xf32>
    %237 = math.tanh %236 : vector<8x32xf32>
    %238 = arith.mulf %233, %237 : vector<8x32xf32>
    %c5_i32 = arith.constant 5 : i32
    %c8_i32_67 = arith.constant 8 : i32
    %239 = arith.muli %c5_i32, %c8_i32_67 : i32
    %240 = tpu.assume_multiple %239, 8 : i32
    %241 = arith.index_cast %240 : i32 to index
    %c0_68 = arith.constant 0 : index
    %242 = vector.load %arg13[%241, %c0_68] : memref<64x128xf32, #tpu.memory_space<vmem>>, vector<8x128xf32>
    %cst_69 = arith.constant dense<0.000000e+00> : vector<8x128xf32>
    %243 = tpu.matmul %215, %11, %cst_69 {dimension_numbers = #tpu.dot_dimension_numbers<[1], [0], [0], [1], [0, 0, 1, 1], [], []>} : vector<8x32xf32>, vector<32x128xf32>, vector<8x128xf32> -> vector<8x128xf32>
    %244 = arith.addf %242, %243 : vector<8x128xf32>
    %245 = arith.negf %244 : vector<8x128xf32>
    %246 = math.exp %245 : vector<8x128xf32>
    %cst_70 = arith.constant 1.000000e+00 : f32
    %247 = vector.broadcast %cst_70 : f32 to vector<8x128xf32>
    %248 = arith.addf %247, %246 : vector<8x128xf32>
    %249 = arith.divf %247, %248 : vector<8x128xf32>
    %250 = vector.extract_strided_slice %249 {offsets = [0, 0], sizes = [8, 32], strides = [1, 1]} : vector<8x128xf32> to vector<8x32xf32>
    %251 = vector.extract_strided_slice %249 {offsets = [0, 32], sizes = [8, 32], strides = [1, 1]} : vector<8x128xf32> to vector<8x32xf32>
    %252 = vector.extract_strided_slice %249 {offsets = [0, 64], sizes = [8, 32], strides = [1, 1]} : vector<8x128xf32> to vector<8x32xf32>
    %cst_71 = arith.constant 2.000000e+00 : f32
    %253 = vector.broadcast %cst_71 : f32 to vector<8x32xf32>
    %254 = arith.mulf %253, %252 : vector<8x32xf32>
    %cst_72 = arith.constant 1.000000e+00 : f32
    %255 = vector.broadcast %cst_72 : f32 to vector<8x32xf32>
    %256 = arith.subf %254, %255 : vector<8x32xf32>
    %257 = vector.extract_strided_slice %249 {offsets = [0, 96], sizes = [8, 32], strides = [1, 1]} : vector<8x128xf32> to vector<8x32xf32>
    %258 = arith.mulf %251, %213 : vector<8x32xf32>
    %259 = arith.mulf %250, %256 : vector<8x32xf32>
    %260 = arith.addf %258, %259 : vector<8x32xf32>
    %261 = math.tanh %260 : vector<8x32xf32>
    %262 = arith.mulf %257, %261 : vector<8x32xf32>
    %cst_73 = arith.constant dense<0.000000e+00> : vector<8x128xf32>
    %263 = tpu.matmul %215, %17, %cst_73 {dimension_numbers = #tpu.dot_dimension_numbers<[1], [0], [0], [1], [0, 0, 1, 1], [], []>} : vector<8x32xf32>, vector<32x128xf32>, vector<8x128xf32> -> vector<8x128xf32>
    %264 = vector.broadcast %19 : vector<1x128xf32> to vector<8x128xf32>
    %265 = arith.addf %263, %264 : vector<8x128xf32>
    %cst_74 = arith.constant dense<0.000000e+00> : vector<8x128xf32>
    %266 = tpu.matmul %238, %14, %cst_74 {dimension_numbers = #tpu.dot_dimension_numbers<[1], [0], [0], [1], [0, 0, 1, 1], [], []>} : vector<8x32xf32>, vector<32x128xf32>, vector<8x128xf32> -> vector<8x128xf32>
    %267 = arith.addf %265, %266 : vector<8x128xf32>
    %268 = arith.negf %267 : vector<8x128xf32>
    %269 = math.exp %268 : vector<8x128xf32>
    %cst_75 = arith.constant 1.000000e+00 : f32
    %270 = vector.broadcast %cst_75 : f32 to vector<8x128xf32>
    %271 = arith.addf %270, %269 : vector<8x128xf32>
    %272 = arith.divf %270, %271 : vector<8x128xf32>
    %273 = vector.extract_strided_slice %272 {offsets = [0, 0], sizes = [8, 32], strides = [1, 1]} : vector<8x128xf32> to vector<8x32xf32>
    %274 = vector.extract_strided_slice %272 {offsets = [0, 32], sizes = [8, 32], strides = [1, 1]} : vector<8x128xf32> to vector<8x32xf32>
    %275 = vector.extract_strided_slice %272 {offsets = [0, 64], sizes = [8, 32], strides = [1, 1]} : vector<8x128xf32> to vector<8x32xf32>
    %cst_76 = arith.constant 2.000000e+00 : f32
    %276 = vector.broadcast %cst_76 : f32 to vector<8x32xf32>
    %277 = arith.mulf %276, %275 : vector<8x32xf32>
    %cst_77 = arith.constant 1.000000e+00 : f32
    %278 = vector.broadcast %cst_77 : f32 to vector<8x32xf32>
    %279 = arith.subf %277, %278 : vector<8x32xf32>
    %280 = vector.extract_strided_slice %272 {offsets = [0, 96], sizes = [8, 32], strides = [1, 1]} : vector<8x128xf32> to vector<8x32xf32>
    %281 = arith.mulf %274, %236 : vector<8x32xf32>
    %282 = arith.mulf %273, %279 : vector<8x32xf32>
    %283 = arith.addf %281, %282 : vector<8x32xf32>
    %284 = math.tanh %283 : vector<8x32xf32>
    %285 = arith.mulf %280, %284 : vector<8x32xf32>
    %c6_i32 = arith.constant 6 : i32
    %c8_i32_78 = arith.constant 8 : i32
    %286 = arith.muli %c6_i32, %c8_i32_78 : i32
    %287 = tpu.assume_multiple %286, 8 : i32
    %288 = arith.index_cast %287 : i32 to index
    %c0_79 = arith.constant 0 : index
    %289 = vector.load %arg13[%288, %c0_79] : memref<64x128xf32, #tpu.memory_space<vmem>>, vector<8x128xf32>
    %cst_80 = arith.constant dense<0.000000e+00> : vector<8x128xf32>
    %290 = tpu.matmul %262, %11, %cst_80 {dimension_numbers = #tpu.dot_dimension_numbers<[1], [0], [0], [1], [0, 0, 1, 1], [], []>} : vector<8x32xf32>, vector<32x128xf32>, vector<8x128xf32> -> vector<8x128xf32>
    %291 = arith.addf %289, %290 : vector<8x128xf32>
    %292 = arith.negf %291 : vector<8x128xf32>
    %293 = math.exp %292 : vector<8x128xf32>
    %cst_81 = arith.constant 1.000000e+00 : f32
    %294 = vector.broadcast %cst_81 : f32 to vector<8x128xf32>
    %295 = arith.addf %294, %293 : vector<8x128xf32>
    %296 = arith.divf %294, %295 : vector<8x128xf32>
    %297 = vector.extract_strided_slice %296 {offsets = [0, 0], sizes = [8, 32], strides = [1, 1]} : vector<8x128xf32> to vector<8x32xf32>
    %298 = vector.extract_strided_slice %296 {offsets = [0, 32], sizes = [8, 32], strides = [1, 1]} : vector<8x128xf32> to vector<8x32xf32>
    %299 = vector.extract_strided_slice %296 {offsets = [0, 64], sizes = [8, 32], strides = [1, 1]} : vector<8x128xf32> to vector<8x32xf32>
    %cst_82 = arith.constant 2.000000e+00 : f32
    %300 = vector.broadcast %cst_82 : f32 to vector<8x32xf32>
    %301 = arith.mulf %300, %299 : vector<8x32xf32>
    %cst_83 = arith.constant 1.000000e+00 : f32
    %302 = vector.broadcast %cst_83 : f32 to vector<8x32xf32>
    %303 = arith.subf %301, %302 : vector<8x32xf32>
    %304 = vector.extract_strided_slice %296 {offsets = [0, 96], sizes = [8, 32], strides = [1, 1]} : vector<8x128xf32> to vector<8x32xf32>
    %305 = arith.mulf %298, %260 : vector<8x32xf32>
    %306 = arith.mulf %297, %303 : vector<8x32xf32>
    %307 = arith.addf %305, %306 : vector<8x32xf32>
    %308 = math.tanh %307 : vector<8x32xf32>
    %309 = arith.mulf %304, %308 : vector<8x32xf32>
    %cst_84 = arith.constant dense<0.000000e+00> : vector<8x128xf32>
    %310 = tpu.matmul %262, %17, %cst_84 {dimension_numbers = #tpu.dot_dimension_numbers<[1], [0], [0], [1], [0, 0, 1, 1], [], []>} : vector<8x32xf32>, vector<32x128xf32>, vector<8x128xf32> -> vector<8x128xf32>
    %311 = vector.broadcast %19 : vector<1x128xf32> to vector<8x128xf32>
    %312 = arith.addf %310, %311 : vector<8x128xf32>
    %cst_85 = arith.constant dense<0.000000e+00> : vector<8x128xf32>
    %313 = tpu.matmul %285, %14, %cst_85 {dimension_numbers = #tpu.dot_dimension_numbers<[1], [0], [0], [1], [0, 0, 1, 1], [], []>} : vector<8x32xf32>, vector<32x128xf32>, vector<8x128xf32> -> vector<8x128xf32>
    %314 = arith.addf %312, %313 : vector<8x128xf32>
    %315 = arith.negf %314 : vector<8x128xf32>
    %316 = math.exp %315 : vector<8x128xf32>
    %cst_86 = arith.constant 1.000000e+00 : f32
    %317 = vector.broadcast %cst_86 : f32 to vector<8x128xf32>
    %318 = arith.addf %317, %316 : vector<8x128xf32>
    %319 = arith.divf %317, %318 : vector<8x128xf32>
    %320 = vector.extract_strided_slice %319 {offsets = [0, 0], sizes = [8, 32], strides = [1, 1]} : vector<8x128xf32> to vector<8x32xf32>
    %321 = vector.extract_strided_slice %319 {offsets = [0, 32], sizes = [8, 32], strides = [1, 1]} : vector<8x128xf32> to vector<8x32xf32>
    %322 = vector.extract_strided_slice %319 {offsets = [0, 64], sizes = [8, 32], strides = [1, 1]} : vector<8x128xf32> to vector<8x32xf32>
    %cst_87 = arith.constant 2.000000e+00 : f32
    %323 = vector.broadcast %cst_87 : f32 to vector<8x32xf32>
    %324 = arith.mulf %323, %322 : vector<8x32xf32>
    %cst_88 = arith.constant 1.000000e+00 : f32
    %325 = vector.broadcast %cst_88 : f32 to vector<8x32xf32>
    %326 = arith.subf %324, %325 : vector<8x32xf32>
    %327 = vector.extract_strided_slice %319 {offsets = [0, 96], sizes = [8, 32], strides = [1, 1]} : vector<8x128xf32> to vector<8x32xf32>
    %328 = arith.mulf %321, %283 : vector<8x32xf32>
    %329 = arith.mulf %320, %326 : vector<8x32xf32>
    %330 = arith.addf %328, %329 : vector<8x32xf32>
    %331 = math.tanh %330 : vector<8x32xf32>
    %332 = arith.mulf %327, %331 : vector<8x32xf32>
    %c7_i32 = arith.constant 7 : i32
    %c8_i32_89 = arith.constant 8 : i32
    %333 = arith.muli %c7_i32, %c8_i32_89 : i32
    %334 = tpu.assume_multiple %333, 8 : i32
    %335 = arith.index_cast %334 : i32 to index
    %c0_90 = arith.constant 0 : index
    %336 = vector.load %arg13[%335, %c0_90] : memref<64x128xf32, #tpu.memory_space<vmem>>, vector<8x128xf32>
    %cst_91 = arith.constant dense<0.000000e+00> : vector<8x128xf32>
    %337 = tpu.matmul %309, %11, %cst_91 {dimension_numbers = #tpu.dot_dimension_numbers<[1], [0], [0], [1], [0, 0, 1, 1], [], []>} : vector<8x32xf32>, vector<32x128xf32>, vector<8x128xf32> -> vector<8x128xf32>
    %338 = arith.addf %336, %337 : vector<8x128xf32>
    %339 = arith.negf %338 : vector<8x128xf32>
    %340 = math.exp %339 : vector<8x128xf32>
    %cst_92 = arith.constant 1.000000e+00 : f32
    %341 = vector.broadcast %cst_92 : f32 to vector<8x128xf32>
    %342 = arith.addf %341, %340 : vector<8x128xf32>
    %343 = arith.divf %341, %342 : vector<8x128xf32>
    %344 = vector.extract_strided_slice %343 {offsets = [0, 0], sizes = [8, 32], strides = [1, 1]} : vector<8x128xf32> to vector<8x32xf32>
    %345 = vector.extract_strided_slice %343 {offsets = [0, 32], sizes = [8, 32], strides = [1, 1]} : vector<8x128xf32> to vector<8x32xf32>
    %346 = vector.extract_strided_slice %343 {offsets = [0, 64], sizes = [8, 32], strides = [1, 1]} : vector<8x128xf32> to vector<8x32xf32>
    %cst_93 = arith.constant 2.000000e+00 : f32
    %347 = vector.broadcast %cst_93 : f32 to vector<8x32xf32>
    %348 = arith.mulf %347, %346 : vector<8x32xf32>
    %cst_94 = arith.constant 1.000000e+00 : f32
    %349 = vector.broadcast %cst_94 : f32 to vector<8x32xf32>
    %350 = arith.subf %348, %349 : vector<8x32xf32>
    %351 = vector.extract_strided_slice %343 {offsets = [0, 96], sizes = [8, 32], strides = [1, 1]} : vector<8x128xf32> to vector<8x32xf32>
    %352 = arith.mulf %345, %307 : vector<8x32xf32>
    %353 = arith.mulf %344, %350 : vector<8x32xf32>
    %354 = arith.addf %352, %353 : vector<8x32xf32>
    %355 = math.tanh %354 : vector<8x32xf32>
    %356 = arith.mulf %351, %355 : vector<8x32xf32>
    %cst_95 = arith.constant dense<0.000000e+00> : vector<8x128xf32>
    %357 = tpu.matmul %309, %17, %cst_95 {dimension_numbers = #tpu.dot_dimension_numbers<[1], [0], [0], [1], [0, 0, 1, 1], [], []>} : vector<8x32xf32>, vector<32x128xf32>, vector<8x128xf32> -> vector<8x128xf32>
    %358 = vector.broadcast %19 : vector<1x128xf32> to vector<8x128xf32>
    %359 = arith.addf %357, %358 : vector<8x128xf32>
    %cst_96 = arith.constant dense<0.000000e+00> : vector<8x128xf32>
    %360 = tpu.matmul %332, %14, %cst_96 {dimension_numbers = #tpu.dot_dimension_numbers<[1], [0], [0], [1], [0, 0, 1, 1], [], []>} : vector<8x32xf32>, vector<32x128xf32>, vector<8x128xf32> -> vector<8x128xf32>
    %361 = arith.addf %359, %360 : vector<8x128xf32>
    %362 = arith.negf %361 : vector<8x128xf32>
    %363 = math.exp %362 : vector<8x128xf32>
    %cst_97 = arith.constant 1.000000e+00 : f32
    %364 = vector.broadcast %cst_97 : f32 to vector<8x128xf32>
    %365 = arith.addf %364, %363 : vector<8x128xf32>
    %366 = arith.divf %364, %365 : vector<8x128xf32>
    %367 = vector.extract_strided_slice %366 {offsets = [0, 0], sizes = [8, 32], strides = [1, 1]} : vector<8x128xf32> to vector<8x32xf32>
    %368 = vector.extract_strided_slice %366 {offsets = [0, 32], sizes = [8, 32], strides = [1, 1]} : vector<8x128xf32> to vector<8x32xf32>
    %369 = vector.extract_strided_slice %366 {offsets = [0, 64], sizes = [8, 32], strides = [1, 1]} : vector<8x128xf32> to vector<8x32xf32>
    %cst_98 = arith.constant 2.000000e+00 : f32
    %370 = vector.broadcast %cst_98 : f32 to vector<8x32xf32>
    %371 = arith.mulf %370, %369 : vector<8x32xf32>
    %cst_99 = arith.constant 1.000000e+00 : f32
    %372 = vector.broadcast %cst_99 : f32 to vector<8x32xf32>
    %373 = arith.subf %371, %372 : vector<8x32xf32>
    %374 = vector.extract_strided_slice %366 {offsets = [0, 96], sizes = [8, 32], strides = [1, 1]} : vector<8x128xf32> to vector<8x32xf32>
    %375 = arith.mulf %368, %330 : vector<8x32xf32>
    %376 = arith.mulf %367, %373 : vector<8x32xf32>
    %377 = arith.addf %375, %376 : vector<8x32xf32>
    %378 = math.tanh %377 : vector<8x32xf32>
    %379 = arith.mulf %374, %378 : vector<8x32xf32>
    %c7_i32_100 = arith.constant 7 : i32
    %cst_101 = arith.constant dense<0.000000e+00> : vector<8x128xf32>
    %380 = tpu.matmul %356, %17, %cst_101 {dimension_numbers = #tpu.dot_dimension_numbers<[1], [0], [0], [1], [0, 0, 1, 1], [], []>} : vector<8x32xf32>, vector<32x128xf32>, vector<8x128xf32> -> vector<8x128xf32>
    %381 = vector.broadcast %19 : vector<1x128xf32> to vector<8x128xf32>
    %382 = arith.addf %380, %381 : vector<8x128xf32>
    %cst_102 = arith.constant dense<0.000000e+00> : vector<8x128xf32>
    %383 = tpu.matmul %379, %14, %cst_102 {dimension_numbers = #tpu.dot_dimension_numbers<[1], [0], [0], [1], [0, 0, 1, 1], [], []>} : vector<8x32xf32>, vector<32x128xf32>, vector<8x128xf32> -> vector<8x128xf32>
    %384 = arith.addf %382, %383 : vector<8x128xf32>
    %385 = arith.negf %384 : vector<8x128xf32>
    %386 = math.exp %385 : vector<8x128xf32>
    %cst_103 = arith.constant 1.000000e+00 : f32
    %387 = vector.broadcast %cst_103 : f32 to vector<8x128xf32>
    %388 = arith.addf %387, %386 : vector<8x128xf32>
    %389 = arith.divf %387, %388 : vector<8x128xf32>
    %390 = vector.extract_strided_slice %389 {offsets = [0, 0], sizes = [8, 32], strides = [1, 1]} : vector<8x128xf32> to vector<8x32xf32>
    %391 = vector.extract_strided_slice %389 {offsets = [0, 32], sizes = [8, 32], strides = [1, 1]} : vector<8x128xf32> to vector<8x32xf32>
    %392 = vector.extract_strided_slice %389 {offsets = [0, 64], sizes = [8, 32], strides = [1, 1]} : vector<8x128xf32> to vector<8x32xf32>
    %cst_104 = arith.constant 2.000000e+00 : f32
    %393 = vector.broadcast %cst_104 : f32 to vector<8x32xf32>
    %394 = arith.mulf %393, %392 : vector<8x32xf32>
    %cst_105 = arith.constant 1.000000e+00 : f32
    %395 = vector.broadcast %cst_105 : f32 to vector<8x32xf32>
    %396 = arith.subf %394, %395 : vector<8x32xf32>
    %397 = vector.extract_strided_slice %389 {offsets = [0, 96], sizes = [8, 32], strides = [1, 1]} : vector<8x128xf32> to vector<8x32xf32>
    %398 = arith.mulf %391, %377 : vector<8x32xf32>
    %399 = arith.mulf %390, %396 : vector<8x32xf32>
    %400 = arith.addf %398, %399 : vector<8x32xf32>
    %401 = math.tanh %400 : vector<8x32xf32>
    %402 = arith.mulf %397, %401 : vector<8x32xf32>
    %c0_106 = arith.constant 0 : index
    %c0_107 = arith.constant 0 : index
    %403 = vector.load %arg8[%c0_106, %c0_107] : memref<32x16xf32, #tpu.memory_space<vmem>>, vector<32x16xf32>
    %cst_108 = arith.constant dense<0.000000e+00> : vector<8x16xf32>
    %404 = tpu.matmul %402, %403, %cst_108 {dimension_numbers = #tpu.dot_dimension_numbers<[1], [0], [0], [1], [0, 0, 1, 1], [], []>} : vector<8x32xf32>, vector<32x16xf32>, vector<8x16xf32> -> vector<8x16xf32>
    %c0_109 = arith.constant 0 : index
    %c0_110 = arith.constant 0 : index
    %405 = vector.load %arg9[%c0_109, %c0_110] : memref<1x16xf32, #tpu.memory_space<vmem>>, vector<1x16xf32>
    %406 = vector.broadcast %405 : vector<1x16xf32> to vector<8x16xf32>
    %407 = arith.addf %404, %406 : vector<8x16xf32>
    %cst_111 = arith.constant 0.000000e+00 : f32
    %408 = vector.broadcast %cst_111 : f32 to vector<8x16xf32>
    %409 = arith.maximumf %407, %408 : vector<8x16xf32>
    %c0_112 = arith.constant 0 : index
    %c0_113 = arith.constant 0 : index
    %410 = vector.load %arg10[%c0_112, %c0_113] : memref<16x2xf32, #tpu.memory_space<vmem>>, vector<16x2xf32>
    %cst_114 = arith.constant dense<0.000000e+00> : vector<8x2xf32>
    %411 = tpu.matmul %409, %410, %cst_114 {dimension_numbers = #tpu.dot_dimension_numbers<[1], [0], [0], [1], [0, 0, 1, 1], [], []>} : vector<8x16xf32>, vector<16x2xf32>, vector<8x2xf32> -> vector<8x2xf32>
    %c0_115 = arith.constant 0 : index
    %c0_116 = arith.constant 0 : index
    %412 = vector.load %arg11[%c0_115, %c0_116] : memref<1x2xf32, #tpu.memory_space<vmem>>, vector<1x2xf32>
    %413 = vector.broadcast %412 : vector<1x2xf32> to vector<8x2xf32>
    %414 = arith.addf %411, %413 : vector<8x2xf32>
    %c0_117 = arith.constant 0 : index
    %c0_118 = arith.constant 0 : index
    %415 = vector.load %arg12[%c0_117, %c0_118] : memref<8x2xf32, #tpu.memory_space<vmem>>, vector<8x2xf32>
    tpu.vector_store %arg12[%c0_117, %c0_118], %414 {strides = array<i32>} : memref<8x2xf32, #tpu.memory_space<vmem>>, vector<8x2xf32>,
    return
  }
  func.func @transform_0(%arg0: i32) -> (i32, i32) {
    %c0_i32 = arith.constant 0 : i32
    %c0_i32_0 = arith.constant 0 : i32
    %c0_i32_1 = arith.constant 0 : i32
    return %c0_i32, %c0_i32_0 : i32, i32
  }
  func.func @transform_1(%arg0: i32) -> (i32, i32) {
    %c0_i32 = arith.constant 0 : i32
    %c0_i32_0 = arith.constant 0 : i32
    %c0_i32_1 = arith.constant 0 : i32
    return %c0_i32, %c0_i32_0 : i32, i32
  }
  func.func @transform_2(%arg0: i32) -> (i32, i32) {
    %c0_i32 = arith.constant 0 : i32
    %c0_i32_0 = arith.constant 0 : i32
    %c0_i32_1 = arith.constant 0 : i32
    return %c0_i32, %c0_i32_0 : i32, i32
  }
  func.func @transform_3(%arg0: i32) -> (i32, i32) {
    %c0_i32 = arith.constant 0 : i32
    %c0_i32_0 = arith.constant 0 : i32
    %c0_i32_1 = arith.constant 0 : i32
    return %c0_i32, %c0_i32_0 : i32, i32
  }
  func.func @transform_4(%arg0: i32) -> (i32, i32) {
    %c0_i32 = arith.constant 0 : i32
    %c0_i32_0 = arith.constant 0 : i32
    %c0_i32_1 = arith.constant 0 : i32
    return %c0_i32, %c0_i32_0 : i32, i32
  }
  func.func @transform_5(%arg0: i32) -> (i32, i32) {
    %c0_i32 = arith.constant 0 : i32
    %c0_i32_0 = arith.constant 0 : i32
    %c0_i32_1 = arith.constant 0 : i32
    return %c0_i32, %c0_i32_0 : i32, i32
  }
  func.func @transform_6(%arg0: i32) -> (i32, i32) {
    %c0_i32 = arith.constant 0 : i32
    %c0_i32_0 = arith.constant 0 : i32
    %c0_i32_1 = arith.constant 0 : i32
    return %c0_i32, %c0_i32_0 : i32, i32
  }
  func.func @transform_7(%arg0: i32) -> (i32, i32) {
    %c0_i32 = arith.constant 0 : i32
    %c0_i32_0 = arith.constant 0 : i32
    %c0_i32_1 = arith.constant 0 : i32
    return %c0_i32, %c0_i32_0 : i32, i32
  }
  func.func @transform_8(%arg0: i32) -> (i32, i32) {
    %c0_i32 = arith.constant 0 : i32
    %c0_i32_0 = arith.constant 0 : i32
    %c0_i32_1 = arith.constant 0 : i32
    return %c0_i32, %c0_i32_0 : i32, i32
  }
  func.func @transform_9(%arg0: i32) -> (i32, i32) {
    %c0_i32 = arith.constant 0 : i32
    %c0_i32_0 = arith.constant 0 : i32
    %c0_i32_1 = arith.constant 0 : i32
    return %c0_i32, %c0_i32_0 : i32, i32
  }
  func.func @transform_10(%arg0: i32) -> (i32, i32) {
    %c0_i32 = arith.constant 0 : i32
    %c0_i32_0 = arith.constant 0 : i32
    %c0_i32_1 = arith.constant 0 : i32
    return %c0_i32, %c0_i32_0 : i32, i32
  }
  func.func @transform_11(%arg0: i32) -> (i32, i32) {
    %c0_i32 = arith.constant 0 : i32
    %c0_i32_0 = arith.constant 0 : i32
    %c0_i32_1 = arith.constant 0 : i32
    return %c0_i32, %c0_i32_0 : i32, i32
  }
}

</mosaic_0001>

<llo_original>
// kernel: epilepsy_lstm_forward.2
$region0: #{epilepsy_lstm_forward.2}
  #allocation0 [shape = 'u32[]', space=smem, size = 0x4, offset = 0x4, fixed_abs, tag = 'smem constant byte address 0x4 - core index']
  #allocation1 [shape = 'u32[144,128]{1,0:T(1,128)}', space=vmem, size = 0x12000, scoped, tag = 'internal scratch']
  #allocation2 [shape = 'f32[64,128]{1,0:T(8,128)}', space=vmem, size = 0x8000, scoped, tag = 'scratch operand']
  %s0 = inlined_call_operand.vmem [shape: f32[16,128], index: 0, kind: input, shape index: {}]
  %s1 = inlined_call_operand.vmem [shape: f32[32,128], index: 1, kind: input, shape index: {}]
  %s2 = inlined_call_operand.vmem [shape: f32[1,128], index: 2, kind: input, shape index: {}]
  %s3 = inlined_call_operand.vmem [shape: f32[32,128], index: 3, kind: input, shape index: {}]
  %s4 = inlined_call_operand.vmem [shape: f32[32,128], index: 4, kind: input, shape index: {}]
  %s5 = inlined_call_operand.vmem [shape: f32[1,128], index: 5, kind: input, shape index: {}]
  %s6 = inlined_call_operand.vmem [shape: f32[32,16], index: 6, kind: input, shape index: {}]
  %s7 = inlined_call_operand.vmem [shape: f32[1,16], index: 7, kind: input, shape index: {}]
  %s8 = inlined_call_operand.vmem [shape: f32[16,2], index: 8, kind: input, shape index: {}]
  %s9 = inlined_call_operand.vmem [shape: f32[1,2], index: 9, kind: input, shape index: {}]
  %s10 = inlined_call_operand.vmem [shape: f32[8,8,16], index: 10, kind: input, shape index: {}]
  %s11 = inlined_call_operand.vmem [shape: f32[8,2], index: 11, kind: output, shape index: {}]
  %s12 = sld [smem:[#allocation0]]
  $region54: #{epilepsy_lstm_forward.2} parent=0
    _
  %s14 = ssub.s32 1, %s12
  %s15 = scalar_select 0, %s14, %s12
  $region1: #{epilepsy_lstm_forward.2} parent=0
    #allocation3 [shape = 'u8[32768]{0}', space=vmem, size = 0x8000, dematerialized = true, scoped, tag = 'FusionAdapter Buffer %fusion.1 = f32[64,16]{1,0:T(8,128)} fusion(%param_10.1), kind=kLoop, calls=%fused_computation.1.clone, metadata={op_name="jit(epilepsy_lstm_forward)/reshape" stack_frame_id=7}']
    // Predicated region
    $region2: #{epilepsy_lstm_forward.2} parent=1 // pred_check
      _
    $region3: #{epilepsy_lstm_forward.2} parent=1 // pred_check_branch
      %17 = sbr.rel (0) target = $region5
    $region4: #{epilepsy_lstm_forward.2} parent=1 // pred_region
      _
    $region5: #{epilepsy_lstm_forward.2} parent=1 // pred_fallthru
      _
    // Predicated region
    $region6: #{epilepsy_lstm_forward.2} parent=1 // pred_check
      _
    $region7: #{epilepsy_lstm_forward.2} parent=1 // pred_check_branch
      %19 = sbr.rel (0) target = $region9
    $region8: #{epilepsy_lstm_forward.2} parent=1 // pred_region
      _
    $region9: #{epilepsy_lstm_forward.2} parent=1 // pred_fallthru
      _
    // Predicated region
    $region10: #{epilepsy_lstm_forward.2} parent=1 // pred_check
      _
    $region11: #{epilepsy_lstm_forward.2} parent=1 // pred_check_branch
      %21 = sbr.rel (0) target = $region13
    $region12: #{epilepsy_lstm_forward.2} parent=1 // pred_region
      _
    $region13: #{epilepsy_lstm_forward.2} parent=1 // pred_fallthru
      _
    // Predicated region
    $region14: #{epilepsy_lstm_forward.2} parent=1 // pred_check
      _
    $region15: #{epilepsy_lstm_forward.2} parent=1 // pred_check_branch
      %23 = sbr.rel (0) target = $region17
    $region16: #{epilepsy_lstm_forward.2} parent=1 // pred_region
      _
    $region17: #{epilepsy_lstm_forward.2} parent=1 // pred_fallthru
      _
    // Predicated region
    $region18: #{epilepsy_lstm_forward.2} parent=1 // pred_check
      _
    $region19: #{epilepsy_lstm_forward.2} parent=1 // pred_check_branch
      %25 = sbr.rel (0) target = $region21
    $region20: #{epilepsy_lstm_forward.2} parent=1 // pred_region
      _
    $region21: #{epilepsy_lstm_forward.2} parent=1 // pred_fallthru
      _
    // Predicated region
    $region22: #{epilepsy_lstm_forward.2} parent=1 // pred_check
      _
    $region23: #{epilepsy_lstm_forward.2} parent=1 // pred_check_branch
      %27 = sbr.rel (0) target = $region25
    $region24: #{epilepsy_lstm_forward.2} parent=1 // pred_region
      _
    $region25: #{epilepsy_lstm_forward.2} parent=1 // pred_fallthru
      _
    // Predicated region
    $region26: #{epilepsy_lstm_forward.2} parent=1 // pred_check
      _
    $region27: #{epilepsy_lstm_forward.2} parent=1 // pred_check_branch
      %29 = sbr.rel (0) target = $region29
    $region28: #{epilepsy_lstm_forward.2} parent=1 // pred_region
      _
    $region29: #{epilepsy_lstm_forward.2} parent=1 // pred_fallthru
      _
    // Predicated region
    $region30: #{epilepsy_lstm_forward.2} parent=1 // pred_check
      _
    $region31: #{epilepsy_lstm_forward.2} parent=1 // pred_check_branch
      %31 = sbr.rel (0) target = $region33
    $region32: #{epilepsy_lstm_forward.2} parent=1 // pred_region
      _
    $region33: #{epilepsy_lstm_forward.2} parent=1 // pred_fallthru
      _
    // Predicated region
    $region34: #{epilepsy_lstm_forward.2} parent=1 // pred_check
      _
    $region35: #{epilepsy_lstm_forward.2} parent=1 // pred_check_branch
      %33 = sbr.rel (0) target = $region37
    $region36: #{epilepsy_lstm_forward.2} parent=1 // pred_region
      _
    $region37: #{epilepsy_lstm_forward.2} parent=1 // pred_fallthru
      _
    // Predicated region
    $region38: #{epilepsy_lstm_forward.2} parent=1 // pred_check
      _
    $region39: #{epilepsy_lstm_forward.2} parent=1 // pred_check_branch
      %35 = sbr.rel (0) target = $region41
    $region40: #{epilepsy_lstm_forward.2} parent=1 // pred_region
      _
    $region41: #{epilepsy_lstm_forward.2} parent=1 // pred_fallthru
      _
    // Predicated region
    $region42: #{epilepsy_lstm_forward.2} parent=1 // pred_check
      _
    $region43: #{epilepsy_lstm_forward.2} parent=1 // pred_check_branch
      %37 = sbr.rel (0) target = $region45
    $region44: #{epilepsy_lstm_forward.2} parent=1 // pred_region
      _
    $region45: #{epilepsy_lstm_forward.2} parent=1 // pred_fallthru
      _
    %v38 = vld [vmem:[%s10] sm:$0xff]
    %40 = vst [vmem:[#allocation3] sm:$0xff] %v38
    %s41 = scalar_lea.vmem %s10, 8
    %v42 = vld [vmem:[%s41] sm:$0xff]
    %s43 = scalar_lea.vmem [#allocation3], 8
    %45 = vst [vmem:[%s43] sm:$0xff] %v42
    %s46 = scalar_lea.vmem %s10, 16
    %v47 = vld [vmem:[%s46] sm:$0xff]
    %s48 = scalar_lea.vmem [#allocation3], 16
    %50 = vst [vmem:[%s48] sm:$0xff] %v47
    %s51 = scalar_lea.vmem %s10, 24
    %v52 = vld [vmem:[%s51] sm:$0xff]
    %s53 = scalar_lea.vmem [#allocation3], 24
    %55 = vst [vmem:[%s53] sm:$0xff] %v52
    %s56 = scalar_lea.vmem %s10, 32
    %v57 = vld [vmem:[%s56] sm:$0xff]
    %s58 = scalar_lea.vmem [#allocation3], 32
    %60 = vst [vmem:[%s58] sm:$0xff] %v57
    %s61 = scalar_lea.vmem %s10, 40
    %v62 = vld [vmem:[%s61] sm:$0xff]
    %s63 = scalar_lea.vmem [#allocation3], 40
    %65 = vst [vmem:[%s63] sm:$0xff] %v62
    %s66 = scalar_lea.vmem %s10, 48
    %v67 = vld [vmem:[%s66] sm:$0xff]
    %s68 = scalar_lea.vmem [#allocation3], 48
    %70 = vst [vmem:[%s68] sm:$0xff] %v67
    %s71 = scalar_lea.vmem %s10, 56
    %v72 = vld [vmem:[%s71] sm:$0xff]
    %s73 = scalar_lea.vmem [#allocation3], 56
    %75 = vst [vmem:[%s73] sm:$0xff] %v72
    %v76 = vlaneseq
    %v77 = vand.u32 %v76, 127
    %vm78 = vcmp.ge.s32.totalorder %v77, 64
    %vm79 = vcmp.lt.s32.totalorder %v77, 96
    %vm80 = vmand %vm78, %vm79
    %v81 = vsel %vm80, 2.0, 1.0
    %v82 = vld [vmem:[%s1] sm:$0xff]
    %v83 = vld [vmem:[%s1 + $0x8] sm:$0xff]
    %v84 = vld [vmem:[%s1 + $0x10] sm:$0xff]
    %v85 = vld [vmem:[%s1 + $0x18] sm:$0xff]
    %v86 = vmul.f32 %v82, %v81
    %v87 = vmul.f32 %v83, %v81
    %v88 = vmul.f32 %v84, %v81
    %v89 = vmul.f32 %v85, %v81
    %v90 = vld [vmem:[%s4] sm:$0xff]
    %v91 = vld [vmem:[%s4 + $0x8] sm:$0xff]
    %v92 = vld [vmem:[%s4 + $0x10] sm:$0xff]
    %v93 = vld [vmem:[%s4 + $0x18] sm:$0xff]
    %v94 = vmul.f32 %v90, %v81
    %v95 = vmul.f32 %v91, %v81
    %v96 = vmul.f32 %v92, %v81
    %v97 = vmul.f32 %v93, %v81
    %v98 = vld [vmem:[%s3] sm:$0xff]
    %v99 = vld [vmem:[%s3 + $0x8] sm:$0xff]
    %v100 = vld [vmem:[%s3 + $0x10] sm:$0xff]
    %v101 = vld [vmem:[%s3 + $0x18] sm:$0xff]
    %v102 = vmul.f32 %v98, %v81
    %v103 = vmul.f32 %v99, %v81
    %v104 = vmul.f32 %v100, %v81
    %v105 = vmul.f32 %v101, %v81
    %v106 = vld [vmem:[%s5] sm:$0x1]
    %v107 = vmul.f32 %v106, %v81
    %v108 = vld [vmem:[#allocation3] sm:$0xff]
    %v109 = vld [vmem:[#allocation3 + $0x8] sm:$0xff]
    %v110 = vld [vmem:[#allocation3 + $0x10] sm:$0xff]
    %v111 = vld [vmem:[#allocation3 + $0x18] sm:$0xff]
    %v112 = vld [vmem:[#allocation3 + $0x20] sm:$0xff]
    %v113 = vld [vmem:[#allocation3 + $0x28] sm:$0xff]
    %v114 = vld [vmem:[#allocation3 + $0x30] sm:$0xff]
    %v115 = vld [vmem:[#allocation3 + $0x38] sm:$0xff]
    %v116 = vld [vmem:[%s0] sm:$0xff]
    %v117 = vld [vmem:[%s0 + $0x8] sm:$0xff]
    %v118 = vld [vmem:[%s2] sm:$0x1]
    %v120 = vlaneseq
    %v121 = vshrl.u32 %v120, 7
    %v122 = vsub.s32 0, %v121
    %v123 = vrot.slane %v118, %v122
    %vm125 = vcmask 130048
    %v127 = vsel %vm125, %v108, 0
    %v130 = vsel %vm125, %v109, 0
    %v133 = vsel %vm125, %v110, 0
    %v136 = vsel %vm125, %v111, 0
    %v139 = vsel %vm125, %v112, 0
    %v142 = vsel %vm125, %v113, 0
    %v145 = vsel %vm125, %v114, 0
    %v148 = vsel %vm125, %v115, 0
    %150 = vmatprep.subr.mxu0 0.0
    %151 = vmatpush1.msra.mxu0 %v116
    %152 = vmatprep.subr.mxu0 0.0
    %153 = vmatpush1.msra.mxu0 %v117
    %154 = vmatprep.subr.mxu0 0.0
    %155 = vmatpush1.msra.mxu0 0.0
    %156 = vmatprep.subr.mxu0 0.0
    %157 = vmatpush1.msra.mxu0 0.0
    %158 = vmatprep.subr.mxu0 0.0
    %159 = vmatpush1.msra.mxu0 0.0
    %160 = vmatprep.subr.mxu0 0.0
    %161 = vmatpush1.msra.mxu0 0.0
    %162 = vmatprep.subr.mxu0 0.0
    %163 = vmatpush1.msra.mxu0 0.0
    %164 = vmatprep.subr.mxu0 0.0
    %165 = vmatpush1.msra.mxu0 0.0
    %166 = vmatprep.subr.mxu0 0.0
    %167 = vmatpush1.msra.mxu0 0.0
    %168 = vmatprep.subr.mxu0 0.0
    %169 = vmatpush1.msra.mxu0 0.0
    %170 = vmatprep.subr.mxu0 0.0
    %171 = vmatpush1.msra.mxu0 0.0
    %172 = vmatprep.subr.mxu0 0.0
    %173 = vmatpush1.msra.mxu0 0.0
    %174 = vmatprep.subr.mxu0 0.0
    %175 = vmatpush1.msra.mxu0 0.0
    %176 = vmatprep.subr.mxu0 0.0
    %177 = vmatpush1.msra.mxu0 0.0
    %178 = vmatprep.subr.mxu0 0.0
    %179 = vmatpush1.msra.mxu0 0.0
    %180 = vmatprep.subr.mxu0 0.0
    %181 = vmatpush1.msra.mxu0 0.0
    %182 = vmatprep.subr.mxu0 0.0
    %183 = vmatpush1.msra.mxu0 0.0
    %184 = vmatprep.subr.mxu0 0.0
    %185 = vmatpush1.msra.mxu0 0.0
    %186 = vmatprep.subr.mxu0 0.0
    %187 = vmatpush1.msra.mxu0 0.0
    %188 = vmatprep.subr.mxu0 0.0
    %189 = vmatpush1.msra.mxu0 0.0
    %190 = vmatprep.subr.mxu0 0.0
    %191 = vmatpush1.msra.mxu0 0.0
    %192 = vmatprep.subr.mxu0 0.0
    %193 = vmatpush1.msra.mxu0 0.0
    %194 = vmatprep.subr.mxu0 0.0
    %195 = vmatpush1.msra.mxu0 0.0
    %196 = vmatprep.subr.mxu0 0.0
    %197 = vmatpush1.msra.mxu0 0.0
    %198 = vmatprep.subr.mxu0 0.0
    %199 = vmatpush1.msra.mxu0 0.0
    %200 = vmatprep.subr.mxu0 0.0
    %201 = vmatpush1.msra.mxu0 0.0
    %202 = vmatprep.subr.mxu0 0.0
    %203 = vmatpush1.msra.mxu0 0.0
    %204 = vmatprep.subr.mxu0 0.0
    %205 = vmatpush1.msra.mxu0 0.0
    %206 = vmatprep.subr.mxu0 0.0
    %207 = vmatpush1.msra.mxu0 0.0
    %208 = vmatprep.subr.mxu0 0.0
    %209 = vmatpush1.msra.mxu0 0.0
    %210 = vmatprep.subr.mxu0 0.0
    %211 = vmatpush1.msra.mxu0 0.0
    %212 = vmatprep.subr.mxu0 0.0
    %213 = vmatpush1.msra.mxu0 0.0
    %214 = vmatprep.mubr.f32.mxu0 0.0
    %215 = vmatmul.mubr.f32.gmra.mrb[0].mxu0 %v127
    %v216 = vpop.f32.mrb[0].mxu0
    %v217 = vadd.f32 %v123, %v216
    %v218 = vpop.f32.mrb[0].mxu0
    %219 = vmatprep.mubr.f32.mxu0 0.0
    %220 = vmatmul.mubr.f32.gmra.mrb[0].mxu0 %v130
    %v221 = vpop.f32.mrb[0].mxu0
    %v222 = vadd.f32 %v123, %v221
    %v223 = vpop.f32.mrb[0].mxu0
    %224 = vmatprep.mubr.f32.mxu0 0.0
    %225 = vmatmul.mubr.f32.gmra.mrb[0].mxu0 %v133
    %v226 = vpop.f32.mrb[0].mxu0
    %v227 = vadd.f32 %v123, %v226
    %v228 = vpop.f32.mrb[0].mxu0
    %229 = vmatprep.mubr.f32.mxu0 0.0
    %230 = vmatmul.mubr.f32.gmra.mrb[0].mxu0 %v136
    %v231 = vpop.f32.mrb[0].mxu0
    %v232 = vadd.f32 %v123, %v231
    %v233 = vpop.f32.mrb[0].mxu0
    %234 = vmatprep.mubr.f32.mxu0 0.0
    %235 = vmatmul.mubr.f32.gmra.mrb[0].mxu0 %v139
    %v236 = vpop.f32.mrb[0].mxu0
    %v237 = vadd.f32 %v123, %v236
    %v238 = vpop.f32.mrb[0].mxu0
    %239 = vmatprep.mubr.f32.mxu0 0.0
    %240 = vmatmul.mubr.f32.gmra.mrb[0].mxu0 %v142
    %v241 = vpop.f32.mrb[0].mxu0
    %v242 = vadd.f32 %v123, %v241
    %v243 = vpop.f32.mrb[0].mxu0
    %244 = vmatprep.mubr.f32.mxu0 0.0
    %245 = vmatmul.mubr.f32.gmra.mrb[0].mxu0 %v145
    %v246 = vpop.f32.mrb[0].mxu0
    %v247 = vadd.f32 %v123, %v246
    %v248 = vpop.f32.mrb[0].mxu0
    %249 = vmatprep.mubr.f32.mxu0 0.0
    %250 = vmatmul.mubr.f32.gmra.mrb[0].mxu0 %v148
    %v251 = vpop.f32.mrb[0].mxu0
    %v252 = vadd.f32 %v123, %v251
    %v253 = vpop.f32.mrb[0].mxu0
    %254 = vdwg.mxu0
    %v255 = vmul.f32 %v217, %v81
    %v256 = vmul.f32 %v222, %v81
    %v257 = vmul.f32 %v227, %v81
    %v258 = vmul.f32 %v232, %v81
    %v259 = vmul.f32 %v237, %v81
    %v260 = vmul.f32 %v242, %v81
    %v261 = vmul.f32 %v247, %v81
    %v262 = vmul.f32 %v252, %v81
    %263 = vst [vmem:[#allocation2] sm:$0xff] %v255
    %264 = vst [vmem:[#allocation2 + $0x8] sm:$0xff] %v256
    %265 = vst [vmem:[#allocation2 + $0x10] sm:$0xff] %v257
    %266 = vst [vmem:[#allocation2 + $0x18] sm:$0xff] %v258
    %267 = vst [vmem:[#allocation2 + $0x20] sm:$0xff] %v259
    %268 = vst [vmem:[#allocation2 + $0x28] sm:$0xff] %v260
    %269 = vst [vmem:[#allocation2 + $0x30] sm:$0xff] %v261
    %270 = vst [vmem:[#allocation2 + $0x38] sm:$0xff] %v262
    %v271 = vld [vmem:[#allocation2] sm:$0xff]
    %vm272 = vcmask 261120
    %v274 = vsel %vm272, 0.0, 0
    %276 = vmatprep.subr.mxu0 0.0
    %277 = vmatpush1.msra.mxu0 %v86
    %278 = vmatprep.subr.mxu0 0.0
    %279 = vmatpush1.msra.mxu0 %v87
    %280 = vmatprep.subr.mxu0 0.0
    %281 = vmatpush1.msra.mxu0 %v88
    %282 = vmatprep.subr.mxu0 0.0
    %283 = vmatpush1.msra.mxu0 %v89
    %284 = vmatprep.subr.mxu0 0.0
    %285 = vmatpush1.msra.mxu0 0.0
    %286 = vmatprep.subr.mxu0 0.0
    %287 = vmatpush1.msra.mxu0 0.0
    %288 = vmatprep.subr.mxu0 0.0
    %289 = vmatpush1.msra.mxu0 0.0
    %290 = vmatprep.subr.mxu0 0.0
    %291 = vmatpush1.msra.mxu0 0.0
    %292 = vmatprep.subr.mxu0 0.0
    %293 = vmatpush1.msra.mxu0 0.0
    %294 = vmatprep.subr.mxu0 0.0
    %295 = vmatpush1.msra.mxu0 0.0
    %296 = vmatprep.subr.mxu0 0.0
    %297 = vmatpush1.msra.mxu0 0.0
    %298 = vmatprep.subr.mxu0 0.0
    %299 = vmatpush1.msra.mxu0 0.0
    %300 = vmatprep.subr.mxu0 0.0
    %301 = vmatpush1.msra.mxu0 0.0
    %302 = vmatprep.subr.mxu0 0.0
    %303 = vmatpush1.msra.mxu0 0.0
    %304 = vmatprep.subr.mxu0 0.0
    %305 = vmatpush1.msra.mxu0 0.0
    %306 = vmatprep.subr.mxu0 0.0
    %307 = vmatpush1.msra.mxu0 0.0
    %308 = vmatprep.subr.mxu0 0.0
    %309 = vmatpush1.msra.mxu0 0.0
    %310 = vmatprep.subr.mxu0 0.0
    %311 = vmatpush1.msra.mxu0 0.0
    %312 = vmatprep.subr.mxu0 0.0
    %313 = vmatpush1.msra.mxu0 0.0
    %314 = vmatprep.subr.mxu0 0.0
    %315 = vmatpush1.msra.mxu0 0.0
    %316 = vmatprep.subr.mxu0 0.0
    %317 = vmatpush1.msra.mxu0 0.0
    %318 = vmatprep.subr.mxu0 0.0
    %319 = vmatpush1.msra.mxu0 0.0
    %320 = vmatprep.subr.mxu0 0.0
    %321 = vmatpush1.msra.mxu0 0.0
    %322 = vmatprep.subr.mxu0 0.0
    %323 = vmatpush1.msra.mxu0 0.0
    %324 = vmatprep.subr.mxu0 0.0
    %325 = vmatpush1.msra.mxu0 0.0
    %326 = vmatprep.subr.mxu0 0.0
    %327 = vmatpush1.msra.mxu0 0.0
    %328 = vmatprep.subr.mxu0 0.0
    %329 = vmatpush1.msra.mxu0 0.0
    %330 = vmatprep.subr.mxu0 0.0
    %331 = vmatpush1.msra.mxu0 0.0
    %332 = vmatprep.subr.mxu0 0.0
    %333 = vmatpush1.msra.mxu0 0.0
    %334 = vmatprep.subr.mxu0 0.0
    %335 = vmatpush1.msra.mxu0 0.0
    %336 = vmatprep.subr.mxu0 0.0
    %337 = vmatpush1.msra.mxu0 0.0
    %338 = vmatprep.subr.mxu0 0.0
    %339 = vmatpush1.msra.mxu0 0.0
    %340 = vmatprep.mubr.f32.mxu0 0.0
    %341 = vmatmul.mubr.f32.gmra.mrb[0].mxu0 %v274
    %v342 = vpop.f32.mrb[0].mxu0
    %v343 = vadd.f32 0.0, %v342
    %v344 = vpop.f32.mrb[0].mxu0
    %345 = vdwg.mxu0
    %v346 = vadd.f32 %v271, %v343
    %v347 = vxor.u32 %v346, 2147483648
    %v348 = vmul.f32 %v347, 1.442695
    %v349 = vpow.pop %v348
    %v350 = vadd.f32 %v349, 1.0
    %v351 = vrcp.pop %v350
    %v352 = vmul.f32 1.0, %v351
    %v353 = vmul.f32 %v352, 2.0
    %v354 = vsub.f32 %v353, 1.0
    %v355 = vmul.f32 %v352, 0.0
    %357 = vrot.lane.b32.xlu0 %v354, 64
    %v358 = vpop.permute.xlu0 %357
    %v360 = vmul.f32 %v352, %v358
    %362 = vrot.lane.b32.xlu0 %v360, 32
    %v363 = vpop.permute.xlu0 %362
    %v365 = vadd.f32 %v355, %v363
    %v366 = vtanh.pop %v365
    %368 = vrot.lane.b32.xlu0 %v366, 64
    %v369 = vpop.permute.xlu0 %368
    %v371 = vmul.f32 %v352, %v369
    %s372 = scalar_lea.vmem [#allocation2], 8
    %v373 = vld [vmem:[%s372] sm:$0xff]
    %375 = vrot.lane.b32.xlu0 %v371, 32
    %v376 = vpop.permute.xlu0 %375
    %v377 = vsel %vm272, %v376, 0
    %379 = vmatprep.subr.mxu0 0.0
    %380 = vmatpush1.msra.mxu0 %v86
    %381 = vmatprep.subr.mxu0 0.0
    %382 = vmatpush1.msra.mxu0 %v87
    %383 = vmatprep.subr.mxu0 0.0
    %384 = vmatpush1.msra.mxu0 %v88
    %385 = vmatprep.subr.mxu0 0.0
    %386 = vmatpush1.msra.mxu0 %v89
    %387 = vmatprep.subr.mxu0 0.0
    %388 = vmatpush1.msra.mxu0 0.0
    %389 = vmatprep.subr.mxu0 0.0
    %390 = vmatpush1.msra.mxu0 0.0
    %391 = vmatprep.subr.mxu0 0.0
    %392 = vmatpush1.msra.mxu0 0.0
    %393 = vmatprep.subr.mxu0 0.0
    %394 = vmatpush1.msra.mxu0 0.0
    %395 = vmatprep.subr.mxu0 0.0
    %396 = vmatpush1.msra.mxu0 0.0
    %397 = vmatprep.subr.mxu0 0.0
    %398 = vmatpush1.msra.mxu0 0.0
    %399 = vmatprep.subr.mxu0 0.0
    %400 = vmatpush1.msra.mxu0 0.0
    %401 = vmatprep.subr.mxu0 0.0
    %402 = vmatpush1.msra.mxu0 0.0
    %403 = vmatprep.subr.mxu0 0.0
    %404 = vmatpush1.msra.mxu0 0.0
    %405 = vmatprep.subr.mxu0 0.0
    %406 = vmatpush1.msra.mxu0 0.0
    %407 = vmatprep.subr.mxu0 0.0
    %408 = vmatpush1.msra.mxu0 0.0
    %409 = vmatprep.subr.mxu0 0.0
    %410 = vmatpush1.msra.mxu0 0.0
    %411 = vmatprep.subr.mxu0 0.0
    %412 = vmatpush1.msra.mxu0 0.0
    %413 = vmatprep.subr.mxu0 0.0
    %414 = vmatpush1.msra.mxu0 0.0
    %415 = vmatprep.subr.mxu0 0.0
    %416 = vmatpush1.msra.mxu0 0.0
    %417 = vmatprep.subr.mxu0 0.0
    %418 = vmatpush1.msra.mxu0 0.0
    %419 = vmatprep.subr.mxu0 0.0
    %420 = vmatpush1.msra.mxu0 0.0
    %421 = vmatprep.subr.mxu0 0.0
    %422 = vmatpush1.msra.mxu0 0.0
    %423 = vmatprep.subr.mxu0 0.0
    %424 = vmatpush1.msra.mxu0 0.0
    %425 = vmatprep.subr.mxu0 0.0
    %426 = vmatpush1.msra.mxu0 0.0
    %427 = vmatprep.subr.mxu0 0.0
    %428 = vmatpush1.msra.mxu0 0.0
    %429 = vmatprep.subr.mxu0 0.0
    %430 = vmatpush1.msra.mxu0 0.0
    %431 = vmatprep.subr.mxu0 0.0
    %432 = vmatpush1.msra.mxu0 0.0
    %433 = vmatprep.subr.mxu0 0.0
    %434 = vmatpush1.msra.mxu0 0.0
    %435 = vmatprep.subr.mxu0 0.0
    %436 = vmatpush1.msra.mxu0 0.0
    %437 = vmatprep.subr.mxu0 0.0
    %438 = vmatpush1.msra.mxu0 0.0
    %439 = vmatprep.subr.mxu0 0.0
    %440 = vmatpush1.msra.mxu0 0.0
    %441 = vmatprep.subr.mxu0 0.0
    %442 = vmatpush1.msra.mxu0 0.0
    %443 = vmatprep.mubr.f32.mxu0 0.0
    %444 = vmatmul.mubr.f32.gmra.mrb[0].mxu0 %v377
    %v445 = vpop.f32.mrb[0].mxu0
    %v446 = vadd.f32 0.0, %v445
    %v447 = vpop.f32.mrb[0].mxu0
    %448 = vdwg.mxu0
    %v449 = vadd.f32 %v373, %v446
    %v450 = vxor.u32 %v449, 2147483648
    %v451 = vmul.f32 %v450, 1.442695
    %v452 = vpow.pop %v451
    %v453 = vadd.f32 %v452, 1.0
    %v454 = vrcp.pop %v453
    %v455 = vmul.f32 1.0, %v454
    %v456 = vmul.f32 %v455, 2.0
    %v457 = vsub.f32 %v456, 1.0
    %v458 = vmul.f32 %v455, %v365
    %460 = vrot.lane.b32.xlu0 %v457, 64
    %v461 = vpop.permute.xlu0 %460
    %v463 = vmul.f32 %v455, %v461
    %465 = vrot.lane.b32.xlu0 %v463, 32
    %v466 = vpop.permute.xlu0 %465
    %v468 = vadd.f32 %v458, %v466
    %v469 = vtanh.pop %v468
    %471 = vrot.lane.b32.xlu0 %v469, 64
    %v472 = vpop.permute.xlu0 %471
    %v474 = vmul.f32 %v455, %v472
    %v476 = vlaneseq
    %v477 = vshrl.u32 %v476, 7
    %v478 = vsub.s32 0, %v477
    %v479 = vrot.slane %v107, %v478
    %481 = vmatprep.subr.mxu0 0.0
    %482 = vmatpush1.msra.mxu0 %v102
    %483 = vmatprep.subr.mxu0 0.0
    %484 = vmatpush1.msra.mxu0 %v103
    %485 = vmatprep.subr.mxu0 0.0
    %486 = vmatpush1.msra.mxu0 %v104
    %487 = vmatprep.subr.mxu0 0.0
    %488 = vmatpush1.msra.mxu0 %v105
    %489 = vmatprep.subr.mxu0 0.0
    %490 = vmatpush1.msra.mxu0 0.0
    %491 = vmatprep.subr.mxu0 0.0
    %492 = vmatpush1.msra.mxu0 0.0
    %493 = vmatprep.subr.mxu0 0.0
    %494 = vmatpush1.msra.mxu0 0.0
    %495 = vmatprep.subr.mxu0 0.0
    %496 = vmatpush1.msra.mxu0 0.0
    %497 = vmatprep.subr.mxu0 0.0
    %498 = vmatpush1.msra.mxu0 0.0
    %499 = vmatprep.subr.mxu0 0.0
    %500 = vmatpush1.msra.mxu0 0.0
    %501 = vmatprep.subr.mxu0 0.0
    %502 = vmatpush1.msra.mxu0 0.0
    %503 = vmatprep.subr.mxu0 0.0
    %504 = vmatpush1.msra.mxu0 0.0
    %505 = vmatprep.subr.mxu0 0.0
    %506 = vmatpush1.msra.mxu0 0.0
    %507 = vmatprep.subr.mxu0 0.0
    %508 = vmatpush1.msra.mxu0 0.0
    %509 = vmatprep.subr.mxu0 0.0
    %510 = vmatpush1.msra.mxu0 0.0
    %511 = vmatprep.subr.mxu0 0.0
    %512 = vmatpush1.msra.mxu0 0.0
    %513 = vmatprep.subr.mxu0 0.0
    %514 = vmatpush1.msra.mxu0 0.0
    %515 = vmatprep.subr.mxu0 0.0
    %516 = vmatpush1.msra.mxu0 0.0
    %517 = vmatprep.subr.mxu0 0.0
    %518 = vmatpush1.msra.mxu0 0.0
    %519 = vmatprep.subr.mxu0 0.0
    %520 = vmatpush1.msra.mxu0 0.0
    %521 = vmatprep.subr.mxu0 0.0
    %522 = vmatpush1.msra.mxu0 0.0
    %523 = vmatprep.subr.mxu0 0.0
    %524 = vmatpush1.msra.mxu0 0.0
    %525 = vmatprep.subr.mxu0 0.0
    %526 = vmatpush1.msra.mxu0 0.0
    %527 = vmatprep.subr.mxu0 0.0
    %528 = vmatpush1.msra.mxu0 0.0
    %529 = vmatprep.subr.mxu0 0.0
    %530 = vmatpush1.msra.mxu0 0.0
    %531 = vmatprep.subr.mxu0 0.0
    %532 = vmatpush1.msra.mxu0 0.0
    %533 = vmatprep.subr.mxu0 0.0
    %534 = vmatpush1.msra.mxu0 0.0
    %535 = vmatprep.subr.mxu0 0.0
    %536 = vmatpush1.msra.mxu0 0.0
    %537 = vmatprep.subr.mxu0 0.0
    %538 = vmatpush1.msra.mxu0 0.0
    %539 = vmatprep.subr.mxu0 0.0
    %540 = vmatpush1.msra.mxu0 0.0
    %541 = vmatprep.subr.mxu0 0.0
    %542 = vmatpush1.msra.mxu0 0.0
    %543 = vmatprep.subr.mxu0 0.0
    %544 = vmatpush1.msra.mxu0 0.0
    %545 = vmatprep.mubr.f32.mxu0 0.0
    %546 = vmatmul.mubr.f32.gmra.mrb[0].mxu0 %v377
    %v547 = vpop.f32.mrb[0].mxu0
    %v548 = vadd.f32 %v479, %v547
    %v549 = vpop.f32.mrb[0].mxu0
    %550 = vdwg.mxu0
    %551 = vmatprep.subr.mxu0 0.0
    %552 = vmatpush1.msra.mxu0 %v94
    %553 = vmatprep.subr.mxu0 0.0
    %554 = vmatpush1.msra.mxu0 %v95
    %555 = vmatprep.subr.mxu0 0.0
    %556 = vmatpush1.msra.mxu0 %v96
    %557 = vmatprep.subr.mxu0 0.0
    %558 = vmatpush1.msra.mxu0 %v97
    %559 = vmatprep.subr.mxu0 0.0
    %560 = vmatpush1.msra.mxu0 0.0
    %561 = vmatprep.subr.mxu0 0.0
    %562 = vmatpush1.msra.mxu0 0.0
    %563 = vmatprep.subr.mxu0 0.0
    %564 = vmatpush1.msra.mxu0 0.0
    %565 = vmatprep.subr.mxu0 0.0
    %566 = vmatpush1.msra.mxu0 0.0
    %567 = vmatprep.subr.mxu0 0.0
    %568 = vmatpush1.msra.mxu0 0.0
    %569 = vmatprep.subr.mxu0 0.0
    %570 = vmatpush1.msra.mxu0 0.0
    %571 = vmatprep.subr.mxu0 0.0
    %572 = vmatpush1.msra.mxu0 0.0
    %573 = vmatprep.subr.mxu0 0.0
    %574 = vmatpush1.msra.mxu0 0.0
    %575 = vmatprep.subr.mxu0 0.0
    %576 = vmatpush1.msra.mxu0 0.0
    %577 = vmatprep.subr.mxu0 0.0
    %578 = vmatpush1.msra.mxu0 0.0
    %579 = vmatprep.subr.mxu0 0.0
    %580 = vmatpush1.msra.mxu0 0.0
    %581 = vmatprep.subr.mxu0 0.0
    %582 = vmatpush1.msra.mxu0 0.0
    %583 = vmatprep.subr.mxu0 0.0
    %584 = vmatpush1.msra.mxu0 0.0
    %585 = vmatprep.subr.mxu0 0.0
    %586 = vmatpush1.msra.mxu0 0.0
    %587 = vmatprep.subr.mxu0 0.0
    %588 = vmatpush1.msra.mxu0 0.0
    %589 = vmatprep.subr.mxu0 0.0
    %590 = vmatpush1.msra.mxu0 0.0
    %591 = vmatprep.subr.mxu0 0.0
    %592 = vmatpush1.msra.mxu0 0.0
    %593 = vmatprep.subr.mxu0 0.0
    %594 = vmatpush1.msra.mxu0 0.0
    %595 = vmatprep.subr.mxu0 0.0
    %596 = vmatpush1.msra.mxu0 0.0
    %597 = vmatprep.subr.mxu0 0.0
    %598 = vmatpush1.msra.mxu0 0.0
    %599 = vmatprep.subr.mxu0 0.0
    %600 = vmatpush1.msra.mxu0 0.0
    %601 = vmatprep.subr.mxu0 0.0
    %602 = vmatpush1.msra.mxu0 0.0
    %603 = vmatprep.subr.mxu0 0.0
    %604 = vmatpush1.msra.mxu0 0.0
    %605 = vmatprep.subr.mxu0 0.0
    %606 = vmatpush1.msra.mxu0 0.0
    %607 = vmatprep.subr.mxu0 0.0
    %608 = vmatpush1.msra.mxu0 0.0
    %609 = vmatprep.subr.mxu0 0.0
    %610 = vmatpush1.msra.mxu0 0.0
    %611 = vmatprep.subr.mxu0 0.0
    %612 = vmatpush1.msra.mxu0 0.0
    %613 = vmatprep.subr.mxu0 0.0
    %614 = vmatpush1.msra.mxu0 0.0
    %615 = vmatprep.mubr.f32.mxu0 0.0
    %616 = vmatmul.mubr.f32.gmra.mrb[0].mxu0 %v274
    %v617 = vpop.f32.mrb[0].mxu0
    %v618 = vadd.f32 0.0, %v617
    %v619 = vpop.f32.mrb[0].mxu0
    %620 = vdwg.mxu0
    %v621 = vadd.f32 %v548, %v618
    %v622 = vxor.u32 %v621, 2147483648
    %v623 = vmul.f32 %v622, 1.442695
    %v624 = vpow.pop %v623
    %v625 = vadd.f32 %v624, 1.0
    %v626 = vrcp.pop %v625
    %v627 = vmul.f32 1.0, %v626
    %v628 = vmul.f32 %v627, 2.0
    %v629 = vsub.f32 %v628, 1.0
    %v630 = vmul.f32 %v627, 0.0
    %632 = vrot.lane.b32.xlu0 %v629, 64
    %v633 = vpop.permute.xlu0 %632
    %v635 = vmul.f32 %v627, %v633
    %637 = vrot.lane.b32.xlu0 %v635, 32
    %v638 = vpop.permute.xlu0 %637
    %v640 = vadd.f32 %v630, %v638
    %v641 = vtanh.pop %v640
    %643 = vrot.lane.b32.xlu0 %v641, 64
    %v644 = vpop.permute.xlu0 %643
    %v646 = vmul.f32 %v627, %v644
    %s647 = scalar_lea.vmem [#allocation2], 16
    %v648 = vld [vmem:[%s647] sm:$0xff]
    %650 = vrot.lane.b32.xlu0 %v474, 32
    %v651 = vpop.permute.xlu0 %650
    %v652 = vsel %vm272, %v651, 0
    %654 = vmatprep.subr.mxu0 0.0
    %655 = vmatpush1.msra.mxu0 %v86
    %656 = vmatprep.subr.mxu0 0.0
    %657 = vmatpush1.msra.mxu0 %v87
    %658 = vmatprep.subr.mxu0 0.0
    %659 = vmatpush1.msra.mxu0 %v88
    %660 = vmatprep.subr.mxu0 0.0
    %661 = vmatpush1.msra.mxu0 %v89
    %662 = vmatprep.subr.mxu0 0.0
    %663 = vmatpush1.msra.mxu0 0.0
    %664 = vmatprep.subr.mxu0 0.0
    %665 = vmatpush1.msra.mxu0 0.0
    %666 = vmatprep.subr.mxu0 0.0
    %667 = vmatpush1.msra.mxu0 0.0
    %668 = vmatprep.subr.mxu0 0.0
    %669 = vmatpush1.msra.mxu0 0.0
    %670 = vmatprep.subr.mxu0 0.0
    %671 = vmatpush1.msra.mxu0 0.0
    %672 = vmatprep.subr.mxu0 0.0
    %673 = vmatpush1.msra.mxu0 0.0
    %674 = vmatprep.subr.mxu0 0.0
    %675 = vmatpush1.msra.mxu0 0.0
    %676 = vmatprep.subr.mxu0 0.0
    %677 = vmatpush1.msra.mxu0 0.0
    %678 = vmatprep.subr.mxu0 0.0
    %679 = vmatpush1.msra.mxu0 0.0
    %680 = vmatprep.subr.mxu0 0.0
    %681 = vmatpush1.msra.mxu0 0.0
    %682 = vmatprep.subr.mxu0 0.0
    %683 = vmatpush1.msra.mxu0 0.0
    %684 = vmatprep.subr.mxu0 0.0
    %685 = vmatpush1.msra.mxu0 0.0
    %686 = vmatprep.subr.mxu0 0.0
    %687 = vmatpush1.msra.mxu0 0.0
    %688 = vmatprep.subr.mxu0 0.0
    %689 = vmatpush1.msra.mxu0 0.0
    %690 = vmatprep.subr.mxu0 0.0
    %691 = vmatpush1.msra.mxu0 0.0
    %692 = vmatprep.subr.mxu0 0.0
    %693 = vmatpush1.msra.mxu0 0.0
    %694 = vmatprep.subr.mxu0 0.0
    %695 = vmatpush1.msra.mxu0 0.0
    %696 = vmatprep.subr.mxu0 0.0
    %697 = vmatpush1.msra.mxu0 0.0
    %698 = vmatprep.subr.mxu0 0.0
    %699 = vmatpush1.msra.mxu0 0.0
    %700 = vmatprep.subr.mxu0 0.0
    %701 = vmatpush1.msra.mxu0 0.0
    %702 = vmatprep.subr.mxu0 0.0
    %703 = vmatpush1.msra.mxu0 0.0
    %704 = vmatprep.subr.mxu0 0.0
    %705 = vmatpush1.msra.mxu0 0.0
    %706 = vmatprep.subr.mxu0 0.0
    %707 = vmatpush1.msra.mxu0 0.0
    %708 = vmatprep.subr.mxu0 0.0
    %709 = vmatpush1.msra.mxu0 0.0
    %710 = vmatprep.subr.mxu0 0.0
    %711 = vmatpush1.msra.mxu0 0.0
    %712 = vmatprep.subr.mxu0 0.0
    %713 = vmatpush1.msra.mxu0 0.0
    %714 = vmatprep.subr.mxu0 0.0
    %715 = vmatpush1.msra.mxu0 0.0
    %716 = vmatprep.subr.mxu0 0.0
    %717 = vmatpush1.msra.mxu0 0.0
    %718 = vmatprep.mubr.f32.mxu0 0.0
    %719 = vmatmul.mubr.f32.gmra.mrb[0].mxu0 %v652
    %v720 = vpop.f32.mrb[0].mxu0
    %v721 = vadd.f32 0.0, %v720
    %v722 = vpop.f32.mrb[0].mxu0
    %723 = vdwg.mxu0
    %v724 = vadd.f32 %v648, %v721
    %v725 = vxor.u32 %v724, 2147483648
    %v726 = vmul.f32 %v725, 1.442695
    %v727 = vpow.pop %v726
    %v728 = vadd.f32 %v727, 1.0
    %v729 = vrcp.pop %v728
    %v730 = vmul.f32 1.0, %v729
    %v731 = vmul.f32 %v730, 2.0
    %v732 = vsub.f32 %v731, 1.0
    %v733 = vmul.f32 %v730, %v468
    %735 = vrot.lane.b32.xlu0 %v732, 64
    %v736 = vpop.permute.xlu0 %735
    %v738 = vmul.f32 %v730, %v736
    %740 = vrot.lane.b32.xlu0 %v738, 32
    %v741 = vpop.permute.xlu0 %740
    %v743 = vadd.f32 %v733, %v741
    %v744 = vtanh.pop %v743
    %746 = vrot.lane.b32.xlu0 %v744, 64
    %v747 = vpop.permute.xlu0 %746
    %v749 = vmul.f32 %v730, %v747
    %750 = vmatprep.subr.mxu0 0.0
    %751 = vmatpush1.msra.mxu0 %v102
    %752 = vmatprep.subr.mxu0 0.0
    %753 = vmatpush1.msra.mxu0 %v103
    %754 = vmatprep.subr.mxu0 0.0
    %755 = vmatpush1.msra.mxu0 %v104
    %756 = vmatprep.subr.mxu0 0.0
    %757 = vmatpush1.msra.mxu0 %v105
    %758 = vmatprep.subr.mxu0 0.0
    %759 = vmatpush1.msra.mxu0 0.0
    %760 = vmatprep.subr.mxu0 0.0
    %761 = vmatpush1.msra.mxu0 0.0
    %762 = vmatprep.subr.mxu0 0.0
    %763 = vmatpush1.msra.mxu0 0.0
    %764 = vmatprep.subr.mxu0 0.0
    %765 = vmatpush1.msra.mxu0 0.0
    %766 = vmatprep.subr.mxu0 0.0
    %767 = vmatpush1.msra.mxu0 0.0
    %768 = vmatprep.subr.mxu0 0.0
    %769 = vmatpush1.msra.mxu0 0.0
    %770 = vmatprep.subr.mxu0 0.0
    %771 = vmatpush1.msra.mxu0 0.0
    %772 = vmatprep.subr.mxu0 0.0
    %773 = vmatpush1.msra.mxu0 0.0
    %774 = vmatprep.subr.mxu0 0.0
    %775 = vmatpush1.msra.mxu0 0.0
    %776 = vmatprep.subr.mxu0 0.0
    %777 = vmatpush1.msra.mxu0 0.0
    %778 = vmatprep.subr.mxu0 0.0
    %779 = vmatpush1.msra.mxu0 0.0
    %780 = vmatprep.subr.mxu0 0.0
    %781 = vmatpush1.msra.mxu0 0.0
    %782 = vmatprep.subr.mxu0 0.0
    %783 = vmatpush1.msra.mxu0 0.0
    %784 = vmatprep.subr.mxu0 0.0
    %785 = vmatpush1.msra.mxu0 0.0
    %786 = vmatprep.subr.mxu0 0.0
    %787 = vmatpush1.msra.mxu0 0.0
    %788 = vmatprep.subr.mxu0 0.0
    %789 = vmatpush1.msra.mxu0 0.0
    %790 = vmatprep.subr.mxu0 0.0
    %791 = vmatpush1.msra.mxu0 0.0
    %792 = vmatprep.subr.mxu0 0.0
    %793 = vmatpush1.msra.mxu0 0.0
    %794 = vmatprep.subr.mxu0 0.0
    %795 = vmatpush1.msra.mxu0 0.0
    %796 = vmatprep.subr.mxu0 0.0
    %797 = vmatpush1.msra.mxu0 0.0
    %798 = vmatprep.subr.mxu0 0.0
    %799 = vmatpush1.msra.mxu0 0.0
    %800 = vmatprep.subr.mxu0 0.0
    %801 = vmatpush1.msra.mxu0 0.0
    %802 = vmatprep.subr.mxu0 0.0
    %803 = vmatpush1.msra.mxu0 0.0
    %804 = vmatprep.subr.mxu0 0.0
    %805 = vmatpush1.msra.mxu0 0.0
    %806 = vmatprep.subr.mxu0 0.0
    %807 = vmatpush1.msra.mxu0 0.0
    %808 = vmatprep.subr.mxu0 0.0
    %809 = vmatpush1.msra.mxu0 0.0
    %810 = vmatprep.subr.mxu0 0.0
    %811 = vmatpush1.msra.mxu0 0.0
    %812 = vmatprep.subr.mxu0 0.0
    %813 = vmatpush1.msra.mxu0 0.0
    %814 = vmatprep.mubr.f32.mxu0 0.0
    %815 = vmatmul.mubr.f32.gmra.mrb[0].mxu0 %v652
    %v816 = vpop.f32.mrb[0].mxu0
    %v817 = vadd.f32 %v479, %v816
    %v818 = vpop.f32.mrb[0].mxu0
    %819 = vdwg.mxu0
    %821 = vrot.lane.b32.xlu0 %v646, 32
    %v822 = vpop.permute.xlu0 %821
    %v823 = vsel %vm272, %v822, 0
    %825 = vmatprep.subr.mxu0 0.0
    %826 = vmatpush1.msra.mxu0 %v94
    %827 = vmatprep.subr.mxu0 0.0
    %828 = vmatpush1.msra.mxu0 %v95
    %829 = vmatprep.subr.mxu0 0.0
    %830 = vmatpush1.msra.mxu0 %v96
    %831 = vmatprep.subr.mxu0 0.0
    %832 = vmatpush1.msra.mxu0 %v97
    %833 = vmatprep.subr.mxu0 0.0
    %834 = vmatpush1.msra.mxu0 0.0
    %835 = vmatprep.subr.mxu0 0.0
    %836 = vmatpush1.msra.mxu0 0.0
    %837 = vmatprep.subr.mxu0 0.0
    %838 = vmatpush1.msra.mxu0 0.0
    %839 = vmatprep.subr.mxu0 0.0
    %840 = vmatpush1.msra.mxu0 0.0
    %841 = vmatprep.subr.mxu0 0.0
    %842 = vmatpush1.msra.mxu0 0.0
    %843 = vmatprep.subr.mxu0 0.0
    %844 = vmatpush1.msra.mxu0 0.0
    %845 = vmatprep.subr.mxu0 0.0
    %846 = vmatpush1.msra.mxu0 0.0
    %847 = vmatprep.subr.mxu0 0.0
    %848 = vmatpush1.msra.mxu0 0.0
    %849 = vmatprep.subr.mxu0 0.0
    %850 = vmatpush1.msra.mxu0 0.0
    %851 = vmatprep.subr.mxu0 0.0
    %852 = vmatpush1.msra.mxu0 0.0
    %853 = vmatprep.subr.mxu0 0.0
    %854 = vmatpush1.msra.mxu0 0.0
    %855 = vmatprep.subr.mxu0 0.0
    %856 = vmatpush1.msra.mxu0 0.0
    %857 = vmatprep.subr.mxu0 0.0
    %858 = vmatpush1.msra.mxu0 0.0
    %859 = vmatprep.subr.mxu0 0.0
    %860 = vmatpush1.msra.mxu0 0.0
    %861 = vmatprep.subr.mxu0 0.0
    %862 = vmatpush1.msra.mxu0 0.0
    %863 = vmatprep.subr.mxu0 0.0
    %864 = vmatpush1.msra.mxu0 0.0
    %865 = vmatprep.subr.mxu0 0.0
    %866 = vmatpush1.msra.mxu0 0.0
    %867 = vmatprep.subr.mxu0 0.0
    %868 = vmatpush1.msra.mxu0 0.0
    %869 = vmatprep.subr.mxu0 0.0
    %870 = vmatpush1.msra.mxu0 0.0
    %871 = vmatprep.subr.mxu0 0.0
    %872 = vmatpush1.msra.mxu0 0.0
    %873 = vmatprep.subr.mxu0 0.0
    %874 = vmatpush1.msra.mxu0 0.0
    %875 = vmatprep.subr.mxu0 0.0
    %876 = vmatpush1.msra.mxu0 0.0
    %877 = vmatprep.subr.mxu0 0.0
    %878 = vmatpush1.msra.mxu0 0.0
    %879 = vmatprep.subr.mxu0 0.0
    %880 = vmatpush1.msra.mxu0 0.0
    %881 = vmatprep.subr.mxu0 0.0
    %882 = vmatpush1.msra.mxu0 0.0
    %883 = vmatprep.subr.mxu0 0.0
    %884 = vmatpush1.msra.mxu0 0.0
    %885 = vmatprep.subr.mxu0 0.0
    %886 = vmatpush1.msra.mxu0 0.0
    %887 = vmatprep.subr.mxu0 0.0
    %888 = vmatpush1.msra.mxu0 0.0
    %889 = vmatprep.mubr.f32.mxu0 0.0
    %890 = vmatmul.mubr.f32.gmra.mrb[0].mxu0 %v823
    %v891 = vpop.f32.mrb[0].mxu0
    %v892 = vadd.f32 0.0, %v891
    %v893 = vpop.f32.mrb[0].mxu0
    %894 = vdwg.mxu0
    %v895 = vadd.f32 %v817, %v892
    %v896 = vxor.u32 %v895, 2147483648
    %v897 = vmul.f32 %v896, 1.442695
    %v898 = vpow.pop %v897
    %v899 = vadd.f32 %v898, 1.0
    %v900 = vrcp.pop %v899
    %v901 = vmul.f32 1.0, %v900
    %v902 = vmul.f32 %v901, 2.0
    %v903 = vsub.f32 %v902, 1.0
    %v904 = vmul.f32 %v901, %v640
    %906 = vrot.lane.b32.xlu0 %v903, 64
    %v907 = vpop.permute.xlu0 %906
    %v909 = vmul.f32 %v901, %v907
    %911 = vrot.lane.b32.xlu0 %v909, 32
    %v912 = vpop.permute.xlu0 %911
    %v914 = vadd.f32 %v904, %v912
    %v915 = vtanh.pop %v914
    %917 = vrot.lane.b32.xlu0 %v915, 64
    %v918 = vpop.permute.xlu0 %917
    %v920 = vmul.f32 %v901, %v918
    %s921 = scalar_lea.vmem [#allocation2], 24
    %v922 = vld [vmem:[%s921] sm:$0xff]
    %924 = vrot.lane.b32.xlu0 %v749, 32
    %v925 = vpop.permute.xlu0 %924
    %v926 = vsel %vm272, %v925, 0
    %928 = vmatprep.subr.mxu0 0.0
    %929 = vmatpush1.msra.mxu0 %v86
    %930 = vmatprep.subr.mxu0 0.0
    %931 = vmatpush1.msra.mxu0 %v87
    %932 = vmatprep.subr.mxu0 0.0
    %933 = vmatpush1.msra.mxu0 %v88
    %934 = vmatprep.subr.mxu0 0.0
    %935 = vmatpush1.msra.mxu0 %v89
    %936 = vmatprep.subr.mxu0 0.0
    %937 = vmatpush1.msra.mxu0 0.0
    %938 = vmatprep.subr.mxu0 0.0
    %939 = vmatpush1.msra.mxu0 0.0
    %940 = vmatprep.subr.mxu0 0.0
    %941 = vmatpush1.msra.mxu0 0.0
    %942 = vmatprep.subr.mxu0 0.0
    %943 = vmatpush1.msra.mxu0 0.0
    %944 = vmatprep.subr.mxu0 0.0
    %945 = vmatpush1.msra.mxu0 0.0
    %946 = vmatprep.subr.mxu0 0.0
    %947 = vmatpush1.msra.mxu0 0.0
    %948 = vmatprep.subr.mxu0 0.0
    %949 = vmatpush1.msra.mxu0 0.0
    %950 = vmatprep.subr.mxu0 0.0
    %951 = vmatpush1.msra.mxu0 0.0
    %952 = vmatprep.subr.mxu0 0.0
    %953 = vmatpush1.msra.mxu0 0.0
    %954 = vmatprep.subr.mxu0 0.0
    %955 = vmatpush1.msra.mxu0 0.0
    %956 = vmatprep.subr.mxu0 0.0
    %957 = vmatpush1.msra.mxu0 0.0
    %958 = vmatprep.subr.mxu0 0.0
    %959 = vmatpush1.msra.mxu0 0.0
    %960 = vmatprep.subr.mxu0 0.0
    %961 = vmatpush1.msra.mxu0 0.0
    %962 = vmatprep.subr.mxu0 0.0
    %963 = vmatpush1.msra.mxu0 0.0
    %964 = vmatprep.subr.mxu0 0.0
    %965 = vmatpush1.msra.mxu0 0.0
    %966 = vmatprep.subr.mxu0 0.0
    %967 = vmatpush1.msra.mxu0 0.0
    %968 = vmatprep.subr.mxu0 0.0
    %969 = vmatpush1.msra.mxu0 0.0
    %970 = vmatprep.subr.mxu0 0.0
    %971 = vmatpush1.msra.mxu0 0.0
    %972 = vmatprep.subr.mxu0 0.0
    %973 = vmatpush1.msra.mxu0 0.0
    %974 = vmatprep.subr.mxu0 0.0
    %975 = vmatpush1.msra.mxu0 0.0
    %976 = vmatprep.subr.mxu0 0.0
    %977 = vmatpush1.msra.mxu0 0.0
    %978 = vmatprep.subr.mxu0 0.0
    %979 = vmatpush1.msra.mxu0 0.0
    %980 = vmatprep.subr.mxu0 0.0
    %981 = vmatpush1.msra.mxu0 0.0
    %982 = vmatprep.subr.mxu0 0.0
    %983 = vmatpush1.msra.mxu0 0.0
    %984 = vmatprep.subr.mxu0 0.0
    %985 = vmatpush1.msra.mxu0 0.0
    %986 = vmatprep.subr.mxu0 0.0
    %987 = vmatpush1.msra.mxu0 0.0
    %988 = vmatprep.subr.mxu0 0.0
    %989 = vmatpush1.msra.mxu0 0.0
    %990 = vmatprep.subr.mxu0 0.0
    %991 = vmatpush1.msra.mxu0 0.0
    %992 = vmatprep.mubr.f32.mxu0 0.0
    %993 = vmatmul.mubr.f32.gmra.mrb[0].mxu0 %v926
    %v994 = vpop.f32.mrb[0].mxu0
    %v995 = vadd.f32 0.0, %v994
    %v996 = vpop.f32.mrb[0].mxu0
    %997 = vdwg.mxu0
    %v998 = vadd.f32 %v922, %v995
    %v999 = vxor.u32 %v998, 2147483648
    %v1000 = vmul.f32 %v999, 1.442695
    %v1001 = vpow.pop %v1000
    %v1002 = vadd.f32 %v1001, 1.0
    %v1003 = vrcp.pop %v1002
    %v1004 = vmul.f32 1.0, %v1003
    %v1005 = vmul.f32 %v1004, 2.0
    %v1006 = vsub.f32 %v1005, 1.0
    %v1007 = vmul.f32 %v1004, %v743
    %1009 = vrot.lane.b32.xlu0 %v1006, 64
    %v1010 = vpop.permute.xlu0 %1009
    %v1012 = vmul.f32 %v1004, %v1010
    %1014 = vrot.lane.b32.xlu0 %v1012, 32
    %v1015 = vpop.permute.xlu0 %1014
    %v1017 = vadd.f32 %v1007, %v1015
    %v1018 = vtanh.pop %v1017
    %1020 = vrot.lane.b32.xlu0 %v1018, 64
    %v1021 = vpop.permute.xlu0 %1020
    %v1023 = vmul.f32 %v1004, %v1021
    %1024 = vmatprep.subr.mxu0 0.0
    %1025 = vmatpush1.msra.mxu0 %v102
    %1026 = vmatprep.subr.mxu0 0.0
    %1027 = vmatpush1.msra.mxu0 %v103
    %1028 = vmatprep.subr.mxu0 0.0
    %1029 = vmatpush1.msra.mxu0 %v104
    %1030 = vmatprep.subr.mxu0 0.0
    %1031 = vmatpush1.msra.mxu0 %v105
    %1032 = vmatprep.subr.mxu0 0.0
    %1033 = vmatpush1.msra.mxu0 0.0
    %1034 = vmatprep.subr.mxu0 0.0
    %1035 = vmatpush1.msra.mxu0 0.0
    %1036 = vmatprep.subr.mxu0 0.0
    %1037 = vmatpush1.msra.mxu0 0.0
    %1038 = vmatprep.subr.mxu0 0.0
    %1039 = vmatpush1.msra.mxu0 0.0
    %1040 = vmatprep.subr.mxu0 0.0
    %1041 = vmatpush1.msra.mxu0 0.0
    %1042 = vmatprep.subr.mxu0 0.0
    %1043 = vmatpush1.msra.mxu0 0.0
    %1044 = vmatprep.subr.mxu0 0.0
    %1045 = vmatpush1.msra.mxu0 0.0
    %1046 = vmatprep.subr.mxu0 0.0
    %1047 = vmatpush1.msra.mxu0 0.0
    %1048 = vmatprep.subr.mxu0 0.0
    %1049 = vmatpush1.msra.mxu0 0.0
    %1050 = vmatprep.subr.mxu0 0.0
    %1051 = vmatpush1.msra.mxu0 0.0
    %1052 = vmatprep.subr.mxu0 0.0
    %1053 = vmatpush1.msra.mxu0 0.0
    %1054 = vmatprep.subr.mxu0 0.0
    %1055 = vmatpush1.msra.mxu0 0.0
    %1056 = vmatprep.subr.mxu0 0.0
    %1057 = vmatpush1.msra.mxu0 0.0
    %1058 = vmatprep.subr.mxu0 0.0
    %1059 = vmatpush1.msra.mxu0 0.0
    %1060 = vmatprep.subr.mxu0 0.0
    %1061 = vmatpush1.msra.mxu0 0.0
    %1062 = vmatprep.subr.mxu0 0.0
    %1063 = vmatpush1.msra.mxu0 0.0
    %1064 = vmatprep.subr.mxu0 0.0
    %1065 = vmatpush1.msra.mxu0 0.0
    %1066 = vmatprep.subr.mxu0 0.0
    %1067 = vmatpush1.msra.mxu0 0.0
    %1068 = vmatprep.subr.mxu0 0.0
    %1069 = vmatpush1.msra.mxu0 0.0
    %1070 = vmatprep.subr.mxu0 0.0
    %1071 = vmatpush1.msra.mxu0 0.0
    %1072 = vmatprep.subr.mxu0 0.0
    %1073 = vmatpush1.msra.mxu0 0.0
    %1074 = vmatprep.subr.mxu0 0.0
    %1075 = vmatpush1.msra.mxu0 0.0
    %1076 = vmatprep.subr.mxu0 0.0
    %1077 = vmatpush1.msra.mxu0 0.0
    %1078 = vmatprep.subr.mxu0 0.0
    %1079 = vmatpush1.msra.mxu0 0.0
    %1080 = vmatprep.subr.mxu0 0.0
    %1081 = vmatpush1.msra.mxu0 0.0
    %1082 = vmatprep.subr.mxu0 0.0
    %1083 = vmatpush1.msra.mxu0 0.0
    %1084 = vmatprep.subr.mxu0 0.0
    %1085 = vmatpush1.msra.mxu0 0.0
    %1086 = vmatprep.subr.mxu0 0.0
    %1087 = vmatpush1.msra.mxu0 0.0
    %1088 = vmatprep.mubr.f32.mxu0 0.0
    %1089 = vmatmul.mubr.f32.gmra.mrb[0].mxu0 %v926
    %v1090 = vpop.f32.mrb[0].mxu0
    %v1091 = vadd.f32 %v479, %v1090
    %v1092 = vpop.f32.mrb[0].mxu0
    %1093 = vdwg.mxu0
    %1095 = vrot.lane.b32.xlu0 %v920, 32
    %v1096 = vpop.permute.xlu0 %1095
    %v1097 = vsel %vm272, %v1096, 0
    %1099 = vmatprep.subr.mxu0 0.0
    %1100 = vmatpush1.msra.mxu0 %v94
    %1101 = vmatprep.subr.mxu0 0.0
    %1102 = vmatpush1.msra.mxu0 %v95
    %1103 = vmatprep.subr.mxu0 0.0
    %1104 = vmatpush1.msra.mxu0 %v96
    %1105 = vmatprep.subr.mxu0 0.0
    %1106 = vmatpush1.msra.mxu0 %v97
    %1107 = vmatprep.subr.mxu0 0.0
    %1108 = vmatpush1.msra.mxu0 0.0
    %1109 = vmatprep.subr.mxu0 0.0
    %1110 = vmatpush1.msra.mxu0 0.0
    %1111 = vmatprep.subr.mxu0 0.0
    %1112 = vmatpush1.msra.mxu0 0.0
    %1113 = vmatprep.subr.mxu0 0.0
    %1114 = vmatpush1.msra.mxu0 0.0
    %1115 = vmatprep.subr.mxu0 0.0
    %1116 = vmatpush1.msra.mxu0 0.0
    %1117 = vmatprep.subr.mxu0 0.0
    %1118 = vmatpush1.msra.mxu0 0.0
    %1119 = vmatprep.subr.mxu0 0.0
    %1120 = vmatpush1.msra.mxu0 0.0
    %1121 = vmatprep.subr.mxu0 0.0
    %1122 = vmatpush1.msra.mxu0 0.0
    %1123 = vmatprep.subr.mxu0 0.0
    %1124 = vmatpush1.msra.mxu0 0.0
    %1125 = vmatprep.subr.mxu0 0.0
    %1126 = vmatpush1.msra.mxu0 0.0
    %1127 = vmatprep.subr.mxu0 0.0
    %1128 = vmatpush1.msra.mxu0 0.0
    %1129 = vmatprep.subr.mxu0 0.0
    %1130 = vmatpush1.msra.mxu0 0.0
    %1131 = vmatprep.subr.mxu0 0.0
    %1132 = vmatpush1.msra.mxu0 0.0
    %1133 = vmatprep.subr.mxu0 0.0
    %1134 = vmatpush1.msra.mxu0 0.0
    %1135 = vmatprep.subr.mxu0 0.0
    %1136 = vmatpush1.msra.mxu0 0.0
    %1137 = vmatprep.subr.mxu0 0.0
    %1138 = vmatpush1.msra.mxu0 0.0
    %1139 = vmatprep.subr.mxu0 0.0
    %1140 = vmatpush1.msra.mxu0 0.0
    %1141 = vmatprep.subr.mxu0 0.0
    %1142 = vmatpush1.msra.mxu0 0.0
    %1143 = vmatprep.subr.mxu0 0.0
    %1144 = vmatpush1.msra.mxu0 0.0
    %1145 = vmatprep.subr.mxu0 0.0
    %1146 = vmatpush1.msra.mxu0 0.0
    %1147 = vmatprep.subr.mxu0 0.0
    %1148 = vmatpush1.msra.mxu0 0.0
    %1149 = vmatprep.subr.mxu0 0.0
    %1150 = vmatpush1.msra.mxu0 0.0
    %1151 = vmatprep.subr.mxu0 0.0
    %1152 = vmatpush1.msra.mxu0 0.0
    %1153 = vmatprep.subr.mxu0 0.0
    %1154 = vmatpush1.msra.mxu0 0.0
    %1155 = vmatprep.subr.mxu0 0.0
    %1156 = vmatpush1.msra.mxu0 0.0
    %1157 = vmatprep.subr.mxu0 0.0
    %1158 = vmatpush1.msra.mxu0 0.0
    %1159 = vmatprep.subr.mxu0 0.0
    %1160 = vmatpush1.msra.mxu0 0.0
    %1161 = vmatprep.subr.mxu0 0.0
    %1162 = vmatpush1.msra.mxu0 0.0
    %1163 = vmatprep.mubr.f32.mxu0 0.0
    %1164 = vmatmul.mubr.f32.gmra.mrb[0].mxu0 %v1097
    %v1165 = vpop.f32.mrb[0].mxu0
    %v1166 = vadd.f32 0.0, %v1165
    %v1167 = vpop.f32.mrb[0].mxu0
    %1168 = vdwg.mxu0
    %v1169 = vadd.f32 %v1091, %v1166
    %v1170 = vxor.u32 %v1169, 2147483648
    %v1171 = vmul.f32 %v1170, 1.442695
    %v1172 = vpow.pop %v1171
    %v1173 = vadd.f32 %v1172, 1.0
    %v1174 = vrcp.pop %v1173
    %v1175 = vmul.f32 1.0, %v1174
    %v1176 = vmul.f32 %v1175, 2.0
    %v1177 = vsub.f32 %v1176, 1.0
    %v1178 = vmul.f32 %v1175, %v914
    %1180 = vrot.lane.b32.xlu0 %v1177, 64
    %v1181 = vpop.permute.xlu0 %1180
    %v1183 = vmul.f32 %v1175, %v1181
    %1185 = vrot.lane.b32.xlu0 %v1183, 32
    %v1186 = vpop.permute.xlu0 %1185
    %v1188 = vadd.f32 %v1178, %v1186
    %v1189 = vtanh.pop %v1188
    %1191 = vrot.lane.b32.xlu0 %v1189, 64
    %v1192 = vpop.permute.xlu0 %1191
    %v1194 = vmul.f32 %v1175, %v1192
    %s1195 = scalar_lea.vmem [#allocation2], 32
    %v1196 = vld [vmem:[%s1195] sm:$0xff]
    %1198 = vrot.lane.b32.xlu0 %v1023, 32
    %v1199 = vpop.permute.xlu0 %1198
    %v1200 = vsel %vm272, %v1199, 0
    %1202 = vmatprep.subr.mxu0 0.0
    %1203 = vmatpush1.msra.mxu0 %v86
    %1204 = vmatprep.subr.mxu0 0.0
    %1205 = vmatpush1.msra.mxu0 %v87
    %1206 = vmatprep.subr.mxu0 0.0
    %1207 = vmatpush1.msra.mxu0 %v88
    %1208 = vmatprep.subr.mxu0 0.0
    %1209 = vmatpush1.msra.mxu0 %v89
    %1210 = vmatprep.subr.mxu0 0.0
    %1211 = vmatpush1.msra.mxu0 0.0
    %1212 = vmatprep.subr.mxu0 0.0
    %1213 = vmatpush1.msra.mxu0 0.0
    %1214 = vmatprep.subr.mxu0 0.0
    %1215 = vmatpush1.msra.mxu0 0.0
    %1216 = vmatprep.subr.mxu0 0.0
    %1217 = vmatpush1.msra.mxu0 0.0
    %1218 = vmatprep.subr.mxu0 0.0
    %1219 = vmatpush1.msra.mxu0 0.0
    %1220 = vmatprep.subr.mxu0 0.0
    %1221 = vmatpush1.msra.mxu0 0.0
    %1222 = vmatprep.subr.mxu0 0.0
    %1223 = vmatpush1.msra.mxu0 0.0
    %1224 = vmatprep.subr.mxu0 0.0
    %1225 = vmatpush1.msra.mxu0 0.0
    %1226 = vmatprep.subr.mxu0 0.0
    %1227 = vmatpush1.msra.mxu0 0.0
    %1228 = vmatprep.subr.mxu0 0.0
    %1229 = vmatpush1.msra.mxu0 0.0
    %1230 = vmatprep.subr.mxu0 0.0
    %1231 = vmatpush1.msra.mxu0 0.0
    %1232 = vmatprep.subr.mxu0 0.0
    %1233 = vmatpush1.msra.mxu0 0.0
    %1234 = vmatprep.subr.mxu0 0.0
    %1235 = vmatpush1.msra.mxu0 0.0
    %1236 = vmatprep.subr.mxu0 0.0
    %1237 = vmatpush1.msra.mxu0 0.0
    %1238 = vmatprep.subr.mxu0 0.0
    %1239 = vmatpush1.msra.mxu0 0.0
    %1240 = vmatprep.subr.mxu0 0.0
    %1241 = vmatpush1.msra.mxu0 0.0
    %1242 = vmatprep.subr.mxu0 0.0
    %1243 = vmatpush1.msra.mxu0 0.0
    %1244 = vmatprep.subr.mxu0 0.0
    %1245 = vmatpush1.msra.mxu0 0.0
    %1246 = vmatprep.subr.mxu0 0.0
    %1247 = vmatpush1.msra.mxu0 0.0
    %1248 = vmatprep.subr.mxu0 0.0
    %1249 = vmatpush1.msra.mxu0 0.0
    %1250 = vmatprep.subr.mxu0 0.0
    %1251 = vmatpush1.msra.mxu0 0.0
    %1252 = vmatprep.subr.mxu0 0.0
    %1253 = vmatpush1.msra.mxu0 0.0
    %1254 = vmatprep.subr.mxu0 0.0
    %1255 = vmatpush1.msra.mxu0 0.0
    %1256 = vmatprep.subr.mxu0 0.0
    %1257 = vmatpush1.msra.mxu0 0.0
    %1258 = vmatprep.subr.mxu0 0.0
    %1259 = vmatpush1.msra.mxu0 0.0
    %1260 = vmatprep.subr.mxu0 0.0
    %1261 = vmatpush1.msra.mxu0 0.0
    %1262 = vmatprep.subr.mxu0 0.0
    %1263 = vmatpush1.msra.mxu0 0.0
    %1264 = vmatprep.subr.mxu0 0.0
    %1265 = vmatpush1.msra.mxu0 0.0
    %1266 = vmatprep.mubr.f32.mxu0 0.0
    %1267 = vmatmul.mubr.f32.gmra.mrb[0].mxu0 %v1200
    %v1268 = vpop.f32.mrb[0].mxu0
    %v1269 = vadd.f32 0.0, %v1268
    %v1270 = vpop.f32.mrb[0].mxu0
    %1271 = vdwg.mxu0
    %v1272 = vadd.f32 %v1196, %v1269
    %v1273 = vxor.u32 %v1272, 2147483648
    %v1274 = vmul.f32 %v1273, 1.442695
    %v1275 = vpow.pop %v1274
    %v1276 = vadd.f32 %v1275, 1.0
    %v1277 = vrcp.pop %v1276
    %v1278 = vmul.f32 1.0, %v1277
    %v1279 = vmul.f32 %v1278, 2.0
    %v1280 = vsub.f32 %v1279, 1.0
    %v1281 = vmul.f32 %v1278, %v1017
    %1283 = vrot.lane.b32.xlu0 %v1280, 64
    %v1284 = vpop.permute.xlu0 %1283
    %v1286 = vmul.f32 %v1278, %v1284
    %1288 = vrot.lane.b32.xlu0 %v1286, 32
    %v1289 = vpop.permute.xlu0 %1288
    %v1291 = vadd.f32 %v1281, %v1289
    %v1292 = vtanh.pop %v1291
    %1294 = vrot.lane.b32.xlu0 %v1292, 64
    %v1295 = vpop.permute.xlu0 %1294
    %v1297 = vmul.f32 %v1278, %v1295
    %1298 = vmatprep.subr.mxu0 0.0
    %1299 = vmatpush1.msra.mxu0 %v102
    %1300 = vmatprep.subr.mxu0 0.0
    %1301 = vmatpush1.msra.mxu0 %v103
    %1302 = vmatprep.subr.mxu0 0.0
    %1303 = vmatpush1.msra.mxu0 %v104
    %1304 = vmatprep.subr.mxu0 0.0
    %1305 = vmatpush1.msra.mxu0 %v105
    %1306 = vmatprep.subr.mxu0 0.0
    %1307 = vmatpush1.msra.mxu0 0.0
    %1308 = vmatprep.subr.mxu0 0.0
    %1309 = vmatpush1.msra.mxu0 0.0
    %1310 = vmatprep.subr.mxu0 0.0
    %1311 = vmatpush1.msra.mxu0 0.0
    %1312 = vmatprep.subr.mxu0 0.0
    %1313 = vmatpush1.msra.mxu0 0.0
    %1314 = vmatprep.subr.mxu0 0.0
    %1315 = vmatpush1.msra.mxu0 0.0
    %1316 = vmatprep.subr.mxu0 0.0
    %1317 = vmatpush1.msra.mxu0 0.0
    %1318 = vmatprep.subr.mxu0 0.0
    %1319 = vmatpush1.msra.mxu0 0.0
    %1320 = vmatprep.subr.mxu0 0.0
    %1321 = vmatpush1.msra.mxu0 0.0
    %1322 = vmatprep.subr.mxu0 0.0
    %1323 = vmatpush1.msra.mxu0 0.0
    %1324 = vmatprep.subr.mxu0 0.0
    %1325 = vmatpush1.msra.mxu0 0.0
    %1326 = vmatprep.subr.mxu0 0.0
    %1327 = vmatpush1.msra.mxu0 0.0
    %1328 = vmatprep.subr.mxu0 0.0
    %1329 = vmatpush1.msra.mxu0 0.0
    %1330 = vmatprep.subr.mxu0 0.0
    %1331 = vmatpush1.msra.mxu0 0.0
    %1332 = vmatprep.subr.mxu0 0.0
    %1333 = vmatpush1.msra.mxu0 0.0
    %1334 = vmatprep.subr.mxu0 0.0
    %1335 = vmatpush1.msra.mxu0 0.0
    %1336 = vmatprep.subr.mxu0 0.0
    %1337 = vmatpush1.msra.mxu0 0.0
    %1338 = vmatprep.subr.mxu0 0.0
    %1339 = vmatpush1.msra.mxu0 0.0
    %1340 = vmatprep.subr.mxu0 0.0
    %1341 = vmatpush1.msra.mxu0 0.0
    %1342 = vmatprep.subr.mxu0 0.0
    %1343 = vmatpush1.msra.mxu0 0.0
    %1344 = vmatprep.subr.mxu0 0.0
    %1345 = vmatpush1.msra.mxu0 0.0
    %1346 = vmatprep.subr.mxu0 0.0
    %1347 = vmatpush1.msra.mxu0 0.0
    %1348 = vmatprep.subr.mxu0 0.0
    %1349 = vmatpush1.msra.mxu0 0.0
    %1350 = vmatprep.subr.mxu0 0.0
    %1351 = vmatpush1.msra.mxu0 0.0
    %1352 = vmatprep.subr.mxu0 0.0
    %1353 = vmatpush1.msra.mxu0 0.0
    %1354 = vmatprep.subr.mxu0 0.0
    %1355 = vmatpush1.msra.mxu0 0.0
    %1356 = vmatprep.subr.mxu0 0.0
    %1357 = vmatpush1.msra.mxu0 0.0
    %1358 = vmatprep.subr.mxu0 0.0
    %1359 = vmatpush1.msra.mxu0 0.0
    %1360 = vmatprep.subr.mxu0 0.0
    %1361 = vmatpush1.msra.mxu0 0.0
    %1362 = vmatprep.mubr.f32.mxu0 0.0
    %1363 = vmatmul.mubr.f32.gmra.mrb[0].mxu0 %v1200
    %v1364 = vpop.f32.mrb[0].mxu0
    %v1365 = vadd.f32 %v479, %v1364
    %v1366 = vpop.f32.mrb[0].mxu0
    %1367 = vdwg.mxu0
    %1369 = vrot.lane.b32.xlu0 %v1194, 32
    %v1370 = vpop.permute.xlu0 %1369
    %v1371 = vsel %vm272, %v1370, 0
    %1373 = vmatprep.subr.mxu0 0.0
    %1374 = vmatpush1.msra.mxu0 %v94
    %1375 = vmatprep.subr.mxu0 0.0
    %1376 = vmatpush1.msra.mxu0 %v95
    %1377 = vmatprep.subr.mxu0 0.0
    %1378 = vmatpush1.msra.mxu0 %v96
    %1379 = vmatprep.subr.mxu0 0.0
    %1380 = vmatpush1.msra.mxu0 %v97
    %1381 = vmatprep.subr.mxu0 0.0
    %1382 = vmatpush1.msra.mxu0 0.0
    %1383 = vmatprep.subr.mxu0 0.0
    %1384 = vmatpush1.msra.mxu0 0.0
    %1385 = vmatprep.subr.mxu0 0.0
    %1386 = vmatpush1.msra.mxu0 0.0
    %1387 = vmatprep.subr.mxu0 0.0
    %1388 = vmatpush1.msra.mxu0 0.0
    %1389 = vmatprep.subr.mxu0 0.0
    %1390 = vmatpush1.msra.mxu0 0.0
    %1391 = vmatprep.subr.mxu0 0.0
    %1392 = vmatpush1.msra.mxu0 0.0
    %1393 = vmatprep.subr.mxu0 0.0
    %1394 = vmatpush1.msra.mxu0 0.0
    %1395 = vmatprep.subr.mxu0 0.0
    %1396 = vmatpush1.msra.mxu0 0.0
    %1397 = vmatprep.subr.mxu0 0.0
    %1398 = vmatpush1.msra.mxu0 0.0
    %1399 = vmatprep.subr.mxu0 0.0
    %1400 = vmatpush1.msra.mxu0 0.0
    %1401 = vmatprep.subr.mxu0 0.0
    %1402 = vmatpush1.msra.mxu0 0.0
    %1403 = vmatprep.subr.mxu0 0.0
    %1404 = vmatpush1.msra.mxu0 0.0
    %1405 = vmatprep.subr.mxu0 0.0
    %1406 = vmatpush1.msra.mxu0 0.0
    %1407 = vmatprep.subr.mxu0 0.0
    %1408 = vmatpush1.msra.mxu0 0.0
    %1409 = vmatprep.subr.mxu0 0.0
    %1410 = vmatpush1.msra.mxu0 0.0
    %1411 = vmatprep.subr.mxu0 0.0
    %1412 = vmatpush1.msra.mxu0 0.0
    %1413 = vmatprep.subr.mxu0 0.0
    %1414 = vmatpush1.msra.mxu0 0.0
    %1415 = vmatprep.subr.mxu0 0.0
    %1416 = vmatpush1.msra.mxu0 0.0
    %1417 = vmatprep.subr.mxu0 0.0
    %1418 = vmatpush1.msra.mxu0 0.0
    %1419 = vmatprep.subr.mxu0 0.0
    %1420 = vmatpush1.msra.mxu0 0.0
    %1421 = vmatprep.subr.mxu0 0.0
    %1422 = vmatpush1.msra.mxu0 0.0
    %1423 = vmatprep.subr.mxu0 0.0
    %1424 = vmatpush1.msra.mxu0 0.0
    %1425 = vmatprep.subr.mxu0 0.0
    %1426 = vmatpush1.msra.mxu0 0.0
    %1427 = vmatprep.subr.mxu0 0.0
    %1428 = vmatpush1.msra.mxu0 0.0
    %1429 = vmatprep.subr.mxu0 0.0
    %1430 = vmatpush1.msra.mxu0 0.0
    %1431 = vmatprep.subr.mxu0 0.0
    %1432 = vmatpush1.msra.mxu0 0.0
    %1433 = vmatprep.subr.mxu0 0.0
    %1434 = vmatpush1.msra.mxu0 0.0
    %1435 = vmatprep.subr.mxu0 0.0
    %1436 = vmatpush1.msra.mxu0 0.0
    %1437 = vmatprep.mubr.f32.mxu0 0.0
    %1438 = vmatmul.mubr.f32.gmra.mrb[0].mxu0 %v1371
    %v1439 = vpop.f32.mrb[0].mxu0
    %v1440 = vadd.f32 0.0, %v1439
    %v1441 = vpop.f32.mrb[0].mxu0
    %1442 = vdwg.mxu0
    %v1443 = vadd.f32 %v1365, %v1440
    %v1444 = vxor.u32 %v1443, 2147483648
    %v1445 = vmul.f32 %v1444, 1.442695
    %v1446 = vpow.pop %v1445
    %v1447 = vadd.f32 %v1446, 1.0
    %v1448 = vrcp.pop %v1447
    %v1449 = vmul.f32 1.0, %v1448
    %v1450 = vmul.f32 %v1449, 2.0
    %v1451 = vsub.f32 %v1450, 1.0
    %v1452 = vmul.f32 %v1449, %v1188
    %1454 = vrot.lane.b32.xlu0 %v1451, 64
    %v1455 = vpop.permute.xlu0 %1454
    %v1457 = vmul.f32 %v1449, %v1455
    %1459 = vrot.lane.b32.xlu0 %v1457, 32
    %v1460 = vpop.permute.xlu0 %1459
    %v1462 = vadd.f32 %v1452, %v1460
    %v1463 = vtanh.pop %v1462
    %1465 = vrot.lane.b32.xlu0 %v1463, 64
    %v1466 = vpop.permute.xlu0 %1465
    %v1468 = vmul.f32 %v1449, %v1466
    %s1469 = scalar_lea.vmem [#allocation2], 40
    %v1470 = vld [vmem:[%s1469] sm:$0xff]
    %1472 = vrot.lane.b32.xlu0 %v1297, 32
    %v1473 = vpop.permute.xlu0 %1472
    %v1474 = vsel %vm272, %v1473, 0
    %1476 = vmatprep.subr.mxu0 0.0
    %1477 = vmatpush1.msra.mxu0 %v86
    %1478 = vmatprep.subr.mxu0 0.0
    %1479 = vmatpush1.msra.mxu0 %v87
    %1480 = vmatprep.subr.mxu0 0.0
    %1481 = vmatpush1.msra.mxu0 %v88
    %1482 = vmatprep.subr.mxu0 0.0
    %1483 = vmatpush1.msra.mxu0 %v89
    %1484 = vmatprep.subr.mxu0 0.0
    %1485 = vmatpush1.msra.mxu0 0.0
    %1486 = vmatprep.subr.mxu0 0.0
    %1487 = vmatpush1.msra.mxu0 0.0
    %1488 = vmatprep.subr.mxu0 0.0
    %1489 = vmatpush1.msra.mxu0 0.0
    %1490 = vmatprep.subr.mxu0 0.0
    %1491 = vmatpush1.msra.mxu0 0.0
    %1492 = vmatprep.subr.mxu0 0.0
    %1493 = vmatpush1.msra.mxu0 0.0
    %1494 = vmatprep.subr.mxu0 0.0
    %1495 = vmatpush1.msra.mxu0 0.0
    %1496 = vmatprep.subr.mxu0 0.0
    %1497 = vmatpush1.msra.mxu0 0.0
    %1498 = vmatprep.subr.mxu0 0.0
    %1499 = vmatpush1.msra.mxu0 0.0
    %1500 = vmatprep.subr.mxu0 0.0
    %1501 = vmatpush1.msra.mxu0 0.0
    %1502 = vmatprep.subr.mxu0 0.0
    %1503 = vmatpush1.msra.mxu0 0.0
    %1504 = vmatprep.subr.mxu0 0.0
    %1505 = vmatpush1.msra.mxu0 0.0
    %1506 = vmatprep.subr.mxu0 0.0
    %1507 = vmatpush1.msra.mxu0 0.0
    %1508 = vmatprep.subr.mxu0 0.0
    %1509 = vmatpush1.msra.mxu0 0.0
    %1510 = vmatprep.subr.mxu0 0.0
    %1511 = vmatpush1.msra.mxu0 0.0
    %1512 = vmatprep.subr.mxu0 0.0
    %1513 = vmatpush1.msra.mxu0 0.0
    %1514 = vmatprep.subr.mxu0 0.0
    %1515 = vmatpush1.msra.mxu0 0.0
    %1516 = vmatprep.subr.mxu0 0.0
    %1517 = vmatpush1.msra.mxu0 0.0
    %1518 = vmatprep.subr.mxu0 0.0
    %1519 = vmatpush1.msra.mxu0 0.0
    %1520 = vmatprep.subr.mxu0 0.0
    %1521 = vmatpush1.msra.mxu0 0.0
    %1522 = vmatprep.subr.mxu0 0.0
    %1523 = vmatpush1.msra.mxu0 0.0
    %1524 = vmatprep.subr.mxu0 0.0
    %1525 = vmatpush1.msra.mxu0 0.0
    %1526 = vmatprep.subr.mxu0 0.0
    %1527 = vmatpush1.msra.mxu0 0.0
    %1528 = vmatprep.subr.mxu0 0.0
    %1529 = vmatpush1.msra.mxu0 0.0
    %1530 = vmatprep.subr.mxu0 0.0
    %1531 = vmatpush1.msra.mxu0 0.0
    %1532 = vmatprep.subr.mxu0 0.0
    %1533 = vmatpush1.msra.mxu0 0.0
    %1534 = vmatprep.subr.mxu0 0.0
    %1535 = vmatpush1.msra.mxu0 0.0
    %1536 = vmatprep.subr.mxu0 0.0
    %1537 = vmatpush1.msra.mxu0 0.0
    %1538 = vmatprep.subr.mxu0 0.0
    %1539 = vmatpush1.msra.mxu0 0.0
    %1540 = vmatprep.mubr.f32.mxu0 0.0
    %1541 = vmatmul.mubr.f32.gmra.mrb[0].mxu0 %v1474
    %v1542 = vpop.f32.mrb[0].mxu0
    %v1543 = vadd.f32 0.0, %v1542
    %v1544 = vpop.f32.mrb[0].mxu0
    %1545 = vdwg.mxu0
    %v1546 = vadd.f32 %v1470, %v1543
    %v1547 = vxor.u32 %v1546, 2147483648
    %v1548 = vmul.f32 %v1547, 1.442695
    %v1549 = vpow.pop %v1548
    %v1550 = vadd.f32 %v1549, 1.0
    %v1551 = vrcp.pop %v1550
    %v1552 = vmul.f32 1.0, %v1551
    %v1553 = vmul.f32 %v1552, 2.0
    %v1554 = vsub.f32 %v1553, 1.0
    %v1555 = vmul.f32 %v1552, %v1291
    %1557 = vrot.lane.b32.xlu0 %v1554, 64
    %v1558 = vpop.permute.xlu0 %1557
    %v1560 = vmul.f32 %v1552, %v1558
    %1562 = vrot.lane.b32.xlu0 %v1560, 32
    %v1563 = vpop.permute.xlu0 %1562
    %v1565 = vadd.f32 %v1555, %v1563
    %v1566 = vtanh.pop %v1565
    %1568 = vrot.lane.b32.xlu0 %v1566, 64
    %v1569 = vpop.permute.xlu0 %1568
    %v1571 = vmul.f32 %v1552, %v1569
    %1572 = vmatprep.subr.mxu0 0.0
    %1573 = vmatpush1.msra.mxu0 %v102
    %1574 = vmatprep.subr.mxu0 0.0
    %1575 = vmatpush1.msra.mxu0 %v103
    %1576 = vmatprep.subr.mxu0 0.0
    %1577 = vmatpush1.msra.mxu0 %v104
    %1578 = vmatprep.subr.mxu0 0.0
    %1579 = vmatpush1.msra.mxu0 %v105
    %1580 = vmatprep.subr.mxu0 0.0
    %1581 = vmatpush1.msra.mxu0 0.0
    %1582 = vmatprep.subr.mxu0 0.0
    %1583 = vmatpush1.msra.mxu0 0.0
    %1584 = vmatprep.subr.mxu0 0.0
    %1585 = vmatpush1.msra.mxu0 0.0
    %1586 = vmatprep.subr.mxu0 0.0
    %1587 = vmatpush1.msra.mxu0 0.0
    %1588 = vmatprep.subr.mxu0 0.0
    %1589 = vmatpush1.msra.mxu0 0.0
    %1590 = vmatprep.subr.mxu0 0.0
    %1591 = vmatpush1.msra.mxu0 0.0
    %1592 = vmatprep.subr.mxu0 0.0
    %1593 = vmatpush1.msra.mxu0 0.0
    %1594 = vmatprep.subr.mxu0 0.0
    %1595 = vmatpush1.msra.mxu0 0.0
    %1596 = vmatprep.subr.mxu0 0.0
    %1597 = vmatpush1.msra.mxu0 0.0
    %1598 = vmatprep.subr.mxu0 0.0
    %1599 = vmatpush1.msra.mxu0 0.0
    %1600 = vmatprep.subr.mxu0 0.0
    %1601 = vmatpush1.msra.mxu0 0.0
    %1602 = vmatprep.subr.mxu0 0.0
    %1603 = vmatpush1.msra.mxu0 0.0
    %1604 = vmatprep.subr.mxu0 0.0
    %1605 = vmatpush1.msra.mxu0 0.0
    %1606 = vmatprep.subr.mxu0 0.0
    %1607 = vmatpush1.msra.mxu0 0.0
    %1608 = vmatprep.subr.mxu0 0.0
    %1609 = vmatpush1.msra.mxu0 0.0
    %1610 = vmatprep.subr.mxu0 0.0
    %1611 = vmatpush1.msra.mxu0 0.0
    %1612 = vmatprep.subr.mxu0 0.0
    %1613 = vmatpush1.msra.mxu0 0.0
    %1614 = vmatprep.subr.mxu0 0.0
    %1615 = vmatpush1.msra.mxu0 0.0
    %1616 = vmatprep.subr.mxu0 0.0
    %1617 = vmatpush1.msra.mxu0 0.0
    %1618 = vmatprep.subr.mxu0 0.0
    %1619 = vmatpush1.msra.mxu0 0.0
    %1620 = vmatprep.subr.mxu0 0.0
    %1621 = vmatpush1.msra.mxu0 0.0
    %1622 = vmatprep.subr.mxu0 0.0
    %1623 = vmatpush1.msra.mxu0 0.0
    %1624 = vmatprep.subr.mxu0 0.0
    %1625 = vmatpush1.msra.mxu0 0.0
    %1626 = vmatprep.subr.mxu0 0.0
    %1627 = vmatpush1.msra.mxu0 0.0
    %1628 = vmatprep.subr.mxu0 0.0
    %1629 = vmatpush1.msra.mxu0 0.0
    %1630 = vmatprep.subr.mxu0 0.0
    %1631 = vmatpush1.msra.mxu0 0.0
    %1632 = vmatprep.subr.mxu0 0.0
    %1633 = vmatpush1.msra.mxu0 0.0
    %1634 = vmatprep.subr.mxu0 0.0
    %1635 = vmatpush1.msra.mxu0 0.0
    %1636 = vmatprep.mubr.f32.mxu0 0.0
    %1637 = vmatmul.mubr.f32.gmra.mrb[0].mxu0 %v1474
    %v1638 = vpop.f32.mrb[0].mxu0
    %v1639 = vadd.f32 %v479, %v1638
    %v1640 = vpop.f32.mrb[0].mxu0
    %1641 = vdwg.mxu0
    %1643 = vrot.lane.b32.xlu0 %v1468, 32
    %v1644 = vpop.permute.xlu0 %1643
    %v1645 = vsel %vm272, %v1644, 0
    %1647 = vmatprep.subr.mxu0 0.0
    %1648 = vmatpush1.msra.mxu0 %v94
    %1649 = vmatprep.subr.mxu0 0.0
    %1650 = vmatpush1.msra.mxu0 %v95
    %1651 = vmatprep.subr.mxu0 0.0
    %1652 = vmatpush1.msra.mxu0 %v96
    %1653 = vmatprep.subr.mxu0 0.0
    %1654 = vmatpush1.msra.mxu0 %v97
    %1655 = vmatprep.subr.mxu0 0.0
    %1656 = vmatpush1.msra.mxu0 0.0
    %1657 = vmatprep.subr.mxu0 0.0
    %1658 = vmatpush1.msra.mxu0 0.0
    %1659 = vmatprep.subr.mxu0 0.0
    %1660 = vmatpush1.msra.mxu0 0.0
    %1661 = vmatprep.subr.mxu0 0.0
    %1662 = vmatpush1.msra.mxu0 0.0
    %1663 = vmatprep.subr.mxu0 0.0
    %1664 = vmatpush1.msra.mxu0 0.0
    %1665 = vmatprep.subr.mxu0 0.0
    %1666 = vmatpush1.msra.mxu0 0.0
    %1667 = vmatprep.subr.mxu0 0.0
    %1668 = vmatpush1.msra.mxu0 0.0
    %1669 = vmatprep.subr.mxu0 0.0
    %1670 = vmatpush1.msra.mxu0 0.0
    %1671 = vmatprep.subr.mxu0 0.0
    %1672 = vmatpush1.msra.mxu0 0.0
    %1673 = vmatprep.subr.mxu0 0.0
    %1674 = vmatpush1.msra.mxu0 0.0
    %1675 = vmatprep.subr.mxu0 0.0
    %1676 = vmatpush1.msra.mxu0 0.0
    %1677 = vmatprep.subr.mxu0 0.0
    %1678 = vmatpush1.msra.mxu0 0.0
    %1679 = vmatprep.subr.mxu0 0.0
    %1680 = vmatpush1.msra.mxu0 0.0
    %1681 = vmatprep.subr.mxu0 0.0
    %1682 = vmatpush1.msra.mxu0 0.0
    %1683 = vmatprep.subr.mxu0 0.0
    %1684 = vmatpush1.msra.mxu0 0.0
    %1685 = vmatprep.subr.mxu0 0.0
    %1686 = vmatpush1.msra.mxu0 0.0
    %1687 = vmatprep.subr.mxu0 0.0
    %1688 = vmatpush1.msra.mxu0 0.0
    %1689 = vmatprep.subr.mxu0 0.0
    %1690 = vmatpush1.msra.mxu0 0.0
    %1691 = vmatprep.subr.mxu0 0.0
    %1692 = vmatpush1.msra.mxu0 0.0
    %1693 = vmatprep.subr.mxu0 0.0
    %1694 = vmatpush1.msra.mxu0 0.0
    %1695 = vmatprep.subr.mxu0 0.0
    %1696 = vmatpush1.msra.mxu0 0.0
    %1697 = vmatprep.subr.mxu0 0.0
    %1698 = vmatpush1.msra.mxu0 0.0
    %1699 = vmatprep.subr.mxu0 0.0
    %1700 = vmatpush1.msra.mxu0 0.0
    %1701 = vmatprep.subr.mxu0 0.0
    %1702 = vmatpush1.msra.mxu0 0.0
    %1703 = vmatprep.subr.mxu0 0.0
    %1704 = vmatpush1.msra.mxu0 0.0
    %1705 = vmatprep.subr.mxu0 0.0
    %1706 = vmatpush1.msra.mxu0 0.0
    %1707 = vmatprep.subr.mxu0 0.0
    %1708 = vmatpush1.msra.mxu0 0.0
    %1709 = vmatprep.subr.mxu0 0.0
    %1710 = vmatpush1.msra.mxu0 0.0
    %1711 = vmatprep.mubr.f32.mxu0 0.0
    %1712 = vmatmul.mubr.f32.gmra.mrb[0].mxu0 %v1645
    %v1713 = vpop.f32.mrb[0].mxu0
    %v1714 = vadd.f32 0.0, %v1713
    %v1715 = vpop.f32.mrb[0].mxu0
    %1716 = vdwg.mxu0
    %v1717 = vadd.f32 %v1639, %v1714
    %v1718 = vxor.u32 %v1717, 2147483648
    %v1719 = vmul.f32 %v1718, 1.442695
    %v1720 = vpow.pop %v1719
    %v1721 = vadd.f32 %v1720, 1.0
    %v1722 = vrcp.pop %v1721
    %v1723 = vmul.f32 1.0, %v1722
    %v1724 = vmul.f32 %v1723, 2.0
    %v1725 = vsub.f32 %v1724, 1.0
    %v1726 = vmul.f32 %v1723, %v1462
    %1728 = vrot.lane.b32.xlu0 %v1725, 64
    %v1729 = vpop.permute.xlu0 %1728
    %v1731 = vmul.f32 %v1723, %v1729
    %1733 = vrot.lane.b32.xlu0 %v1731, 32
    %v1734 = vpop.permute.xlu0 %1733
    %v1736 = vadd.f32 %v1726, %v1734
    %v1737 = vtanh.pop %v1736
    %1739 = vrot.lane.b32.xlu0 %v1737, 64
    %v1740 = vpop.permute.xlu0 %1739
    %v1742 = vmul.f32 %v1723, %v1740
    %s1743 = scalar_lea.vmem [#allocation2], 48
    %v1744 = vld [vmem:[%s1743] sm:$0xff]
    %1746 = vrot.lane.b32.xlu0 %v1571, 32
    %v1747 = vpop.permute.xlu0 %1746
    %v1748 = vsel %vm272, %v1747, 0
    %1750 = vmatprep.subr.mxu0 0.0
    %1751 = vmatpush1.msra.mxu0 %v86
    %1752 = vmatprep.subr.mxu0 0.0
    %1753 = vmatpush1.msra.mxu0 %v87
    %1754 = vmatprep.subr.mxu0 0.0
    %1755 = vmatpush1.msra.mxu0 %v88
    %1756 = vmatprep.subr.mxu0 0.0
    %1757 = vmatpush1.msra.mxu0 %v89
    %1758 = vmatprep.subr.mxu0 0.0
    %1759 = vmatpush1.msra.mxu0 0.0
    %1760 = vmatprep.subr.mxu0 0.0
    %1761 = vmatpush1.msra.mxu0 0.0
    %1762 = vmatprep.subr.mxu0 0.0
    %1763 = vmatpush1.msra.mxu0 0.0
    %1764 = vmatprep.subr.mxu0 0.0
    %1765 = vmatpush1.msra.mxu0 0.0
    %1766 = vmatprep.subr.mxu0 0.0
    %1767 = vmatpush1.msra.mxu0 0.0
    %1768 = vmatprep.subr.mxu0 0.0
    %1769 = vmatpush1.msra.mxu0 0.0
    %1770 = vmatprep.subr.mxu0 0.0
    %1771 = vmatpush1.msra.mxu0 0.0
    %1772 = vmatprep.subr.mxu0 0.0
    %1773 = vmatpush1.msra.mxu0 0.0
    %1774 = vmatprep.subr.mxu0 0.0
    %1775 = vmatpush1.msra.mxu0 0.0
    %1776 = vmatprep.subr.mxu0 0.0
    %1777 = vmatpush1.msra.mxu0 0.0
    %1778 = vmatprep.subr.mxu0 0.0
    %1779 = vmatpush1.msra.mxu0 0.0
    %1780 = vmatprep.subr.mxu0 0.0
    %1781 = vmatpush1.msra.mxu0 0.0
    %1782 = vmatprep.subr.mxu0 0.0
    %1783 = vmatpush1.msra.mxu0 0.0
    %1784 = vmatprep.subr.mxu0 0.0
    %1785 = vmatpush1.msra.mxu0 0.0
    %1786 = vmatprep.subr.mxu0 0.0
    %1787 = vmatpush1.msra.mxu0 0.0
    %1788 = vmatprep.subr.mxu0 0.0
    %1789 = vmatpush1.msra.mxu0 0.0
    %1790 = vmatprep.subr.mxu0 0.0
    %1791 = vmatpush1.msra.mxu0 0.0
    %1792 = vmatprep.subr.mxu0 0.0
    %1793 = vmatpush1.msra.mxu0 0.0
    %1794 = vmatprep.subr.mxu0 0.0
    %1795 = vmatpush1.msra.mxu0 0.0
    %1796 = vmatprep.subr.mxu0 0.0
    %1797 = vmatpush1.msra.mxu0 0.0
    %1798 = vmatprep.subr.mxu0 0.0
    %1799 = vmatpush1.msra.mxu0 0.0
    %1800 = vmatprep.subr.mxu0 0.0
    %1801 = vmatpush1.msra.mxu0 0.0
    %1802 = vmatprep.subr.mxu0 0.0
    %1803 = vmatpush1.msra.mxu0 0.0
    %1804 = vmatprep.subr.mxu0 0.0
    %1805 = vmatpush1.msra.mxu0 0.0
    %1806 = vmatprep.subr.mxu0 0.0
    %1807 = vmatpush1.msra.mxu0 0.0
    %1808 = vmatprep.subr.mxu0 0.0
    %1809 = vmatpush1.msra.mxu0 0.0
    %1810 = vmatprep.subr.mxu0 0.0
    %1811 = vmatpush1.msra.mxu0 0.0
    %1812 = vmatprep.subr.mxu0 0.0
    %1813 = vmatpush1.msra.mxu0 0.0
    %1814 = vmatprep.mubr.f32.mxu0 0.0
    %1815 = vmatmul.mubr.f32.gmra.mrb[0].mxu0 %v1748
    %v1816 = vpop.f32.mrb[0].mxu0
    %v1817 = vadd.f32 0.0, %v1816
    %v1818 = vpop.f32.mrb[0].mxu0
    %1819 = vdwg.mxu0
    %v1820 = vadd.f32 %v1744, %v1817
    %v1821 = vxor.u32 %v1820, 2147483648
    %v1822 = vmul.f32 %v1821, 1.442695
    %v1823 = vpow.pop %v1822
    %v1824 = vadd.f32 %v1823, 1.0
    %v1825 = vrcp.pop %v1824
    %v1826 = vmul.f32 1.0, %v1825
    %v1827 = vmul.f32 %v1826, 2.0
    %v1828 = vsub.f32 %v1827, 1.0
    %v1829 = vmul.f32 %v1826, %v1565
    %1831 = vrot.lane.b32.xlu0 %v1828, 64
    %v1832 = vpop.permute.xlu0 %1831
    %v1834 = vmul.f32 %v1826, %v1832
    %1836 = vrot.lane.b32.xlu0 %v1834, 32
    %v1837 = vpop.permute.xlu0 %1836
    %v1839 = vadd.f32 %v1829, %v1837
    %v1840 = vtanh.pop %v1839
    %1842 = vrot.lane.b32.xlu0 %v1840, 64
    %v1843 = vpop.permute.xlu0 %1842
    %v1845 = vmul.f32 %v1826, %v1843
    %1846 = vmatprep.subr.mxu0 0.0
    %1847 = vmatpush1.msra.mxu0 %v102
    %1848 = vmatprep.subr.mxu0 0.0
    %1849 = vmatpush1.msra.mxu0 %v103
    %1850 = vmatprep.subr.mxu0 0.0
    %1851 = vmatpush1.msra.mxu0 %v104
    %1852 = vmatprep.subr.mxu0 0.0
    %1853 = vmatpush1.msra.mxu0 %v105
    %1854 = vmatprep.subr.mxu0 0.0
    %1855 = vmatpush1.msra.mxu0 0.0
    %1856 = vmatprep.subr.mxu0 0.0
    %1857 = vmatpush1.msra.mxu0 0.0
    %1858 = vmatprep.subr.mxu0 0.0
    %1859 = vmatpush1.msra.mxu0 0.0
    %1860 = vmatprep.subr.mxu0 0.0
    %1861 = vmatpush1.msra.mxu0 0.0
    %1862 = vmatprep.subr.mxu0 0.0
    %1863 = vmatpush1.msra.mxu0 0.0
    %1864 = vmatprep.subr.mxu0 0.0
    %1865 = vmatpush1.msra.mxu0 0.0
    %1866 = vmatprep.subr.mxu0 0.0
    %1867 = vmatpush1.msra.mxu0 0.0
    %1868 = vmatprep.subr.mxu0 0.0
    %1869 = vmatpush1.msra.mxu0 0.0
    %1870 = vmatprep.subr.mxu0 0.0
    %1871 = vmatpush1.msra.mxu0 0.0
    %1872 = vmatprep.subr.mxu0 0.0
    %1873 = vmatpush1.msra.mxu0 0.0
    %1874 = vmatprep.subr.mxu0 0.0
    %1875 = vmatpush1.msra.mxu0 0.0
    %1876 = vmatprep.subr.mxu0 0.0
    %1877 = vmatpush1.msra.mxu0 0.0
    %1878 = vmatprep.subr.mxu0 0.0
    %1879 = vmatpush1.msra.mxu0 0.0
    %1880 = vmatprep.subr.mxu0 0.0
    %1881 = vmatpush1.msra.mxu0 0.0
    %1882 = vmatprep.subr.mxu0 0.0
    %1883 = vmatpush1.msra.mxu0 0.0
    %1884 = vmatprep.subr.mxu0 0.0
    %1885 = vmatpush1.msra.mxu0 0.0
    %1886 = vmatprep.subr.mxu0 0.0
    %1887 = vmatpush1.msra.mxu0 0.0
    %1888 = vmatprep.subr.mxu0 0.0
    %1889 = vmatpush1.msra.mxu0 0.0
    %1890 = vmatprep.subr.mxu0 0.0
    %1891 = vmatpush1.msra.mxu0 0.0
    %1892 = vmatprep.subr.mxu0 0.0
    %1893 = vmatpush1.msra.mxu0 0.0
    %1894 = vmatprep.subr.mxu0 0.0
    %1895 = vmatpush1.msra.mxu0 0.0
    %1896 = vmatprep.subr.mxu0 0.0
    %1897 = vmatpush1.msra.mxu0 0.0
    %1898 = vmatprep.subr.mxu0 0.0
    %1899 = vmatpush1.msra.mxu0 0.0
    %1900 = vmatprep.subr.mxu0 0.0
    %1901 = vmatpush1.msra.mxu0 0.0
    %1902 = vmatprep.subr.mxu0 0.0
    %1903 = vmatpush1.msra.mxu0 0.0
    %1904 = vmatprep.subr.mxu0 0.0
    %1905 = vmatpush1.msra.mxu0 0.0
    %1906 = vmatprep.subr.mxu0 0.0
    %1907 = vmatpush1.msra.mxu0 0.0
    %1908 = vmatprep.subr.mxu0 0.0
    %1909 = vmatpush1.msra.mxu0 0.0
    %1910 = vmatprep.mubr.f32.mxu0 0.0
    %1911 = vmatmul.mubr.f32.gmra.mrb[0].mxu0 %v1748
    %v1912 = vpop.f32.mrb[0].mxu0
    %v1913 = vadd.f32 %v479, %v1912
    %v1914 = vpop.f32.mrb[0].mxu0
    %1915 = vdwg.mxu0
    %1917 = vrot.lane.b32.xlu0 %v1742, 32
    %v1918 = vpop.permute.xlu0 %1917
    %v1919 = vsel %vm272, %v1918, 0
    %1921 = vmatprep.subr.mxu0 0.0
    %1922 = vmatpush1.msra.mxu0 %v94
    %1923 = vmatprep.subr.mxu0 0.0
    %1924 = vmatpush1.msra.mxu0 %v95
    %1925 = vmatprep.subr.mxu0 0.0
    %1926 = vmatpush1.msra.mxu0 %v96
    %1927 = vmatprep.subr.mxu0 0.0
    %1928 = vmatpush1.msra.mxu0 %v97
    %1929 = vmatprep.subr.mxu0 0.0
    %1930 = vmatpush1.msra.mxu0 0.0
    %1931 = vmatprep.subr.mxu0 0.0
    %1932 = vmatpush1.msra.mxu0 0.0
    %1933 = vmatprep.subr.mxu0 0.0
    %1934 = vmatpush1.msra.mxu0 0.0
    %1935 = vmatprep.subr.mxu0 0.0
    %1936 = vmatpush1.msra.mxu0 0.0
    %1937 = vmatprep.subr.mxu0 0.0
    %1938 = vmatpush1.msra.mxu0 0.0
    %1939 = vmatprep.subr.mxu0 0.0
    %1940 = vmatpush1.msra.mxu0 0.0
    %1941 = vmatprep.subr.mxu0 0.0
    %1942 = vmatpush1.msra.mxu0 0.0
    %1943 = vmatprep.subr.mxu0 0.0
    %1944 = vmatpush1.msra.mxu0 0.0
    %1945 = vmatprep.subr.mxu0 0.0
    %1946 = vmatpush1.msra.mxu0 0.0
    %1947 = vmatprep.subr.mxu0 0.0
    %1948 = vmatpush1.msra.mxu0 0.0
    %1949 = vmatprep.subr.mxu0 0.0
    %1950 = vmatpush1.msra.mxu0 0.0
    %1951 = vmatprep.subr.mxu0 0.0
    %1952 = vmatpush1.msra.mxu0 0.0
    %1953 = vmatprep.subr.mxu0 0.0
    %1954 = vmatpush1.msra.mxu0 0.0
    %1955 = vmatprep.subr.mxu0 0.0
    %1956 = vmatpush1.msra.mxu0 0.0
    %1957 = vmatprep.subr.mxu0 0.0
    %1958 = vmatpush1.msra.mxu0 0.0
    %1959 = vmatprep.subr.mxu0 0.0
    %1960 = vmatpush1.msra.mxu0 0.0
    %1961 = vmatprep.subr.mxu0 0.0
    %1962 = vmatpush1.msra.mxu0 0.0
    %1963 = vmatprep.subr.mxu0 0.0
    %1964 = vmatpush1.msra.mxu0 0.0
    %1965 = vmatprep.subr.mxu0 0.0
    %1966 = vmatpush1.msra.mxu0 0.0
    %1967 = vmatprep.subr.mxu0 0.0
    %1968 = vmatpush1.msra.mxu0 0.0
    %1969 = vmatprep.subr.mxu0 0.0
    %1970 = vmatpush1.msra.mxu0 0.0
    %1971 = vmatprep.subr.mxu0 0.0
    %1972 = vmatpush1.msra.mxu0 0.0
    %1973 = vmatprep.subr.mxu0 0.0
    %1974 = vmatpush1.msra.mxu0 0.0
    %1975 = vmatprep.subr.mxu0 0.0
    %1976 = vmatpush1.msra.mxu0 0.0
    %1977 = vmatprep.subr.mxu0 0.0
    %1978 = vmatpush1.msra.mxu0 0.0
    %1979 = vmatprep.subr.mxu0 0.0
    %1980 = vmatpush1.msra.mxu0 0.0
    %1981 = vmatprep.subr.mxu0 0.0
    %1982 = vmatpush1.msra.mxu0 0.0
    %1983 = vmatprep.subr.mxu0 0.0
    %1984 = vmatpush1.msra.mxu0 0.0
    %1985 = vmatprep.mubr.f32.mxu0 0.0
    %1986 = vmatmul.mubr.f32.gmra.mrb[0].mxu0 %v1919
    %v1987 = vpop.f32.mrb[0].mxu0
    %v1988 = vadd.f32 0.0, %v1987
    %v1989 = vpop.f32.mrb[0].mxu0
    %1990 = vdwg.mxu0
    %v1991 = vadd.f32 %v1913, %v1988
    %v1992 = vxor.u32 %v1991, 2147483648
    %v1993 = vmul.f32 %v1992, 1.442695
    %v1994 = vpow.pop %v1993
    %v1995 = vadd.f32 %v1994, 1.0
    %v1996 = vrcp.pop %v1995
    %v1997 = vmul.f32 1.0, %v1996
    %v1998 = vmul.f32 %v1997, 2.0
    %v1999 = vsub.f32 %v1998, 1.0
    %v2000 = vmul.f32 %v1997, %v1736
    %2002 = vrot.lane.b32.xlu0 %v1999, 64
    %v2003 = vpop.permute.xlu0 %2002
    %v2005 = vmul.f32 %v1997, %v2003
    %2007 = vrot.lane.b32.xlu0 %v2005, 32
    %v2008 = vpop.permute.xlu0 %2007
    %v2010 = vadd.f32 %v2000, %v2008
    %v2011 = vtanh.pop %v2010
    %2013 = vrot.lane.b32.xlu0 %v2011, 64
    %v2014 = vpop.permute.xlu0 %2013
    %v2016 = vmul.f32 %v1997, %v2014
    %s2017 = scalar_lea.vmem [#allocation2], 56
    %v2018 = vld [vmem:[%s2017] sm:$0xff]
    %2020 = vrot.lane.b32.xlu0 %v1845, 32
    %v2021 = vpop.permute.xlu0 %2020
    %v2022 = vsel %vm272, %v2021, 0
    %2024 = vmatprep.subr.mxu0 0.0
    %2025 = vmatpush1.msra.mxu0 %v86
    %2026 = vmatprep.subr.mxu0 0.0
    %2027 = vmatpush1.msra.mxu0 %v87
    %2028 = vmatprep.subr.mxu0 0.0
    %2029 = vmatpush1.msra.mxu0 %v88
    %2030 = vmatprep.subr.mxu0 0.0
    %2031 = vmatpush1.msra.mxu0 %v89
    %2032 = vmatprep.subr.mxu0 0.0
    %2033 = vmatpush1.msra.mxu0 0.0
    %2034 = vmatprep.subr.mxu0 0.0
    %2035 = vmatpush1.msra.mxu0 0.0
    %2036 = vmatprep.subr.mxu0 0.0
    %2037 = vmatpush1.msra.mxu0 0.0
    %2038 = vmatprep.subr.mxu0 0.0
    %2039 = vmatpush1.msra.mxu0 0.0
    %2040 = vmatprep.subr.mxu0 0.0
    %2041 = vmatpush1.msra.mxu0 0.0
    %2042 = vmatprep.subr.mxu0 0.0
    %2043 = vmatpush1.msra.mxu0 0.0
    %2044 = vmatprep.subr.mxu0 0.0
    %2045 = vmatpush1.msra.mxu0 0.0
    %2046 = vmatprep.subr.mxu0 0.0
    %2047 = vmatpush1.msra.mxu0 0.0
    %2048 = vmatprep.subr.mxu0 0.0
    %2049 = vmatpush1.msra.mxu0 0.0
    %2050 = vmatprep.subr.mxu0 0.0
    %2051 = vmatpush1.msra.mxu0 0.0
    %2052 = vmatprep.subr.mxu0 0.0
    %2053 = vmatpush1.msra.mxu0 0.0
    %2054 = vmatprep.subr.mxu0 0.0
    %2055 = vmatpush1.msra.mxu0 0.0
    %2056 = vmatprep.subr.mxu0 0.0
    %2057 = vmatpush1.msra.mxu0 0.0
    %2058 = vmatprep.subr.mxu0 0.0
    %2059 = vmatpush1.msra.mxu0 0.0
    %2060 = vmatprep.subr.mxu0 0.0
    %2061 = vmatpush1.msra.mxu0 0.0
    %2062 = vmatprep.subr.mxu0 0.0
    %2063 = vmatpush1.msra.mxu0 0.0
    %2064 = vmatprep.subr.mxu0 0.0
    %2065 = vmatpush1.msra.mxu0 0.0
    %2066 = vmatprep.subr.mxu0 0.0
    %2067 = vmatpush1.msra.mxu0 0.0
    %2068 = vmatprep.subr.mxu0 0.0
    %2069 = vmatpush1.msra.mxu0 0.0
    %2070 = vmatprep.subr.mxu0 0.0
    %2071 = vmatpush1.msra.mxu0 0.0
    %2072 = vmatprep.subr.mxu0 0.0
    %2073 = vmatpush1.msra.mxu0 0.0
    %2074 = vmatprep.subr.mxu0 0.0
    %2075 = vmatpush1.msra.mxu0 0.0
    %2076 = vmatprep.subr.mxu0 0.0
    %2077 = vmatpush1.msra.mxu0 0.0
    %2078 = vmatprep.subr.mxu0 0.0
    %2079 = vmatpush1.msra.mxu0 0.0
    %2080 = vmatprep.subr.mxu0 0.0
    %2081 = vmatpush1.msra.mxu0 0.0
    %2082 = vmatprep.subr.mxu0 0.0
    %2083 = vmatpush1.msra.mxu0 0.0
    %2084 = vmatprep.subr.mxu0 0.0
    %2085 = vmatpush1.msra.mxu0 0.0
    %2086 = vmatprep.subr.mxu0 0.0
    %2087 = vmatpush1.msra.mxu0 0.0
    %2088 = vmatprep.mubr.f32.mxu0 0.0
    %2089 = vmatmul.mubr.f32.gmra.mrb[0].mxu0 %v2022
    %v2090 = vpop.f32.mrb[0].mxu0
    %v2091 = vadd.f32 0.0, %v2090
    %v2092 = vpop.f32.mrb[0].mxu0
    %2093 = vdwg.mxu0
    %v2094 = vadd.f32 %v2018, %v2091
    %v2095 = vxor.u32 %v2094, 2147483648
    %v2096 = vmul.f32 %v2095, 1.442695
    %v2097 = vpow.pop %v2096
    %v2098 = vadd.f32 %v2097, 1.0
    %v2099 = vrcp.pop %v2098
    %v2100 = vmul.f32 1.0, %v2099
    %v2101 = vmul.f32 %v2100, 2.0
    %v2102 = vsub.f32 %v2101, 1.0
    %v2103 = vmul.f32 %v2100, %v1839
    %2105 = vrot.lane.b32.xlu0 %v2102, 64
    %v2106 = vpop.permute.xlu0 %2105
    %v2108 = vmul.f32 %v2100, %v2106
    %2110 = vrot.lane.b32.xlu0 %v2108, 32
    %v2111 = vpop.permute.xlu0 %2110
    %v2113 = vadd.f32 %v2103, %v2111
    %v2114 = vtanh.pop %v2113
    %2116 = vrot.lane.b32.xlu0 %v2114, 64
    %v2117 = vpop.permute.xlu0 %2116
    %v2119 = vmul.f32 %v2100, %v2117
    %2120 = vmatprep.subr.mxu0 0.0
    %2121 = vmatpush1.msra.mxu0 %v102
    %2122 = vmatprep.subr.mxu0 0.0
    %2123 = vmatpush1.msra.mxu0 %v103
    %2124 = vmatprep.subr.mxu0 0.0
    %2125 = vmatpush1.msra.mxu0 %v104
    %2126 = vmatprep.subr.mxu0 0.0
    %2127 = vmatpush1.msra.mxu0 %v105
    %2128 = vmatprep.subr.mxu0 0.0
    %2129 = vmatpush1.msra.mxu0 0.0
    %2130 = vmatprep.subr.mxu0 0.0
    %2131 = vmatpush1.msra.mxu0 0.0
    %2132 = vmatprep.subr.mxu0 0.0
    %2133 = vmatpush1.msra.mxu0 0.0
    %2134 = vmatprep.subr.mxu0 0.0
    %2135 = vmatpush1.msra.mxu0 0.0
    %2136 = vmatprep.subr.mxu0 0.0
    %2137 = vmatpush1.msra.mxu0 0.0
    %2138 = vmatprep.subr.mxu0 0.0
    %2139 = vmatpush1.msra.mxu0 0.0
    %2140 = vmatprep.subr.mxu0 0.0
    %2141 = vmatpush1.msra.mxu0 0.0
    %2142 = vmatprep.subr.mxu0 0.0
    %2143 = vmatpush1.msra.mxu0 0.0
    %2144 = vmatprep.subr.mxu0 0.0
    %2145 = vmatpush1.msra.mxu0 0.0
    %2146 = vmatprep.subr.mxu0 0.0
    %2147 = vmatpush1.msra.mxu0 0.0
    %2148 = vmatprep.subr.mxu0 0.0
    %2149 = vmatpush1.msra.mxu0 0.0
    %2150 = vmatprep.subr.mxu0 0.0
    %2151 = vmatpush1.msra.mxu0 0.0
    %2152 = vmatprep.subr.mxu0 0.0
    %2153 = vmatpush1.msra.mxu0 0.0
    %2154 = vmatprep.subr.mxu0 0.0
    %2155 = vmatpush1.msra.mxu0 0.0
    %2156 = vmatprep.subr.mxu0 0.0
    %2157 = vmatpush1.msra.mxu0 0.0
    %2158 = vmatprep.subr.mxu0 0.0
    %2159 = vmatpush1.msra.mxu0 0.0
    %2160 = vmatprep.subr.mxu0 0.0
    %2161 = vmatpush1.msra.mxu0 0.0
    %2162 = vmatprep.subr.mxu0 0.0
    %2163 = vmatpush1.msra.mxu0 0.0
    %2164 = vmatprep.subr.mxu0 0.0
    %2165 = vmatpush1.msra.mxu0 0.0
    %2166 = vmatprep.subr.mxu0 0.0
    %2167 = vmatpush1.msra.mxu0 0.0
    %2168 = vmatprep.subr.mxu0 0.0
    %2169 = vmatpush1.msra.mxu0 0.0
    %2170 = vmatprep.subr.mxu0 0.0
    %2171 = vmatpush1.msra.mxu0 0.0
    %2172 = vmatprep.subr.mxu0 0.0
    %2173 = vmatpush1.msra.mxu0 0.0
    %2174 = vmatprep.subr.mxu0 0.0
    %2175 = vmatpush1.msra.mxu0 0.0
    %2176 = vmatprep.subr.mxu0 0.0
    %2177 = vmatpush1.msra.mxu0 0.0
    %2178 = vmatprep.subr.mxu0 0.0
    %2179 = vmatpush1.msra.mxu0 0.0
    %2180 = vmatprep.subr.mxu0 0.0
    %2181 = vmatpush1.msra.mxu0 0.0
    %2182 = vmatprep.subr.mxu0 0.0
    %2183 = vmatpush1.msra.mxu0 0.0
    %2184 = vmatprep.mubr.f32.mxu0 0.0
    %2185 = vmatmul.mubr.f32.gmra.mrb[0].mxu0 %v2022
    %v2186 = vpop.f32.mrb[0].mxu0
    %v2187 = vadd.f32 %v479, %v2186
    %v2188 = vpop.f32.mrb[0].mxu0
    %2189 = vdwg.mxu0
    %2191 = vrot.lane.b32.xlu0 %v2016, 32
    %v2192 = vpop.permute.xlu0 %2191
    %v2193 = vsel %vm272, %v2192, 0
    %2195 = vmatprep.subr.mxu0 0.0
    %2196 = vmatpush1.msra.mxu0 %v94
    %2197 = vmatprep.subr.mxu0 0.0
    %2198 = vmatpush1.msra.mxu0 %v95
    %2199 = vmatprep.subr.mxu0 0.0
    %2200 = vmatpush1.msra.mxu0 %v96
    %2201 = vmatprep.subr.mxu0 0.0
    %2202 = vmatpush1.msra.mxu0 %v97
    %2203 = vmatprep.subr.mxu0 0.0
    %2204 = vmatpush1.msra.mxu0 0.0
    %2205 = vmatprep.subr.mxu0 0.0
    %2206 = vmatpush1.msra.mxu0 0.0
    %2207 = vmatprep.subr.mxu0 0.0
    %2208 = vmatpush1.msra.mxu0 0.0
    %2209 = vmatprep.subr.mxu0 0.0
    %2210 = vmatpush1.msra.mxu0 0.0
    %2211 = vmatprep.subr.mxu0 0.0
    %2212 = vmatpush1.msra.mxu0 0.0
    %2213 = vmatprep.subr.mxu0 0.0
    %2214 = vmatpush1.msra.mxu0 0.0
    %2215 = vmatprep.subr.mxu0 0.0
    %2216 = vmatpush1.msra.mxu0 0.0
    %2217 = vmatprep.subr.mxu0 0.0
    %2218 = vmatpush1.msra.mxu0 0.0
    %2219 = vmatprep.subr.mxu0 0.0
    %2220 = vmatpush1.msra.mxu0 0.0
    %2221 = vmatprep.subr.mxu0 0.0
    %2222 = vmatpush1.msra.mxu0 0.0
    %2223 = vmatprep.subr.mxu0 0.0
    %2224 = vmatpush1.msra.mxu0 0.0
    %2225 = vmatprep.subr.mxu0 0.0
    %2226 = vmatpush1.msra.mxu0 0.0
    %2227 = vmatprep.subr.mxu0 0.0
    %2228 = vmatpush1.msra.mxu0 0.0
    %2229 = vmatprep.subr.mxu0 0.0
    %2230 = vmatpush1.msra.mxu0 0.0
    %2231 = vmatprep.subr.mxu0 0.0
    %2232 = vmatpush1.msra.mxu0 0.0
    %2233 = vmatprep.subr.mxu0 0.0
    %2234 = vmatpush1.msra.mxu0 0.0
    %2235 = vmatprep.subr.mxu0 0.0
    %2236 = vmatpush1.msra.mxu0 0.0
    %2237 = vmatprep.subr.mxu0 0.0
    %2238 = vmatpush1.msra.mxu0 0.0
    %2239 = vmatprep.subr.mxu0 0.0
    %2240 = vmatpush1.msra.mxu0 0.0
    %2241 = vmatprep.subr.mxu0 0.0
    %2242 = vmatpush1.msra.mxu0 0.0
    %2243 = vmatprep.subr.mxu0 0.0
    %2244 = vmatpush1.msra.mxu0 0.0
    %2245 = vmatprep.subr.mxu0 0.0
    %2246 = vmatpush1.msra.mxu0 0.0
    %2247 = vmatprep.subr.mxu0 0.0
    %2248 = vmatpush1.msra.mxu0 0.0
    %2249 = vmatprep.subr.mxu0 0.0
    %2250 = vmatpush1.msra.mxu0 0.0
    %2251 = vmatprep.subr.mxu0 0.0
    %2252 = vmatpush1.msra.mxu0 0.0
    %2253 = vmatprep.subr.mxu0 0.0
    %2254 = vmatpush1.msra.mxu0 0.0
    %2255 = vmatprep.subr.mxu0 0.0
    %2256 = vmatpush1.msra.mxu0 0.0
    %2257 = vmatprep.subr.mxu0 0.0
    %2258 = vmatpush1.msra.mxu0 0.0
    %2259 = vmatprep.mubr.f32.mxu0 0.0
    %2260 = vmatmul.mubr.f32.gmra.mrb[0].mxu0 %v2193
    %v2261 = vpop.f32.mrb[0].mxu0
    %v2262 = vadd.f32 0.0, %v2261
    %v2263 = vpop.f32.mrb[0].mxu0
    %2264 = vdwg.mxu0
    %v2265 = vadd.f32 %v2187, %v2262
    %v2266 = vxor.u32 %v2265, 2147483648
    %v2267 = vmul.f32 %v2266, 1.442695
    %v2268 = vpow.pop %v2267
    %v2269 = vadd.f32 %v2268, 1.0
    %v2270 = vrcp.pop %v2269
    %v2271 = vmul.f32 1.0, %v2270
    %v2272 = vmul.f32 %v2271, 2.0
    %v2273 = vsub.f32 %v2272, 1.0
    %v2274 = vmul.f32 %v2271, %v2010
    %2276 = vrot.lane.b32.xlu0 %v2273, 64
    %v2277 = vpop.permute.xlu0 %2276
    %v2279 = vmul.f32 %v2271, %v2277
    %2281 = vrot.lane.b32.xlu0 %v2279, 32
    %v2282 = vpop.permute.xlu0 %2281
    %v2284 = vadd.f32 %v2274, %v2282
    %v2285 = vtanh.pop %v2284
    %2287 = vrot.lane.b32.xlu0 %v2285, 64
    %v2288 = vpop.permute.xlu0 %2287
    %v2290 = vmul.f32 %v2271, %v2288
    %2292 = vrot.lane.b32.xlu0 %v2119, 32
    %v2293 = vpop.permute.xlu0 %2292
    %v2294 = vsel %vm272, %v2293, 0
    %2296 = vmatprep.subr.mxu0 0.0
    %2297 = vmatpush1.msra.mxu0 %v102
    %2298 = vmatprep.subr.mxu0 0.0
    %2299 = vmatpush1.msra.mxu0 %v103
    %2300 = vmatprep.subr.mxu0 0.0
    %2301 = vmatpush1.msra.mxu0 %v104
    %2302 = vmatprep.subr.mxu0 0.0
    %2303 = vmatpush1.msra.mxu0 %v105
    %2304 = vmatprep.subr.mxu0 0.0
    %2305 = vmatpush1.msra.mxu0 0.0
    %2306 = vmatprep.subr.mxu0 0.0
    %2307 = vmatpush1.msra.mxu0 0.0
    %2308 = vmatprep.subr.mxu0 0.0
    %2309 = vmatpush1.msra.mxu0 0.0
    %2310 = vmatprep.subr.mxu0 0.0
    %2311 = vmatpush1.msra.mxu0 0.0
    %2312 = vmatprep.subr.mxu0 0.0
    %2313 = vmatpush1.msra.mxu0 0.0
    %2314 = vmatprep.subr.mxu0 0.0
    %2315 = vmatpush1.msra.mxu0 0.0
    %2316 = vmatprep.subr.mxu0 0.0
    %2317 = vmatpush1.msra.mxu0 0.0
    %2318 = vmatprep.subr.mxu0 0.0
    %2319 = vmatpush1.msra.mxu0 0.0
    %2320 = vmatprep.subr.mxu0 0.0
    %2321 = vmatpush1.msra.mxu0 0.0
    %2322 = vmatprep.subr.mxu0 0.0
    %2323 = vmatpush1.msra.mxu0 0.0
    %2324 = vmatprep.subr.mxu0 0.0
    %2325 = vmatpush1.msra.mxu0 0.0
    %2326 = vmatprep.subr.mxu0 0.0
    %2327 = vmatpush1.msra.mxu0 0.0
    %2328 = vmatprep.subr.mxu0 0.0
    %2329 = vmatpush1.msra.mxu0 0.0
    %2330 = vmatprep.subr.mxu0 0.0
    %2331 = vmatpush1.msra.mxu0 0.0
    %2332 = vmatprep.subr.mxu0 0.0
    %2333 = vmatpush1.msra.mxu0 0.0
    %2334 = vmatprep.subr.mxu0 0.0
    %2335 = vmatpush1.msra.mxu0 0.0
    %2336 = vmatprep.subr.mxu0 0.0
    %2337 = vmatpush1.msra.mxu0 0.0
    %2338 = vmatprep.subr.mxu0 0.0
    %2339 = vmatpush1.msra.mxu0 0.0
    %2340 = vmatprep.subr.mxu0 0.0
    %2341 = vmatpush1.msra.mxu0 0.0
    %2342 = vmatprep.subr.mxu0 0.0
    %2343 = vmatpush1.msra.mxu0 0.0
    %2344 = vmatprep.subr.mxu0 0.0
    %2345 = vmatpush1.msra.mxu0 0.0
    %2346 = vmatprep.subr.mxu0 0.0
    %2347 = vmatpush1.msra.mxu0 0.0
    %2348 = vmatprep.subr.mxu0 0.0
    %2349 = vmatpush1.msra.mxu0 0.0
    %2350 = vmatprep.subr.mxu0 0.0
    %2351 = vmatpush1.msra.mxu0 0.0
    %2352 = vmatprep.subr.mxu0 0.0
    %2353 = vmatpush1.msra.mxu0 0.0
    %2354 = vmatprep.subr.mxu0 0.0
    %2355 = vmatpush1.msra.mxu0 0.0
    %2356 = vmatprep.subr.mxu0 0.0
    %2357 = vmatpush1.msra.mxu0 0.0
    %2358 = vmatprep.subr.mxu0 0.0
    %2359 = vmatpush1.msra.mxu0 0.0
    %2360 = vmatprep.mubr.f32.mxu0 0.0
    %2361 = vmatmul.mubr.f32.gmra.mrb[0].mxu0 %v2294
    %v2362 = vpop.f32.mrb[0].mxu0
    %v2363 = vadd.f32 %v479, %v2362
    %v2364 = vpop.f32.mrb[0].mxu0
    %2365 = vdwg.mxu0
    %2367 = vrot.lane.b32.xlu0 %v2290, 32
    %v2368 = vpop.permute.xlu0 %2367
    %v2369 = vsel %vm272, %v2368, 0
    %2371 = vmatprep.subr.mxu0 0.0
    %2372 = vmatpush1.msra.mxu0 %v94
    %2373 = vmatprep.subr.mxu0 0.0
    %2374 = vmatpush1.msra.mxu0 %v95
    %2375 = vmatprep.subr.mxu0 0.0
    %2376 = vmatpush1.msra.mxu0 %v96
    %2377 = vmatprep.subr.mxu0 0.0
    %2378 = vmatpush1.msra.mxu0 %v97
    %2379 = vmatprep.subr.mxu0 0.0
    %2380 = vmatpush1.msra.mxu0 0.0
    %2381 = vmatprep.subr.mxu0 0.0
    %2382 = vmatpush1.msra.mxu0 0.0
    %2383 = vmatprep.subr.mxu0 0.0
    %2384 = vmatpush1.msra.mxu0 0.0
    %2385 = vmatprep.subr.mxu0 0.0
    %2386 = vmatpush1.msra.mxu0 0.0
    %2387 = vmatprep.subr.mxu0 0.0
    %2388 = vmatpush1.msra.mxu0 0.0
    %2389 = vmatprep.subr.mxu0 0.0
    %2390 = vmatpush1.msra.mxu0 0.0
    %2391 = vmatprep.subr.mxu0 0.0
    %2392 = vmatpush1.msra.mxu0 0.0
    %2393 = vmatprep.subr.mxu0 0.0
    %2394 = vmatpush1.msra.mxu0 0.0
    %2395 = vmatprep.subr.mxu0 0.0
    %2396 = vmatpush1.msra.mxu0 0.0
    %2397 = vmatprep.subr.mxu0 0.0
    %2398 = vmatpush1.msra.mxu0 0.0
    %2399 = vmatprep.subr.mxu0 0.0
    %2400 = vmatpush1.msra.mxu0 0.0
    %2401 = vmatprep.subr.mxu0 0.0
    %2402 = vmatpush1.msra.mxu0 0.0
    %2403 = vmatprep.subr.mxu0 0.0
    %2404 = vmatpush1.msra.mxu0 0.0
    %2405 = vmatprep.subr.mxu0 0.0
    %2406 = vmatpush1.msra.mxu0 0.0
    %2407 = vmatprep.subr.mxu0 0.0
    %2408 = vmatpush1.msra.mxu0 0.0
    %2409 = vmatprep.subr.mxu0 0.0
    %2410 = vmatpush1.msra.mxu0 0.0
    %2411 = vmatprep.subr.mxu0 0.0
    %2412 = vmatpush1.msra.mxu0 0.0
    %2413 = vmatprep.subr.mxu0 0.0
    %2414 = vmatpush1.msra.mxu0 0.0
    %2415 = vmatprep.subr.mxu0 0.0
    %2416 = vmatpush1.msra.mxu0 0.0
    %2417 = vmatprep.subr.mxu0 0.0
    %2418 = vmatpush1.msra.mxu0 0.0
    %2419 = vmatprep.subr.mxu0 0.0
    %2420 = vmatpush1.msra.mxu0 0.0
    %2421 = vmatprep.subr.mxu0 0.0
    %2422 = vmatpush1.msra.mxu0 0.0
    %2423 = vmatprep.subr.mxu0 0.0
    %2424 = vmatpush1.msra.mxu0 0.0
    %2425 = vmatprep.subr.mxu0 0.0
    %2426 = vmatpush1.msra.mxu0 0.0
    %2427 = vmatprep.subr.mxu0 0.0
    %2428 = vmatpush1.msra.mxu0 0.0
    %2429 = vmatprep.subr.mxu0 0.0
    %2430 = vmatpush1.msra.mxu0 0.0
    %2431 = vmatprep.subr.mxu0 0.0
    %2432 = vmatpush1.msra.mxu0 0.0
    %2433 = vmatprep.subr.mxu0 0.0
    %2434 = vmatpush1.msra.mxu0 0.0
    %2435 = vmatprep.mubr.f32.mxu0 0.0
    %2436 = vmatmul.mubr.f32.gmra.mrb[0].mxu0 %v2369
    %v2437 = vpop.f32.mrb[0].mxu0
    %v2438 = vadd.f32 0.0, %v2437
    %v2439 = vpop.f32.mrb[0].mxu0
    %2440 = vdwg.mxu0
    %v2441 = vadd.f32 %v2363, %v2438
    %v2442 = vxor.u32 %v2441, 2147483648
    %v2443 = vmul.f32 %v2442, 1.442695
    %v2444 = vpow.pop %v2443
    %v2445 = vadd.f32 %v2444, 1.0
    %v2446 = vrcp.pop %v2445
    %v2447 = vmul.f32 1.0, %v2446
    %v2448 = vmul.f32 %v2447, 2.0
    %v2449 = vsub.f32 %v2448, 1.0
    %v2450 = vmul.f32 %v2447, %v2284
    %2452 = vrot.lane.b32.xlu0 %v2449, 64
    %v2453 = vpop.permute.xlu0 %2452
    %v2455 = vmul.f32 %v2447, %v2453
    %2457 = vrot.lane.b32.xlu0 %v2455, 32
    %v2458 = vpop.permute.xlu0 %2457
    %v2460 = vadd.f32 %v2450, %v2458
    %v2461 = vtanh.pop %v2460
    %2463 = vrot.lane.b32.xlu0 %v2461, 64
    %v2464 = vpop.permute.xlu0 %2463
    %v2466 = vmul.f32 %v2447, %v2464
    %v2467 = vld [vmem:[%s6] sm:$0xff]
    %v2468 = vld [vmem:[%s6 + $0x8] sm:$0xff]
    %v2469 = vld [vmem:[%s6 + $0x10] sm:$0xff]
    %v2470 = vld [vmem:[%s6 + $0x18] sm:$0xff]
    %v2471 = vld [vmem:[%s7] sm:$0x1]
    %v2473 = vlaneseq
    %v2474 = vshrl.u32 %v2473, 7
    %v2475 = vsub.s32 0, %v2474
    %v2476 = vrot.slane %v2471, %v2475
    %2479 = vrot.lane.b32.xlu0 %v2466, 32
    %v2480 = vpop.permute.xlu0 %2479
    %v2481 = vsel %vm272, %v2480, 0
    %2483 = vmatprep.subr.mxu0 0.0
    %2484 = vmatpush1.msra.mxu0 %v2467
    %2485 = vmatprep.subr.mxu0 0.0
    %2486 = vmatpush1.msra.mxu0 %v2468
    %2487 = vmatprep.subr.mxu0 0.0
    %2488 = vmatpush1.msra.mxu0 %v2469
    %2489 = vmatprep.subr.mxu0 0.0
    %2490 = vmatpush1.msra.mxu0 %v2470
    %2491 = vmatprep.subr.mxu0 0.0
    %2492 = vmatpush1.msra.mxu0 0.0
    %2493 = vmatprep.subr.mxu0 0.0
    %2494 = vmatpush1.msra.mxu0 0.0
    %2495 = vmatprep.subr.mxu0 0.0
    %2496 = vmatpush1.msra.mxu0 0.0
    %2497 = vmatprep.subr.mxu0 0.0
    %2498 = vmatpush1.msra.mxu0 0.0
    %2499 = vmatprep.subr.mxu0 0.0
    %2500 = vmatpush1.msra.mxu0 0.0
    %2501 = vmatprep.subr.mxu0 0.0
    %2502 = vmatpush1.msra.mxu0 0.0
    %2503 = vmatprep.subr.mxu0 0.0
    %2504 = vmatpush1.msra.mxu0 0.0
    %2505 = vmatprep.subr.mxu0 0.0
    %2506 = vmatpush1.msra.mxu0 0.0
    %2507 = vmatprep.subr.mxu0 0.0
    %2508 = vmatpush1.msra.mxu0 0.0
    %2509 = vmatprep.subr.mxu0 0.0
    %2510 = vmatpush1.msra.mxu0 0.0
    %2511 = vmatprep.subr.mxu0 0.0
    %2512 = vmatpush1.msra.mxu0 0.0
    %2513 = vmatprep.subr.mxu0 0.0
    %2514 = vmatpush1.msra.mxu0 0.0
    %2515 = vmatprep.subr.mxu0 0.0
    %2516 = vmatpush1.msra.mxu0 0.0
    %2517 = vmatprep.subr.mxu0 0.0
    %2518 = vmatpush1.msra.mxu0 0.0
    %2519 = vmatprep.subr.mxu0 0.0
    %2520 = vmatpush1.msra.mxu0 0.0
    %2521 = vmatprep.subr.mxu0 0.0
    %2522 = vmatpush1.msra.mxu0 0.0
    %2523 = vmatprep.subr.mxu0 0.0
    %2524 = vmatpush1.msra.mxu0 0.0
    %2525 = vmatprep.subr.mxu0 0.0
    %2526 = vmatpush1.msra.mxu0 0.0
    %2527 = vmatprep.subr.mxu0 0.0
    %2528 = vmatpush1.msra.mxu0 0.0
    %2529 = vmatprep.subr.mxu0 0.0
    %2530 = vmatpush1.msra.mxu0 0.0
    %2531 = vmatprep.subr.mxu0 0.0
    %2532 = vmatpush1.msra.mxu0 0.0
    %2533 = vmatprep.subr.mxu0 0.0
    %2534 = vmatpush1.msra.mxu0 0.0
    %2535 = vmatprep.subr.mxu0 0.0
    %2536 = vmatpush1.msra.mxu0 0.0
    %2537 = vmatprep.subr.mxu0 0.0
    %2538 = vmatpush1.msra.mxu0 0.0
    %2539 = vmatprep.subr.mxu0 0.0
    %2540 = vmatpush1.msra.mxu0 0.0
    %2541 = vmatprep.subr.mxu0 0.0
    %2542 = vmatpush1.msra.mxu0 0.0
    %2543 = vmatprep.subr.mxu0 0.0
    %2544 = vmatpush1.msra.mxu0 0.0
    %2545 = vmatprep.subr.mxu0 0.0
    %2546 = vmatpush1.msra.mxu0 0.0
    %2547 = vmatprep.mubr.f32.mxu0 0.0
    %2548 = vmatmul.mubr.f32.gmra.mrb[0].mxu0 %v2481
    %v2549 = vpop.f32.mrb[0].mxu0
    %v2550 = vadd.f32 %v2476, %v2549
    %v2551 = vpop.f32.mrb[0].mxu0
    %2552 = vdwg.mxu0
    %v2553 = vmax.f32 %v2550, 0.0
    %v2554 = vld [vmem:[%s8] sm:$0xff]
    %v2555 = vld [vmem:[%s8 + $0x8] sm:$0xff]
    %v2556 = vld [vmem:[%s9] sm:$0x1]
    %v2558 = vlaneseq
    %v2559 = vshrl.u32 %v2558, 7
    %v2560 = vsub.s32 0, %v2559
    %v2561 = vrot.slane %v2556, %v2560
    %v2564 = vsel %vm125, %v2553, 0
    %2566 = vmatprep.subr.mxu0 0.0
    %2567 = vmatpush1.msra.mxu0 %v2554
    %2568 = vmatprep.subr.mxu0 0.0
    %2569 = vmatpush1.msra.mxu0 %v2555
    %2570 = vmatprep.subr.mxu0 0.0
    %2571 = vmatpush1.msra.mxu0 0.0
    %2572 = vmatprep.subr.mxu0 0.0
    %2573 = vmatpush1.msra.mxu0 0.0
    %2574 = vmatprep.subr.mxu0 0.0
    %2575 = vmatpush1.msra.mxu0 0.0
    %2576 = vmatprep.subr.mxu0 0.0
    %2577 = vmatpush1.msra.mxu0 0.0
    %2578 = vmatprep.subr.mxu0 0.0
    %2579 = vmatpush1.msra.mxu0 0.0
    %2580 = vmatprep.subr.mxu0 0.0
    %2581 = vmatpush1.msra.mxu0 0.0
    %2582 = vmatprep.subr.mxu0 0.0
    %2583 = vmatpush1.msra.mxu0 0.0
    %2584 = vmatprep.subr.mxu0 0.0
    %2585 = vmatpush1.msra.mxu0 0.0
    %2586 = vmatprep.subr.mxu0 0.0
    %2587 = vmatpush1.msra.mxu0 0.0
    %2588 = vmatprep.subr.mxu0 0.0
    %2589 = vmatpush1.msra.mxu0 0.0
    %2590 = vmatprep.subr.mxu0 0.0
    %2591 = vmatpush1.msra.mxu0 0.0
    %2592 = vmatprep.subr.mxu0 0.0
    %2593 = vmatpush1.msra.mxu0 0.0
    %2594 = vmatprep.subr.mxu0 0.0
    %2595 = vmatpush1.msra.mxu0 0.0
    %2596 = vmatprep.subr.mxu0 0.0
    %2597 = vmatpush1.msra.mxu0 0.0
    %2598 = vmatprep.subr.mxu0 0.0
    %2599 = vmatpush1.msra.mxu0 0.0
    %2600 = vmatprep.subr.mxu0 0.0
    %2601 = vmatpush1.msra.mxu0 0.0
    %2602 = vmatprep.subr.mxu0 0.0
    %2603 = vmatpush1.msra.mxu0 0.0
    %2604 = vmatprep.subr.mxu0 0.0
    %2605 = vmatpush1.msra.mxu0 0.0
    %2606 = vmatprep.subr.mxu0 0.0
    %2607 = vmatpush1.msra.mxu0 0.0
    %2608 = vmatprep.subr.mxu0 0.0
    %2609 = vmatpush1.msra.mxu0 0.0
    %2610 = vmatprep.subr.mxu0 0.0
    %2611 = vmatpush1.msra.mxu0 0.0
    %2612 = vmatprep.subr.mxu0 0.0
    %2613 = vmatpush1.msra.mxu0 0.0
    %2614 = vmatprep.subr.mxu0 0.0
    %2615 = vmatpush1.msra.mxu0 0.0
    %2616 = vmatprep.subr.mxu0 0.0
    %2617 = vmatpush1.msra.mxu0 0.0
    %2618 = vmatprep.subr.mxu0 0.0
    %2619 = vmatpush1.msra.mxu0 0.0
    %2620 = vmatprep.subr.mxu0 0.0
    %2621 = vmatpush1.msra.mxu0 0.0
    %2622 = vmatprep.subr.mxu0 0.0
    %2623 = vmatpush1.msra.mxu0 0.0
    %2624 = vmatprep.subr.mxu0 0.0
    %2625 = vmatpush1.msra.mxu0 0.0
    %2626 = vmatprep.subr.mxu0 0.0
    %2627 = vmatpush1.msra.mxu0 0.0
    %2628 = vmatprep.subr.mxu0 0.0
    %2629 = vmatpush1.msra.mxu0 0.0
    %2630 = vmatprep.mubr.f32.mxu0 0.0
    %2631 = vmatmul.mubr.f32.gmra.mrb[0].mxu0 %v2564
    %v2632 = vpop.f32.mrb[0].mxu0
    %v2633 = vadd.f32 %v2561, %v2632
    %v2634 = vpop.f32.mrb[0].mxu0
    %2635 = vdwg.mxu0
    %vm2636 = vcmask 15360
    %2637 = vst.msk [vmem:[%s11] sm:$0xff] %vm2636, %v2633
    // Predicated region
    $region46: #{epilepsy_lstm_forward.2} parent=1 // pred_check
      _
    $region47: #{epilepsy_lstm_forward.2} parent=1 // pred_check_branch
      %2639 = sbr.rel (0) target = $region49
    $region48: #{epilepsy_lstm_forward.2} parent=1 // pred_region
      _
    $region49: #{epilepsy_lstm_forward.2} parent=1 // pred_fallthru
      _
    // Predicated region
    $region50: #{epilepsy_lstm_forward.2} parent=1 // pred_check
      _
    $region51: #{epilepsy_lstm_forward.2} parent=1 // pred_check_branch
      %2641 = sbr.rel (0) target = $region53
    $region52: #{epilepsy_lstm_forward.2} parent=1 // pred_region
      _
    $region53: #{epilepsy_lstm_forward.2} parent=1 // pred_fallthru
      _

</llo_original>
